<compile_context>
chip_gen: v6e
topology: v6e:2x2x1
jax: 0.10.0
libtpu: 0.0.40
codegen_flags: <defaults>
</compile_context>

<pallas_src>
import jax
import jax.numpy as jnp
from jax import lax
from jax.experimental import pallas as pl
from jax.experimental.pallas import tpu as pltpu


_VMEM_LIMIT = 48 * 1024 * 1024          # safe on v5e/v6e (128 MiB) and v7x (64 MiB physical)

NT_DIMS = (((1,), (1,)), ((), ()))      # A @ B^T   (contract minor dims)
TN_DIMS = (((0,), (0,)), ((), ()))      # A^T @ B   (contract leading dims)


def _pick_tile(hw, cap=1024):
    """Largest divisor of hw that is a multiple of 8 and <= cap (else full hw)."""
    if hw <= cap:
        return hw
    for t in range(cap, 7, -1):
        if hw % t == 0 and t % 8 == 0:
            return t
    return hw


# ---------------------------------------------------------------------------
# Kernel 1: fused dual 1x1 projection + channel-gate (avg pool -> MLP -> sigmoid)
# ---------------------------------------------------------------------------
def _make_proj_gate_kernel(inv_hw, n_t):
    def kernel(x_ref, wc_ref, bc_ref, w1_ref, b1_ref, w2_ref, b2_ref,
               proj_ref, gate_ref, acc_ref):
        x = x_ref[0]                                              # (tile, C)

        # fused 1x1 convs: [common_v | key-or-query], lane-dense (tile, 2*Cint) store
        proj_ref[0] = (jnp.dot(x, wc_ref[...], preferred_element_type=jnp.float32)
                       + bc_ref[...])

        # ChannelGate avg-pool folded into this pass (partial sums over spatial tiles)
        t = pl.program_id(1)

        @pl.when(t == 0)
        def _():
            acc_ref[...] = jnp.zeros_like(acc_ref)

        acc_ref[...] += jnp.sum(x, axis=0, keepdims=True)         # (1, C)

        @pl.when(t == n_t - 1)
        def _():
            pooled = acc_ref[...] * inv_hw                        # mean over H*W
            h = jnp.maximum(
                jnp.dot(pooled, w1_ref[...], preferred_element_type=jnp.float32)
                + b1_ref[...], 0.0)
            gate_ref[0] = jax.nn.sigmoid(
                jnp.dot(h, w2_ref[...], preferred_element_type=jnp.float32)
                + b2_ref[...])

    return kernel


def project_pool_gate(x, w_cat, b_cat, w1, b1, w2, b2):
    """x: (N, HW, C) -> proj (N, HW, 2*Cint), gate (N, 1, C)."""
    N, HW, C = x.shape
    Cout = w_cat.shape[1]
    tile = _pick_tile(HW)
    n_t = HW // tile
    kernel = _make_proj_gate_kernel(1.0 / HW, n_t)
    const = lambda n, t: (0, 0)

    return pl.pallas_call(
        kernel,
        out_shape=(jax.ShapeDtypeStruct((N, HW, Cout), jnp.float32),
                   jax.ShapeDtypeStruct((N, 1, C), jnp.float32)),
        grid=(N, n_t),
        in_specs=[
            pl.BlockSpec((1, tile, C), lambda n, t: (n, t, 0)),
            pl.BlockSpec(w_cat.shape, const),
            pl.BlockSpec(b_cat.shape, const),
            pl.BlockSpec(w1.shape, const),
            pl.BlockSpec(b1.shape, const),
            pl.BlockSpec(w2.shape, const),
            pl.BlockSpec(b2.shape, const),
        ],
        out_specs=(
            pl.BlockSpec((1, tile, Cout), lambda n, t: (n, t, 0)),
            pl.BlockSpec((1, 1, C), lambda n, t: (n, 0, 0)),       # revisited across t
        ),
        scratch_shapes=[pltpu.VMEM((1, C), jnp.float32)],
        compiler_params=pltpu.CompilerParams(
            dimension_semantics=("parallel", "arbitrary"),
            vmem_limit_bytes=_VMEM_LIMIT),
    )(x, w_cat, b_cat, w1, b1, w2, b2)


# ---------------------------------------------------------------------------
# Kernel 2: cross-attention core + Trans_s/Trans_q + gate*trans + residual (per batch)
# ---------------------------------------------------------------------------
def _attn_fuse_kernel(pq_ref, ps_ref, gq_ref, gs_ref, qres_ref, sres_ref,
                      tsw_ref, tsb_ref, tqw_ref, tqb_ref,
                      eq_ref, es_ref):
    Cint = tsw_ref.shape[0]
    C = tsw_ref.shape[1]
    shot = gs_ref.shape[1]
    Ns = sres_ref.shape[1]
    hw_s = Ns // shot

    pq = pq_ref[0]                          # (Nq, 2*Cint) = [v_q | q_x]
    ps = ps_ref[0]                          # (Ns, 2*Cint) = [v_s | k_x]
    v_q = pq[:, :Cint]
    q_x = pq[:, Cint:]
    v_s = ps[:, :Cint]
    k_x = ps[:, Cint:]

    # A = k_x @ q_x^T  (Ns, Nq) -- no explicit transpose materialized
    A = lax.dot_general(k_x, q_x, NT_DIMS, preferred_element_type=jnp.float32)

    # attention_s = softmax(A, -1); p_s = attention_s @ v_q
    # (normalize after the matmul: row factors hit the small (Ns, Cint) result)
    m_r = jnp.max(A, axis=-1, keepdims=True)                                   # (Ns, 1)
    e_r = jnp.exp(A - m_r)
    inv_r = pl.reciprocal(jnp.sum(e_r, axis=-1, keepdims=True), approx=True)   # (Ns, 1)
    p_s = jnp.dot(e_r, v_q, preferred_element_type=jnp.float32) * inv_r        # (Ns, Cint)

    # attention_q = softmax(A^T, -1) == column softmax of A, computed in place (no A.T).
    # Column sums are produced directly as an (Nq, 1) column via a ones-matmul, so the
    # normalization multiplies the small (Nq, Cint) result (no (Ns,Nq) elementwise pass,
    # no lane<->sublane relayout).
    m_c = jnp.max(A, axis=0, keepdims=True)                                    # (1, Nq)
    e_c = jnp.exp(A - m_c)
    ones_col = jnp.ones((Ns, 1), jnp.float32)
    col_sum = lax.dot_general(e_c, ones_col, TN_DIMS,
                              preferred_element_type=jnp.float32)              # (Nq, 1)
    q_s = (lax.dot_general(e_c, v_s, TN_DIMS, preferred_element_type=jnp.float32)
           * pl.reciprocal(col_sum, approx=True))                              # (Nq, Cint)

    # Trans_q (1x1 conv + folded eval-mode BN), channel gate, residual -> E_q
    q_s_t = jnp.dot(q_s, tqw_ref[...], preferred_element_type=jnp.float32) + tqb_ref[...]
    eq_ref[0] = gq_ref[0] * q_s_t + qres_ref[0]

    # Trans_s, per-shot channel gate, residual -> E_s
    p_s_t = jnp.dot(p_s, tsw_ref[...], preferred_element_type=jnp.float32) + tsb_ref[...]
    g_s = gs_ref[0]                                                            # (shot, C)
    g_full = jnp.concatenate(
        [jnp.broadcast_to(g_s[j:j + 1, :], (hw_s, C)) for j in range(shot)], axis=0)
    es_ref[0] = g_full * p_s_t + sres_ref[0]


def attention_fuse(proj_q, proj_s, gate_q, gate_s, q_res, s_res,
                   trans_s_w, trans_s_b, trans_q_w, trans_q_b):
    B, Nq, _ = proj_q.shape
    _, Ns, _ = proj_s.shape
    C = trans_s_w.shape[1]

    per_batch = lambda shp: pl.BlockSpec((1,) + tuple(shp[1:]), lambda b: (b, 0, 0))
    full2d = lambda shp: pl.BlockSpec(tuple(shp), lambda b: (0, 0))

    return pl.pallas_call(
        _attn_fuse_kernel,
        out_shape=(jax.ShapeDtypeStruct((B, Nq, C), jnp.float32),
                   jax.ShapeDtypeStruct((B, Ns, C), jnp.float32)),
        grid=(B,),
        in_specs=[
            per_batch(proj_q.shape), per_batch(proj_s.shape),
            per_batch(gate_q.shape), per_batch(gate_s.shape),
            per_batch(q_res.shape), per_batch(s_res.shape),
            full2d(trans_s_w.shape), full2d(trans_s_b.shape),
            full2d(trans_q_w.shape), full2d(trans_q_b.shape),
        ],
        out_specs=(
            pl.BlockSpec((1, Nq, C), lambda b: (b, 0, 0)),
            pl.BlockSpec((1, Ns, C), lambda b: (b, 0, 0)),
        ),
        compiler_params=pltpu.CompilerParams(
            dimension_semantics=("parallel",),
            vmem_limit_bytes=_VMEM_LIMIT),
    )(proj_q, proj_s, gate_q, gate_s, q_res, s_res,
      trans_s_w, trans_s_b, trans_q_w, trans_q_b)


# ---------------------------------------------------------------------------
# Parameters (deterministic in-script init)
# ---------------------------------------------------------------------------
def init_params(key, C, channel_rate=2, reduction_ratio=16):
    Cint = max(C // channel_rate, 1)
    Cr = max(C // reduction_ratio, 1)
    ks = jax.random.split(key, 12)

    def w(k, shape, scale=0.1):
        return scale * jax.random.normal(k, shape, jnp.float32)

    params = dict(
        common_v_w=w(ks[0], (C, Cint)), common_v_b=w(ks[1], (1, Cint)),
        key_w=w(ks[2], (C, Cint)),      key_b=w(ks[3], (1, Cint)),
        query_w=w(ks[4], (C, Cint)),    query_b=w(ks[5], (1, Cint)),
        trans_s_w=w(ks[6], (Cint, C)),  trans_s_b=w(ks[7], (1, C)),
        trans_q_w=w(ks[8], (Cint, C)),  trans_q_b=w(ks[9], (1, C)),
        mlp_w1=w(ks[10], (C, Cr)),      mlp_b1=jnp.zeros((1, Cr), jnp.float32),
        mlp_w2=w(ks[11], (Cr, C)),      mlp_b2=jnp.zeros((1, C), jnp.float32),
    )

    # BatchNorm2d (eval mode, running_mean=0, running_var=1) folded into Trans_* 1x1 convs.
    # NOTE: the PyTorch __init__ sets BN gamma=beta=0, which makes the attention branch a
    # no-op at init (E_q==q, E_s==s).  We use nonzero deterministic BN params so the kernel
    # path is actually exercised; the fold below is exact eval-mode BN semantics.
    eps = 1e-5
    mean = jnp.zeros((C,), jnp.float32)
    var = jnp.ones((C,), jnp.float32)
    gamma_s = jnp.full((C,), 0.5, jnp.float32)
    beta_s = jnp.full((C,), 0.1, jnp.float32)
    gamma_q = jnp.full((C,), 0.5, jnp.float32)
    beta_q = jnp.full((C,), -0.1, jnp.float32)

    def fold(wc, bc, gamma, beta):
        scale = gamma / jnp.sqrt(var + eps)
        return wc * scale[None, :], (bc - mean[None, :]) * scale[None, :] + beta[None, :]

    params["trans_s_w"], params["trans_s_b"] = fold(
        params["trans_s_w"], params["trans_s_b"], gamma_s, beta_s)
    params["trans_q_w"], params["trans_q_b"] = fold(
        params["trans_q_w"], params["trans_q_b"], gamma_q, beta_q)
    return params


# ---------------------------------------------------------------------------
# FEM forward (glue in plain JAX, compute in two fused Pallas kernels per side)
# ---------------------------------------------------------------------------
def fem_forward(q, s, params):
    B, C, Hq, Wq = q.shape
    _, shot, _, Hs, Ws = s.shape
    Cint = params["common_v_w"].shape[1]
    Nq = Hq * Wq
    HWs = Hs * Ws
    Ns = shot * HWs

    # NCHW -> channels-last (cheap layout glue under jit)
    q_cl = jnp.transpose(q, (0, 2, 3, 1)).reshape(B, Nq, C)
    s_cl = jnp.transpose(s, (0, 1, 3, 4, 2)).reshape(B * shot, HWs, C)

    # Fused projection weights: one matmul per input yields [common_v | query/key]
    wq_cat = jnp.concatenate([params["common_v_w"], params["query_w"]], axis=1)
    bq_cat = jnp.concatenate([params["common_v_b"], params["query_b"]], axis=1)
    ws_cat = jnp.concatenate([params["common_v_w"], params["key_w"]], axis=1)
    bs_cat = jnp.concatenate([params["common_v_b"], params["key_b"]], axis=1)
    mlp = (params["mlp_w1"], params["mlp_b1"], params["mlp_w2"], params["mlp_b2"])

    # Projections + ChannelGate (avg pool + MLP + sigmoid) in a single pass per input
    proj_q, gate_q = project_pool_gate(q_cl, wq_cat, bq_cat, *mlp)   # (B,Nq,2Ci), (B,1,C)
    proj_s, gate_s = project_pool_gate(s_cl, ws_cat, bs_cat, *mlp)   # (B*shot,HWs,2Ci), (B*shot,1,C)

    # Regroup the support side per batch (free reshapes; ordering matches PyTorch (shot,Hs,Ws))
    proj_s_b = proj_s.reshape(B, Ns, 2 * Cint)
    gate_s_b = gate_s.reshape(B, shot, C)
    s_res_b = s_cl.reshape(B, Ns, C)

    # Cross attention + Trans_s/Trans_q (folded BN) + gate*trans + residual, fused per batch
    E_q_cl, E_s_cl = attention_fuse(
        proj_q, proj_s_b, gate_q, gate_s_b, q_cl, s_res_b,
        params["trans_s_w"], params["trans_s_b"],
        params["trans_q_w"], params["trans_q_b"])

    # channels-last -> NCHW (matching PyTorch output shapes)
    E_q = jnp.transpose(E_q_cl.reshape(B, Hq, Wq, C), (0, 3, 1, 2))
    E_s = jnp.transpose(E_s_cl.reshape(B * shot, Hs, Ws, C), (0, 3, 1, 2))
    return E_q, E_s

    # TODO(synk): self.dropout is defined in the PyTorch __init__ but never used in its
    # forward, so it is intentionally not implemented here.


if __name__ == "__main__":
    key = jax.random.PRNGKey(0)
    kq, ks_, kp = jax.random.split(key, 3)

    B, shot, C, H, W = 2, 2, 32, 8, 8          # inplanes=32, channel_rate=2, reduction_ratio=16
    q = jax.random.normal(kq, (B, C, H, W), jnp.float32)
    s = jax.random.normal(ks_, (B, shot, C, H, W), jnp.float32)
    params = init_params(kp, C)

    fwd = jax.jit(fem_forward)
    E_q, E_s = fwd(q, s, params)
    jax.block_until_ready((E_q, E_s))

    assert E_q.shape == (B, C, H, W)
    assert E_s.shape == (B * shot, C, H, W)
    assert E_q.dtype == jnp.float32 and E_s.dtype == jnp.float32
    assert bool(jnp.all(jnp.isfinite(E_q))) and bool(jnp.all(jnp.isfinite(E_s)))
    print("KERNEL_OK")
</pallas_src>

<mosaic_0001>
module attributes {stable_mosaic.version = 11 : i64} {
  func.func @_attn_fuse_kernel(%arg0: i32, %arg1: memref<1x64x32xf32, #tpu.memory_space<vmem>>, %arg2: memref<1x128x32xf32, #tpu.memory_space<vmem>>, %arg3: memref<1x1x32xf32, #tpu.memory_space<vmem>>, %arg4: memref<1x2x32xf32, #tpu.memory_space<vmem>>, %arg5: memref<1x64x32xf32, #tpu.memory_space<vmem>>, %arg6: memref<1x128x32xf32, #tpu.memory_space<vmem>>, %arg7: memref<16x32xf32, #tpu.memory_space<vmem>>, %arg8: memref<1x32xf32, #tpu.memory_space<vmem>>, %arg9: memref<16x32xf32, #tpu.memory_space<vmem>>, %arg10: memref<1x32xf32, #tpu.memory_space<vmem>>, %arg11: memref<1x64x32xf32, #tpu.memory_space<vmem>>, %arg12: memref<1x128x32xf32, #tpu.memory_space<vmem>>) attributes {dimension_semantics = [#tpu.dimension_semantics<parallel>], iteration_bounds = array<i64: 2>, scalar_prefetch = 0 : i64, scratch_operands = 0 : i64, tpu.core_type = #tpu.core_type<tc>, window_params = [{transform_indices = @transform_0, window_bounds = array<i64: 1, 64, 32>}, {transform_indices = @transform_1, window_bounds = array<i64: 1, 128, 32>}, {transform_indices = @transform_2, window_bounds = array<i64: 1, 1, 32>}, {transform_indices = @transform_3, window_bounds = array<i64: 1, 2, 32>}, {transform_indices = @transform_4, window_bounds = array<i64: 1, 64, 32>}, {transform_indices = @transform_5, window_bounds = array<i64: 1, 128, 32>}, {pipeline_mode = #tpu.pipeline_mode<synchronous>, transform_indices = @transform_6, window_bounds = array<i64: 16, 32>}, {pipeline_mode = #tpu.pipeline_mode<synchronous>, transform_indices = @transform_7, window_bounds = array<i64: 1, 32>}, {pipeline_mode = #tpu.pipeline_mode<synchronous>, transform_indices = @transform_8, window_bounds = array<i64: 16, 32>}, {pipeline_mode = #tpu.pipeline_mode<synchronous>, transform_indices = @transform_9, window_bounds = array<i64: 1, 32>}, {transform_indices = @transform_10, window_bounds = array<i64: 1, 64, 32>}, {transform_indices = @transform_11, window_bounds = array<i64: 1, 128, 32>}]} {
    %c0 = arith.constant 0 : index
    %c0_0 = arith.constant 0 : index
    %c0_1 = arith.constant 0 : index
    %0 = vector.load %arg1[%c0, %c0_0, %c0_1] : memref<1x64x32xf32, #tpu.memory_space<vmem>>, vector<1x64x32xf32>
    %1 = vector.shape_cast %0 : vector<1x64x32xf32> to vector<64x32xf32>
    %c0_2 = arith.constant 0 : index
    %c0_3 = arith.constant 0 : index
    %c0_4 = arith.constant 0 : index
    %2 = vector.load %arg2[%c0_2, %c0_3, %c0_4] : memref<1x128x32xf32, #tpu.memory_space<vmem>>, vector<1x128x32xf32>
    %3 = vector.shape_cast %2 : vector<1x128x32xf32> to vector<128x32xf32>
    %4 = vector.extract_strided_slice %1 {offsets = [0, 0], sizes = [64, 16], strides = [1, 1]} : vector<64x32xf32> to vector<64x16xf32>
    %5 = vector.extract_strided_slice %1 {offsets = [0, 16], sizes = [64, 16], strides = [1, 1]} : vector<64x32xf32> to vector<64x16xf32>
    %6 = vector.extract_strided_slice %3 {offsets = [0, 0], sizes = [128, 16], strides = [1, 1]} : vector<128x32xf32> to vector<128x16xf32>
    %7 = vector.extract_strided_slice %3 {offsets = [0, 16], sizes = [128, 16], strides = [1, 1]} : vector<128x32xf32> to vector<128x16xf32>
    %cst = arith.constant dense<0.000000e+00> : vector<128x64xf32>
    %8 = tpu.matmul %7, %5, %cst {dimension_numbers = #tpu.dot_dimension_numbers<[1], [1], [0], [0], [0, 0, 1, 0], [], []>} : vector<128x16xf32>, vector<64x16xf32>, vector<128x64xf32> -> vector<128x64xf32>
    %cst_5 = arith.constant dense<0xFF800000> : vector<128xf32>
    %9 = vector.multi_reduction <maximumf>, %8, %cst_5 [1] : vector<128x64xf32> to vector<128xf32>
    %10 = vector.shape_cast %9 : vector<128xf32> to vector<128x1xf32>
    %11 = vector.broadcast %10 : vector<128x1xf32> to vector<128x64xf32>
    %12 = arith.subf %8, %11 : vector<128x64xf32>
    %13 = math.exp %12 : vector<128x64xf32>
    %cst_6 = arith.constant dense<0.000000e+00> : vector<128xf32>
    %14 = vector.multi_reduction <add>, %13, %cst_6 [1] : vector<128x64xf32> to vector<128xf32>
    %15 = vector.shape_cast %14 : vector<128xf32> to vector<128x1xf32>
    %16 = tpu.reciprocal %15 {approx = true} : vector<128x1xf32> -> vector<128x1xf32>
    %cst_7 = arith.constant dense<0.000000e+00> : vector<128x16xf32>
    %17 = tpu.matmul %13, %4, %cst_7 {dimension_numbers = #tpu.dot_dimension_numbers<[1], [0], [0], [1], [0, 0, 1, 1], [], []>} : vector<128x64xf32>, vector<64x16xf32>, vector<128x16xf32> -> vector<128x16xf32>
    %18 = vector.broadcast %16 : vector<128x1xf32> to vector<128x16xf32>
    %19 = arith.mulf %17, %18 : vector<128x16xf32>
    %cst_8 = arith.constant dense<0xFF800000> : vector<64xf32>
    %20 = vector.multi_reduction <maximumf>, %8, %cst_8 [0] : vector<128x64xf32> to vector<64xf32>
    %21 = vector.shape_cast %20 : vector<64xf32> to vector<1x64xf32>
    %22 = vector.broadcast %21 : vector<1x64xf32> to vector<128x64xf32>
    %23 = arith.subf %8, %22 : vector<128x64xf32>
    %24 = math.exp %23 : vector<128x64xf32>
    %cst_9 = arith.constant 1.000000e+00 : f32
    %25 = vector.broadcast %cst_9 : f32 to vector<128x1xf32>
    %cst_10 = arith.constant dense<0.000000e+00> : vector<64x1xf32>
    %26 = tpu.matmul %24, %25, %cst_10 {dimension_numbers = #tpu.dot_dimension_numbers<[0], [0], [1], [1], [0, 1, 1, 1], [], []>} : vector<128x64xf32>, vector<128x1xf32>, vector<64x1xf32> -> vector<64x1xf32>
    %cst_11 = arith.constant dense<0.000000e+00> : vector<64x16xf32>
    %27 = tpu.matmul %24, %6, %cst_11 {dimension_numbers = #tpu.dot_dimension_numbers<[0], [0], [1], [1], [0, 1, 1, 1], [], []>} : vector<128x64xf32>, vector<128x16xf32>, vector<64x16xf32> -> vector<64x16xf32>
    %28 = tpu.reciprocal %26 {approx = true} : vector<64x1xf32> -> vector<64x1xf32>
    %29 = vector.broadcast %28 : vector<64x1xf32> to vector<64x16xf32>
    %30 = arith.mulf %27, %29 : vector<64x16xf32>
    %c0_12 = arith.constant 0 : index
    %c0_13 = arith.constant 0 : index
    %31 = vector.load %arg9[%c0_12, %c0_13] : memref<16x32xf32, #tpu.memory_space<vmem>>, vector<16x32xf32>
    %cst_14 = arith.constant dense<0.000000e+00> : vector<64x32xf32>
    %32 = tpu.matmul %30, %31, %cst_14 {dimension_numbers = #tpu.dot_dimension_numbers<[1], [0], [0], [1], [0, 0, 1, 1], [], []>} : vector<64x16xf32>, vector<16x32xf32>, vector<64x32xf32> -> vector<64x32xf32>
    %c0_15 = arith.constant 0 : index
    %c0_16 = arith.constant 0 : index
    %33 = vector.load %arg10[%c0_15, %c0_16] : memref<1x32xf32, #tpu.memory_space<vmem>>, vector<1x32xf32>
    %34 = vector.broadcast %33 : vector<1x32xf32> to vector<64x32xf32>
    %35 = arith.addf %32, %34 : vector<64x32xf32>
    %c0_17 = arith.constant 0 : index
    %c0_18 = arith.constant 0 : index
    %c0_19 = arith.constant 0 : index
    %36 = vector.load %arg3[%c0_17, %c0_18, %c0_19] : memref<1x1x32xf32, #tpu.memory_space<vmem>>, vector<1x1x32xf32>
    %37 = vector.shape_cast %36 : vector<1x1x32xf32> to vector<1x32xf32>
    %38 = vector.broadcast %37 : vector<1x32xf32> to vector<64x32xf32>
    %39 = arith.mulf %38, %35 : vector<64x32xf32>
    %c0_20 = arith.constant 0 : index
    %c0_21 = arith.constant 0 : index
    %c0_22 = arith.constant 0 : index
    %40 = vector.load %arg5[%c0_20, %c0_21, %c0_22] : memref<1x64x32xf32, #tpu.memory_space<vmem>>, vector<1x64x32xf32>
    %41 = vector.shape_cast %40 : vector<1x64x32xf32> to vector<64x32xf32>
    %42 = arith.addf %39, %41 : vector<64x32xf32>
    %c0_23 = arith.constant 0 : index
    %c0_24 = arith.constant 0 : index
    %c0_25 = arith.constant 0 : index
    %43 = vector.load %arg11[%c0_23, %c0_24, %c0_25] : memref<1x64x32xf32, #tpu.memory_space<vmem>>, vector<1x64x32xf32>
    %44 = vector.shape_cast %43 : vector<1x64x32xf32> to vector<64x32xf32>
    %45 = vector.shape_cast %42 : vector<64x32xf32> to vector<1x64x32xf32>
    tpu.vector_store %arg11[%c0_23, %c0_24, %c0_25], %45 {strides = array<i32>} : memref<1x64x32xf32, #tpu.memory_space<vmem>>, vector<1x64x32xf32>,
    %c0_26 = arith.constant 0 : index
    %c0_27 = arith.constant 0 : index
    %46 = vector.load %arg7[%c0_26, %c0_27] : memref<16x32xf32, #tpu.memory_space<vmem>>, vector<16x32xf32>
    %cst_28 = arith.constant dense<0.000000e+00> : vector<128x32xf32>
    %47 = tpu.matmul %19, %46, %cst_28 {dimension_numbers = #tpu.dot_dimension_numbers<[1], [0], [0], [1], [0, 0, 1, 1], [], []>} : vector<128x16xf32>, vector<16x32xf32>, vector<128x32xf32> -> vector<128x32xf32>
    %c0_29 = arith.constant 0 : index
    %c0_30 = arith.constant 0 : index
    %48 = vector.load %arg8[%c0_29, %c0_30] : memref<1x32xf32, #tpu.memory_space<vmem>>, vector<1x32xf32>
    %49 = vector.broadcast %48 : vector<1x32xf32> to vector<128x32xf32>
    %50 = arith.addf %47, %49 : vector<128x32xf32>
    %c0_31 = arith.constant 0 : index
    %c0_32 = arith.constant 0 : index
    %c0_33 = arith.constant 0 : index
    %51 = vector.load %arg4[%c0_31, %c0_32, %c0_33] : memref<1x2x32xf32, #tpu.memory_space<vmem>>, vector<1x2x32xf32>
    %52 = vector.shape_cast %51 : vector<1x2x32xf32> to vector<2x32xf32>
    %53 = vector.extract_strided_slice %52 {offsets = [0, 0], sizes = [1, 32], strides = [1, 1]} : vector<2x32xf32> to vector<1x32xf32>
    %54 = vector.shape_cast %53 : vector<1x32xf32> to vector<1x32xf32>
    %55 = vector.broadcast %54 : vector<1x32xf32> to vector<64x32xf32>
    %56 = vector.extract_strided_slice %52 {offsets = [1, 0], sizes = [1, 32], strides = [1, 1]} : vector<2x32xf32> to vector<1x32xf32>
    %57 = vector.shape_cast %56 : vector<1x32xf32> to vector<1x32xf32>
    %58 = vector.broadcast %57 : vector<1x32xf32> to vector<64x32xf32>
    %59 = tpu.concatenate %55, %58 in 0 : vector<64x32xf32>, vector<64x32xf32> -> vector<128x32xf32>
    %60 = arith.mulf %59, %50 : vector<128x32xf32>
    %c0_34 = arith.constant 0 : index
    %c0_35 = arith.constant 0 : index
    %c0_36 = arith.constant 0 : index
    %61 = vector.load %arg6[%c0_34, %c0_35, %c0_36] : memref<1x128x32xf32, #tpu.memory_space<vmem>>, vector<1x128x32xf32>
    %62 = vector.shape_cast %61 : vector<1x128x32xf32> to vector<128x32xf32>
    %63 = arith.addf %60, %62 : vector<128x32xf32>
    %c0_37 = arith.constant 0 : index
    %c0_38 = arith.constant 0 : index
    %c0_39 = arith.constant 0 : index
    %64 = vector.load %arg12[%c0_37, %c0_38, %c0_39] : memref<1x128x32xf32, #tpu.memory_space<vmem>>, vector<1x128x32xf32>
    %65 = vector.shape_cast %64 : vector<1x128x32xf32> to vector<128x32xf32>
    %66 = vector.shape_cast %63 : vector<128x32xf32> to vector<1x128x32xf32>
    tpu.vector_store %arg12[%c0_37, %c0_38, %c0_39], %66 {strides = array<i32>} : memref<1x128x32xf32, #tpu.memory_space<vmem>>, vector<1x128x32xf32>,
    return
  }
  func.func @transform_0(%arg0: i32) -> (i32, i32, i32) {
    %c0_i32 = arith.constant 0 : i32
    %c0_i32_0 = arith.constant 0 : i32
    %c0_i32_1 = arith.constant 0 : i32
    return %arg0, %c0_i32, %c0_i32_0 : i32, i32, i32
  }
  func.func @transform_1(%arg0: i32) -> (i32, i32, i32) {
    %c0_i32 = arith.constant 0 : i32
    %c0_i32_0 = arith.constant 0 : i32
    %c0_i32_1 = arith.constant 0 : i32
    return %arg0, %c0_i32, %c0_i32_0 : i32, i32, i32
  }
  func.func @transform_2(%arg0: i32) -> (i32, i32, i32) {
    %c0_i32 = arith.constant 0 : i32
    %c0_i32_0 = arith.constant 0 : i32
    %c0_i32_1 = arith.constant 0 : i32
    return %arg0, %c0_i32, %c0_i32_0 : i32, i32, i32
  }
  func.func @transform_3(%arg0: i32) -> (i32, i32, i32) {
    %c0_i32 = arith.constant 0 : i32
    %c0_i32_0 = arith.constant 0 : i32
    %c0_i32_1 = arith.constant 0 : i32
    return %arg0, %c0_i32, %c0_i32_0 : i32, i32, i32
  }
  func.func @transform_4(%arg0: i32) -> (i32, i32, i32) {
    %c0_i32 = arith.constant 0 : i32
    %c0_i32_0 = arith.constant 0 : i32
    %c0_i32_1 = arith.constant 0 : i32
    return %arg0, %c0_i32, %c0_i32_0 : i32, i32, i32
  }
  func.func @transform_5(%arg0: i32) -> (i32, i32, i32) {
    %c0_i32 = arith.constant 0 : i32
    %c0_i32_0 = arith.constant 0 : i32
    %c0_i32_1 = arith.constant 0 : i32
    return %arg0, %c0_i32, %c0_i32_0 : i32, i32, i32
  }
  func.func @transform_6(%arg0: i32) -> (i32, i32) {
    %c0_i32 = arith.constant 0 : i32
    %c0_i32_0 = arith.constant 0 : i32
    %c0_i32_1 = arith.constant 0 : i32
    return %c0_i32, %c0_i32_0 : i32, i32
  }
  func.func @transform_7(%arg0: i32) -> (i32, i32) {
    %c0_i32 = arith.constant 0 : i32
    %c0_i32_0 = arith.constant 0 : i32
    %c0_i32_1 = arith.constant 0 : i32
    return %c0_i32, %c0_i32_0 : i32, i32
  }
  func.func @transform_8(%arg0: i32) -> (i32, i32) {
    %c0_i32 = arith.constant 0 : i32
    %c0_i32_0 = arith.constant 0 : i32
    %c0_i32_1 = arith.constant 0 : i32
    return %c0_i32, %c0_i32_0 : i32, i32
  }
  func.func @transform_9(%arg0: i32) -> (i32, i32) {
    %c0_i32 = arith.constant 0 : i32
    %c0_i32_0 = arith.constant 0 : i32
    %c0_i32_1 = arith.constant 0 : i32
    return %c0_i32, %c0_i32_0 : i32, i32
  }
  func.func @transform_10(%arg0: i32) -> (i32, i32, i32) {
    %c0_i32 = arith.constant 0 : i32
    %c0_i32_0 = arith.constant 0 : i32
    %c0_i32_1 = arith.constant 0 : i32
    return %arg0, %c0_i32, %c0_i32_0 : i32, i32, i32
  }
  func.func @transform_11(%arg0: i32) -> (i32, i32, i32) {
    %c0_i32 = arith.constant 0 : i32
    %c0_i32_0 = arith.constant 0 : i32
    %c0_i32_1 = arith.constant 0 : i32
    return %arg0, %c0_i32, %c0_i32_0 : i32, i32, i32
  }
}

module attributes {stable_mosaic.version = 11 : i64} {
  func.func @kernel(%arg0: i32, %arg1: i32, %arg2: memref<1x64x32xf32, #tpu.memory_space<vmem>>, %arg3: memref<32x32xf32, #tpu.memory_space<vmem>>, %arg4: memref<1x32xf32, #tpu.memory_space<vmem>>, %arg5: memref<32x2xf32, #tpu.memory_space<vmem>>, %arg6: memref<1x2xf32, #tpu.memory_space<vmem>>, %arg7: memref<2x32xf32, #tpu.memory_space<vmem>>, %arg8: memref<1x32xf32, #tpu.memory_space<vmem>>, %arg9: memref<1x64x32xf32, #tpu.memory_space<vmem>>, %arg10: memref<1x1x32xf32, #tpu.memory_space<vmem>>, %arg11: memref<1x32xf32, #tpu.memory_space<vmem>>) attributes {dimension_semantics = [#tpu.dimension_semantics<parallel>, #tpu.dimension_semantics<arbitrary>], iteration_bounds = array<i64: 4, 1>, scalar_prefetch = 0 : i64, scratch_operands = 1 : i64, tpu.core_type = #tpu.core_type<tc>, window_params = [{transform_indices = @transform_0, window_bounds = array<i64: 1, 64, 32>}, {pipeline_mode = #tpu.pipeline_mode<synchronous>, transform_indices = @transform_1, window_bounds = array<i64: 32, 32>}, {pipeline_mode = #tpu.pipeline_mode<synchronous>, transform_indices = @transform_2, window_bounds = array<i64: 1, 32>}, {pipeline_mode = #tpu.pipeline_mode<synchronous>, transform_indices = @transform_3, window_bounds = array<i64: 32, 2>}, {pipeline_mode = #tpu.pipeline_mode<synchronous>, transform_indices = @transform_4, window_bounds = array<i64: 1, 2>}, {pipeline_mode = #tpu.pipeline_mode<synchronous>, transform_indices = @transform_5, window_bounds = array<i64: 2, 32>}, {pipeline_mode = #tpu.pipeline_mode<synchronous>, transform_indices = @transform_6, window_bounds = array<i64: 1, 32>}, {transform_indices = @transform_7, window_bounds = array<i64: 1, 64, 32>}, {transform_indices = @transform_8, window_bounds = array<i64: 1, 1, 32>}]} {
    %c0 = arith.constant 0 : index
    %c0_0 = arith.constant 0 : index
    %c0_1 = arith.constant 0 : index
    %0 = vector.load %arg2[%c0, %c0_0, %c0_1] : memref<1x64x32xf32, #tpu.memory_space<vmem>>, vector<1x64x32xf32>
    %1 = vector.shape_cast %0 : vector<1x64x32xf32> to vector<64x32xf32>
    %c0_2 = arith.constant 0 : index
    %c0_3 = arith.constant 0 : index
    %2 = vector.load %arg3[%c0_2, %c0_3] : memref<32x32xf32, #tpu.memory_space<vmem>>, vector<32x32xf32>
    %cst = arith.constant dense<0.000000e+00> : vector<64x32xf32>
    %3 = tpu.matmul %1, %2, %cst {dimension_numbers = #tpu.dot_dimension_numbers<[1], [0], [0], [1], [0, 0, 1, 1], [], []>} : vector<64x32xf32>, vector<32x32xf32>, vector<64x32xf32> -> vector<64x32xf32>
    %c0_4 = arith.constant 0 : index
    %c0_5 = arith.constant 0 : index
    %4 = vector.load %arg4[%c0_4, %c0_5] : memref<1x32xf32, #tpu.memory_space<vmem>>, vector<1x32xf32>
    %5 = vector.broadcast %4 : vector<1x32xf32> to vector<64x32xf32>
    %6 = arith.addf %3, %5 : vector<64x32xf32>
    %c0_6 = arith.constant 0 : index
    %c0_7 = arith.constant 0 : index
    %c0_8 = arith.constant 0 : index
    %7 = vector.load %arg9[%c0_6, %c0_7, %c0_8] : memref<1x64x32xf32, #tpu.memory_space<vmem>>, vector<1x64x32xf32>
    %8 = vector.shape_cast %7 : vector<1x64x32xf32> to vector<64x32xf32>
    %9 = vector.shape_cast %6 : vector<64x32xf32> to vector<1x64x32xf32>
    tpu.vector_store %arg9[%c0_6, %c0_7, %c0_8], %9 {strides = array<i32>} : memref<1x64x32xf32, #tpu.memory_space<vmem>>, vector<1x64x32xf32>,
    %c0_i32 = arith.constant 0 : i32
    %10 = arith.cmpi eq, %arg1, %c0_i32 : i32
    %11 = arith.extui %10 : i1 to i32
    %c0_i32_9 = arith.constant 0 : i32
    %12 = arith.cmpi ne, %11, %c0_i32_9 : i32
    scf.if %12 {
      %cst_17 = arith.constant 0.000000e+00 : f32
      %21 = vector.broadcast %cst_17 : f32 to vector<1x32xf32>
      %c0_18 = arith.constant 0 : index
      %c0_19 = arith.constant 0 : index
      %22 = vector.load %arg11[%c0_18, %c0_19] : memref<1x32xf32, #tpu.memory_space<vmem>>, vector<1x32xf32>
      tpu.vector_store %arg11[%c0_18, %c0_19], %21 {strides = array<i32>} : memref<1x32xf32, #tpu.memory_space<vmem>>, vector<1x32xf32>,
    } else {
    }
    %c0_10 = arith.constant 0 : index
    %c0_11 = arith.constant 0 : index
    %13 = vector.load %arg11[%c0_10, %c0_11] : memref<1x32xf32, #tpu.memory_space<vmem>>, vector<1x32xf32>
    %cst_12 = arith.constant dense<0.000000e+00> : vector<32xf32>
    %14 = vector.multi_reduction <add>, %1, %cst_12 [0] : vector<64x32xf32> to vector<32xf32>
    %15 = vector.shape_cast %14 : vector<32xf32> to vector<1x32xf32>
    %16 = arith.addf %13, %15 : vector<1x32xf32>
    %c0_13 = arith.constant 0 : index
    %c0_14 = arith.constant 0 : index
    %17 = vector.load %arg11[%c0_13, %c0_14] : memref<1x32xf32, #tpu.memory_space<vmem>>, vector<1x32xf32>
    tpu.vector_store %arg11[%c0_13, %c0_14], %16 {strides = array<i32>} : memref<1x32xf32, #tpu.memory_space<vmem>>, vector<1x32xf32>,
    %c0_i32_15 = arith.constant 0 : i32
    %18 = arith.cmpi eq, %arg1, %c0_i32_15 : i32
    %19 = arith.extui %18 : i1 to i32
    %c0_i32_16 = arith.constant 0 : i32
    %20 = arith.cmpi ne, %19, %c0_i32_16 : i32
    scf.if %20 {
      %c0_17 = arith.constant 0 : index
      %c0_18 = arith.constant 0 : index
      %21 = vector.load %arg11[%c0_17, %c0_18] : memref<1x32xf32, #tpu.memory_space<vmem>>, vector<1x32xf32>
      %cst_19 = arith.constant 1.562500e-02 : f32
      %22 = vector.broadcast %cst_19 : f32 to vector<1x32xf32>
      %23 = arith.mulf %21, %22 : vector<1x32xf32>
      %c0_20 = arith.constant 0 : index
      %c0_21 = arith.constant 0 : index
      %24 = vector.load %arg5[%c0_20, %c0_21] : memref<32x2xf32, #tpu.memory_space<vmem>>, vector<32x2xf32>
      %cst_22 = arith.constant dense<0.000000e+00> : vector<1x2xf32>
      %25 = tpu.matmul %23, %24, %cst_22 {dimension_numbers = #tpu.dot_dimension_numbers<[1], [0], [0], [1], [0, 0, 1, 1], [], []>} : vector<1x32xf32>, vector<32x2xf32>, vector<1x2xf32> -> vector<1x2xf32>
      %c0_23 = arith.constant 0 : index
      %c0_24 = arith.constant 0 : index
      %26 = vector.load %arg6[%c0_23, %c0_24] : memref<1x2xf32, #tpu.memory_space<vmem>>, vector<1x2xf32>
      %27 = arith.addf %25, %26 : vector<1x2xf32>
      %cst_25 = arith.constant 0.000000e+00 : f32
      %28 = vector.broadcast %cst_25 : f32 to vector<1x2xf32>
      %29 = arith.maximumf %27, %28 : vector<1x2xf32>
      %c0_26 = arith.constant 0 : index
      %c0_27 = arith.constant 0 : index
      %30 = vector.load %arg7[%c0_26, %c0_27] : memref<2x32xf32, #tpu.memory_space<vmem>>, vector<2x32xf32>
      %cst_28 = arith.constant dense<0.000000e+00> : vector<1x32xf32>
      %31 = tpu.matmul %29, %30, %cst_28 {dimension_numbers = #tpu.dot_dimension_numbers<[1], [0], [0], [1], [0, 0, 1, 1], [], []>} : vector<1x2xf32>, vector<2x32xf32>, vector<1x32xf32> -> vector<1x32xf32>
      %c0_29 = arith.constant 0 : index
      %c0_30 = arith.constant 0 : index
      %32 = vector.load %arg8[%c0_29, %c0_30] : memref<1x32xf32, #tpu.memory_space<vmem>>, vector<1x32xf32>
      %33 = arith.addf %31, %32 : vector<1x32xf32>
      %34 = arith.negf %33 : vector<1x32xf32>
      %35 = math.exp %34 : vector<1x32xf32>
      %cst_31 = arith.constant 1.000000e+00 : f32
      %36 = vector.broadcast %cst_31 : f32 to vector<1x32xf32>
      %37 = arith.addf %36, %35 : vector<1x32xf32>
      %38 = arith.divf %36, %37 : vector<1x32xf32>
      %c0_32 = arith.constant 0 : index
      %c0_33 = arith.constant 0 : index
      %c0_34 = arith.constant 0 : index
      %39 = vector.load %arg10[%c0_32, %c0_33, %c0_34] : memref<1x1x32xf32, #tpu.memory_space<vmem>>, vector<1x1x32xf32>
      %40 = vector.shape_cast %39 : vector<1x1x32xf32> to vector<1x32xf32>
      %41 = vector.shape_cast %38 : vector<1x32xf32> to vector<1x1x32xf32>
      tpu.vector_store %arg10[%c0_32, %c0_33, %c0_34], %41 {strides = array<i32>} : memref<1x1x32xf32, #tpu.memory_space<vmem>>, vector<1x1x32xf32>,
    } else {
    }
    return
  }
  func.func @transform_0(%arg0: i32, %arg1: i32) -> (i32, i32, i32) {
    %c0_i32 = arith.constant 0 : i32
    %c0_i32_0 = arith.constant 0 : i32
    return %arg0, %arg1, %c0_i32 : i32, i32, i32
  }
  func.func @transform_1(%arg0: i32, %arg1: i32) -> (i32, i32) {
    %c0_i32 = arith.constant 0 : i32
    %c0_i32_0 = arith.constant 0 : i32
    %c0_i32_1 = arith.constant 0 : i32
    return %c0_i32, %c0_i32_0 : i32, i32
  }
  func.func @transform_2(%arg0: i32, %arg1: i32) -> (i32, i32) {
    %c0_i32 = arith.constant 0 : i32
    %c0_i32_0 = arith.constant 0 : i32
    %c0_i32_1 = arith.constant 0 : i32
    return %c0_i32, %c0_i32_0 : i32, i32
  }
  func.func @transform_3(%arg0: i32, %arg1: i32) -> (i32, i32) {
    %c0_i32 = arith.constant 0 : i32
    %c0_i32_0 = arith.constant 0 : i32
    %c0_i32_1 = arith.constant 0 : i32
    return %c0_i32, %c0_i32_0 : i32, i32
  }
  func.func @transform_4(%arg0: i32, %arg1: i32) -> (i32, i32) {
    %c0_i32 = arith.constant 0 : i32
    %c0_i32_0 = arith.constant 0 : i32
    %c0_i32_1 = arith.constant 0 : i32
    return %c0_i32, %c0_i32_0 : i32, i32
  }
  func.func @transform_5(%arg0: i32, %arg1: i32) -> (i32, i32) {
    %c0_i32 = arith.constant 0 : i32
    %c0_i32_0 = arith.constant 0 : i32
    %c0_i32_1 = arith.constant 0 : i32
    return %c0_i32, %c0_i32_0 : i32, i32
  }
  func.func @transform_6(%arg0: i32, %arg1: i32) -> (i32, i32) {
    %c0_i32 = arith.constant 0 : i32
    %c0_i32_0 = arith.constant 0 : i32
    %c0_i32_1 = arith.constant 0 : i32
    return %c0_i32, %c0_i32_0 : i32, i32
  }
  func.func @transform_7(%arg0: i32, %arg1: i32) -> (i32, i32, i32) {
    %c0_i32 = arith.constant 0 : i32
    %c0_i32_0 = arith.constant 0 : i32
    return %arg0, %arg1, %c0_i32 : i32, i32, i32
  }
  func.func @transform_8(%arg0: i32, %arg1: i32) -> (i32, i32, i32) {
    %c0_i32 = arith.constant 0 : i32
    %c0_i32_0 = arith.constant 0 : i32
    %c0_i32_1 = arith.constant 0 : i32
    return %arg0, %c0_i32, %c0_i32_0 : i32, i32, i32
  }
}

module attributes {stable_mosaic.version = 11 : i64} {
  func.func @kernel(%arg0: i32, %arg1: i32, %arg2: memref<1x64x32xf32, #tpu.memory_space<vmem>>, %arg3: memref<32x32xf32, #tpu.memory_space<vmem>>, %arg4: memref<1x32xf32, #tpu.memory_space<vmem>>, %arg5: memref<32x2xf32, #tpu.memory_space<vmem>>, %arg6: memref<1x2xf32, #tpu.memory_space<vmem>>, %arg7: memref<2x32xf32, #tpu.memory_space<vmem>>, %arg8: memref<1x32xf32, #tpu.memory_space<vmem>>, %arg9: memref<1x64x32xf32, #tpu.memory_space<vmem>>, %arg10: memref<1x1x32xf32, #tpu.memory_space<vmem>>, %arg11: memref<1x32xf32, #tpu.memory_space<vmem>>) attributes {dimension_semantics = [#tpu.dimension_semantics<parallel>, #tpu.dimension_semantics<arbitrary>], iteration_bounds = array<i64: 2, 1>, scalar_prefetch = 0 : i64, scratch_operands = 1 : i64, tpu.core_type = #tpu.core_type<tc>, window_params = [{transform_indices = @transform_0, window_bounds = array<i64: 1, 64, 32>}, {pipeline_mode = #tpu.pipeline_mode<synchronous>, transform_indices = @transform_1, window_bounds = array<i64: 32, 32>}, {pipeline_mode = #tpu.pipeline_mode<synchronous>, transform_indices = @transform_2, window_bounds = array<i64: 1, 32>}, {pipeline_mode = #tpu.pipeline_mode<synchronous>, transform_indices = @transform_3, window_bounds = array<i64: 32, 2>}, {pipeline_mode = #tpu.pipeline_mode<synchronous>, transform_indices = @transform_4, window_bounds = array<i64: 1, 2>}, {pipeline_mode = #tpu.pipeline_mode<synchronous>, transform_indices = @transform_5, window_bounds = array<i64: 2, 32>}, {pipeline_mode = #tpu.pipeline_mode<synchronous>, transform_indices = @transform_6, window_bounds = array<i64: 1, 32>}, {transform_indices = @transform_7, window_bounds = array<i64: 1, 64, 32>}, {transform_indices = @transform_8, window_bounds = array<i64: 1, 1, 32>}]} {
    %c0 = arith.constant 0 : index
    %c0_0 = arith.constant 0 : index
    %c0_1 = arith.constant 0 : index
    %0 = vector.load %arg2[%c0, %c0_0, %c0_1] : memref<1x64x32xf32, #tpu.memory_space<vmem>>, vector<1x64x32xf32>
    %1 = vector.shape_cast %0 : vector<1x64x32xf32> to vector<64x32xf32>
    %c0_2 = arith.constant 0 : index
    %c0_3 = arith.constant 0 : index
    %2 = vector.load %arg3[%c0_2, %c0_3] : memref<32x32xf32, #tpu.memory_space<vmem>>, vector<32x32xf32>
    %cst = arith.constant dense<0.000000e+00> : vector<64x32xf32>
    %3 = tpu.matmul %1, %2, %cst {dimension_numbers = #tpu.dot_dimension_numbers<[1], [0], [0], [1], [0, 0, 1, 1], [], []>} : vector<64x32xf32>, vector<32x32xf32>, vector<64x32xf32> -> vector<64x32xf32>
    %c0_4 = arith.constant 0 : index
    %c0_5 = arith.constant 0 : index
    %4 = vector.load %arg4[%c0_4, %c0_5] : memref<1x32xf32, #tpu.memory_space<vmem>>, vector<1x32xf32>
    %5 = vector.broadcast %4 : vector<1x32xf32> to vector<64x32xf32>
    %6 = arith.addf %3, %5 : vector<64x32xf32>
    %c0_6 = arith.constant 0 : index
    %c0_7 = arith.constant 0 : index
    %c0_8 = arith.constant 0 : index
    %7 = vector.load %arg9[%c0_6, %c0_7, %c0_8] : memref<1x64x32xf32, #tpu.memory_space<vmem>>, vector<1x64x32xf32>
    %8 = vector.shape_cast %7 : vector<1x64x32xf32> to vector<64x32xf32>
    %9 = vector.shape_cast %6 : vector<64x32xf32> to vector<1x64x32xf32>
    tpu.vector_store %arg9[%c0_6, %c0_7, %c0_8], %9 {strides = array<i32>} : memref<1x64x32xf32, #tpu.memory_space<vmem>>, vector<1x64x32xf32>,
    %c0_i32 = arith.constant 0 : i32
    %10 = arith.cmpi eq, %arg1, %c0_i32 : i32
    %11 = arith.extui %10 : i1 to i32
    %c0_i32_9 = arith.constant 0 : i32
    %12 = arith.cmpi ne, %11, %c0_i32_9 : i32
    scf.if %12 {
      %cst_17 = arith.constant 0.000000e+00 : f32
      %21 = vector.broadcast %cst_17 : f32 to vector<1x32xf32>
      %c0_18 = arith.constant 0 : index
      %c0_19 = arith.constant 0 : index
      %22 = vector.load %arg11[%c0_18, %c0_19] : memref<1x32xf32, #tpu.memory_space<vmem>>, vector<1x32xf32>
      tpu.vector_store %arg11[%c0_18, %c0_19], %21 {strides = array<i32>} : memref<1x32xf32, #tpu.memory_space<vmem>>, vector<1x32xf32>,
    } else {
    }
    %c0_10 = arith.constant 0 : index
    %c0_11 = arith.constant 0 : index
    %13 = vector.load %arg11[%c0_10, %c0_11] : memref<1x32xf32, #tpu.memory_space<vmem>>, vector<1x32xf32>
    %cst_12 = arith.constant dense<0.000000e+00> : vector<32xf32>
    %14 = vector.multi_reduction <add>, %1, %cst_12 [0] : vector<64x32xf32> to vector<32xf32>
    %15 = vector.shape_cast %14 : vector<32xf32> to vector<1x32xf32>
    %16 = arith.addf %13, %15 : vector<1x32xf32>
    %c0_13 = arith.constant 0 : index
    %c0_14 = arith.constant 0 : index
    %17 = vector.load %arg11[%c0_13, %c0_14] : memref<1x32xf32, #tpu.memory_space<vmem>>, vector<1x32xf32>
    tpu.vector_store %arg11[%c0_13, %c0_14], %16 {strides = array<i32>} : memref<1x32xf32, #tpu.memory_space<vmem>>, vector<1x32xf32>,
    %c0_i32_15 = arith.constant 0 : i32
    %18 = arith.cmpi eq, %arg1, %c0_i32_15 : i32
    %19 = arith.extui %18 : i1 to i32
    %c0_i32_16 = arith.constant 0 : i32
    %20 = arith.cmpi ne, %19, %c0_i32_16 : i32
    scf.if %20 {
      %c0_17 = arith.constant 0 : index
      %c0_18 = arith.constant 0 : index
      %21 = vector.load %arg11[%c0_17, %c0_18] : memref<1x32xf32, #tpu.memory_space<vmem>>, vector<1x32xf32>
      %cst_19 = arith.constant 1.562500e-02 : f32
      %22 = vector.broadcast %cst_19 : f32 to vector<1x32xf32>
      %23 = arith.mulf %21, %22 : vector<1x32xf32>
      %c0_20 = arith.constant 0 : index
      %c0_21 = arith.constant 0 : index
      %24 = vector.load %arg5[%c0_20, %c0_21] : memref<32x2xf32, #tpu.memory_space<vmem>>, vector<32x2xf32>
      %cst_22 = arith.constant dense<0.000000e+00> : vector<1x2xf32>
      %25 = tpu.matmul %23, %24, %cst_22 {dimension_numbers = #tpu.dot_dimension_numbers<[1], [0], [0], [1], [0, 0, 1, 1], [], []>} : vector<1x32xf32>, vector<32x2xf32>, vector<1x2xf32> -> vector<1x2xf32>
      %c0_23 = arith.constant 0 : index
      %c0_24 = arith.constant 0 : index
      %26 = vector.load %arg6[%c0_23, %c0_24] : memref<1x2xf32, #tpu.memory_space<vmem>>, vector<1x2xf32>
      %27 = arith.addf %25, %26 : vector<1x2xf32>
      %cst_25 = arith.constant 0.000000e+00 : f32
      %28 = vector.broadcast %cst_25 : f32 to vector<1x2xf32>
      %29 = arith.maximumf %27, %28 : vector<1x2xf32>
      %c0_26 = arith.constant 0 : index
      %c0_27 = arith.constant 0 : index
      %30 = vector.load %arg7[%c0_26, %c0_27] : memref<2x32xf32, #tpu.memory_space<vmem>>, vector<2x32xf32>
      %cst_28 = arith.constant dense<0.000000e+00> : vector<1x32xf32>
      %31 = tpu.matmul %29, %30, %cst_28 {dimension_numbers = #tpu.dot_dimension_numbers<[1], [0], [0], [1], [0, 0, 1, 1], [], []>} : vector<1x2xf32>, vector<2x32xf32>, vector<1x32xf32> -> vector<1x32xf32>
      %c0_29 = arith.constant 0 : index
      %c0_30 = arith.constant 0 : index
      %32 = vector.load %arg8[%c0_29, %c0_30] : memref<1x32xf32, #tpu.memory_space<vmem>>, vector<1x32xf32>
      %33 = arith.addf %31, %32 : vector<1x32xf32>
      %34 = arith.negf %33 : vector<1x32xf32>
      %35 = math.exp %34 : vector<1x32xf32>
      %cst_31 = arith.constant 1.000000e+00 : f32
      %36 = vector.broadcast %cst_31 : f32 to vector<1x32xf32>
      %37 = arith.addf %36, %35 : vector<1x32xf32>
      %38 = arith.divf %36, %37 : vector<1x32xf32>
      %c0_32 = arith.constant 0 : index
      %c0_33 = arith.constant 0 : index
      %c0_34 = arith.constant 0 : index
      %39 = vector.load %arg10[%c0_32, %c0_33, %c0_34] : memref<1x1x32xf32, #tpu.memory_space<vmem>>, vector<1x1x32xf32>
      %40 = vector.shape_cast %39 : vector<1x1x32xf32> to vector<1x32xf32>
      %41 = vector.shape_cast %38 : vector<1x32xf32> to vector<1x1x32xf32>
      tpu.vector_store %arg10[%c0_32, %c0_33, %c0_34], %41 {strides = array<i32>} : memref<1x1x32xf32, #tpu.memory_space<vmem>>, vector<1x1x32xf32>,
    } else {
    }
    return
  }
  func.func @transform_0(%arg0: i32, %arg1: i32) -> (i32, i32, i32) {
    %c0_i32 = arith.constant 0 : i32
    %c0_i32_0 = arith.constant 0 : i32
    return %arg0, %arg1, %c0_i32 : i32, i32, i32
  }
  func.func @transform_1(%arg0: i32, %arg1: i32) -> (i32, i32) {
    %c0_i32 = arith.constant 0 : i32
    %c0_i32_0 = arith.constant 0 : i32
    %c0_i32_1 = arith.constant 0 : i32
    return %c0_i32, %c0_i32_0 : i32, i32
  }
  func.func @transform_2(%arg0: i32, %arg1: i32) -> (i32, i32) {
    %c0_i32 = arith.constant 0 : i32
    %c0_i32_0 = arith.constant 0 : i32
    %c0_i32_1 = arith.constant 0 : i32
    return %c0_i32, %c0_i32_0 : i32, i32
  }
  func.func @transform_3(%arg0: i32, %arg1: i32) -> (i32, i32) {
    %c0_i32 = arith.constant 0 : i32
    %c0_i32_0 = arith.constant 0 : i32
    %c0_i32_1 = arith.constant 0 : i32
    return %c0_i32, %c0_i32_0 : i32, i32
  }
  func.func @transform_4(%arg0: i32, %arg1: i32) -> (i32, i32) {
    %c0_i32 = arith.constant 0 : i32
    %c0_i32_0 = arith.constant 0 : i32
    %c0_i32_1 = arith.constant 0 : i32
    return %c0_i32, %c0_i32_0 : i32, i32
  }
  func.func @transform_5(%arg0: i32, %arg1: i32) -> (i32, i32) {
    %c0_i32 = arith.constant 0 : i32
    %c0_i32_0 = arith.constant 0 : i32
    %c0_i32_1 = arith.constant 0 : i32
    return %c0_i32, %c0_i32_0 : i32, i32
  }
  func.func @transform_6(%arg0: i32, %arg1: i32) -> (i32, i32) {
    %c0_i32 = arith.constant 0 : i32
    %c0_i32_0 = arith.constant 0 : i32
    %c0_i32_1 = arith.constant 0 : i32
    return %c0_i32, %c0_i32_0 : i32, i32
  }
  func.func @transform_7(%arg0: i32, %arg1: i32) -> (i32, i32, i32) {
    %c0_i32 = arith.constant 0 : i32
    %c0_i32_0 = arith.constant 0 : i32
    return %arg0, %arg1, %c0_i32 : i32, i32, i32
  }
  func.func @transform_8(%arg0: i32, %arg1: i32) -> (i32, i32, i32) {
    %c0_i32 = arith.constant 0 : i32
    %c0_i32_0 = arith.constant 0 : i32
    %c0_i32_1 = arith.constant 0 : i32
    return %arg0, %c0_i32, %c0_i32_0 : i32, i32, i32
  }
}

</mosaic_0001>

<llo_original>
// kernel: fem_forward.4
$region0: #{fem_forward.4}
  #allocation0 [shape = 'u32[]', space=smem, size = 0x4, offset = 0x4, fixed_abs, tag = 'smem constant byte address 0x4 - core index']
  #allocation1 [shape = 'u32[144,128]{1,0:T(1,128)}', space=vmem, size = 0x12000, scoped, tag = 'internal scratch']
  #allocation2 [shape = 'f32[1,32]{1,0:T(1,128)}', space=vmem, size = 0x200, scoped, tag = 'scratch operand']
  %s0 = inlined_call_operand.vmem [shape: f32[4,64,32], index: 0, kind: input, shape index: {}]
  %s1 = inlined_call_operand.vmem [shape: f32[32,32], index: 1, kind: input, shape index: {}]
  %s2 = inlined_call_operand.vmem [shape: f32[1,32], index: 2, kind: input, shape index: {}]
  %s3 = inlined_call_operand.vmem [shape: f32[32,2], index: 3, kind: input, shape index: {}]
  %s4 = inlined_call_operand.vmem [shape: f32[1,2], index: 4, kind: input, shape index: {}]
  %s5 = inlined_call_operand.vmem [shape: f32[2,32], index: 5, kind: input, shape index: {}]
  %s6 = inlined_call_operand.vmem [shape: f32[1,32], index: 6, kind: input, shape index: {}]
  %s7 = inlined_call_operand.vmem [shape: f32[4,64,32], index: 7, kind: output, shape index: {0}]
  %s8 = inlined_call_operand.vmem [shape: f32[4,1,32], index: 8, kind: output, shape index: {1}]
  %9 = xla_tuple %s7, %s8
  %s10 = sld [smem:[#allocation0]]
  $region77: #{fem_forward.4} parent=0
    _
  %s12 = ssub.s32 1, %s10
  %s13 = scalar_select 0, %s12, %s10
  loop: start=0, step=1, limit=6
  $region2: #{fem_forward.4} parent=0 // loop_pre_header
    _
  $region3: #{fem_forward.4} parent=0 // loop_header
    %s15 = sphi 0, %s19
    %p16 = scmp.ge.s32.totalorder %s15, 6
    %s22 = sphi 0, %s34
    %s23 = sphi 0, %s30
    %s24 = sphi 0, %s22
    %s25 = sphi 0, %s23
    %s26 = sphi 0, %s24
    %s27 = sphi 0, %s25
    %s39 = sphi 0, %s41
    %s42 = sphi 0, %s39
    %s43 = sphi 0, %s42
    %s59 = sphi 0, %s43
    %s63 = sphi 0, %s63
    %s65 = sphi 0, %s63
    %s66 = sphi 0, %s65
    %s80 = sphi 0, %s66
    %s84 = sphi 0, %s84
    %s86 = sphi 0, %s84
    %s87 = sphi 0, %s86
    %s101 = sphi 0, %s87
    %s105 = sphi 0, %s105
    %s107 = sphi 0, %s105
    %s108 = sphi 0, %s107
    %s122 = sphi 0, %s108
    %s126 = sphi 0, %s126
    %s128 = sphi 0, %s126
    %s129 = sphi 0, %s128
    %s143 = sphi 0, %s129
    %s147 = sphi 0, %s147
    %s149 = sphi 0, %s147
    %s150 = sphi 0, %s149
    %s164 = sphi 0, %s150
    %s168 = sphi 0, %s168
    %s170 = sphi 0, %s168
    %s171 = sphi 0, %s170
    %s185 = sphi 0, %s171
    %s193 = sphi 0, %s195
    %s196 = sphi 0, %s193
    %s197 = sphi 0, %s196
    %s213 = sphi 0, %s197
    %s219 = sphi 0, %s221
    %s222 = sphi 0, %s219
    %s223 = sphi 0, %s222
    %s239 = sphi 0, %s223
  $region4: #{fem_forward.4} parent=0 // loop_header_branch
    %18 = sbr.rel (%p16) target = $region8
  $region5: #{fem_forward.4} parent=0 // loop_body
    %s20 = ssub.s32 %s15, 1
    %s21 = ssub.s32 %s15, 2
    %s28 = sadd.s32 1, %s23
    %p29 = scmp.ge.s32.totalorder %s28, 1
    %s30 = scalar_select %p29, 0, %s28
    %s31 = sadd.s32 1, %s22
    %s32 = scalar_select %p29, %s31, %s22
    %p33 = scmp.ge.s32.totalorder %s32, 4
    %s34 = scalar_select %p33, 0, %s32
    %s35 = ssub.s32 %s22, %s34
    %s36 = ssub.s32 %s23, %s30
    %s37 = sor.u32 %s35, %s36
    %p38 = scmp.eq.s32.totalorder %s37, 0
    %s40 = sadd.s32 %s39, 1
    %s41 = scalar_select %p38, %s39, %s40
    %p44 = pneg %p38
    %p45 = scmp.eq.s32.totalorder %s15, 3
    %p46 = por %p44, %p45
    %p47 = scmp.ne.s32.totalorder %s39, %s42
    %p48 = scmp.eq.s32.totalorder %s15, 0
    %p49 = por %p47, %p48
    %p50 = scmp.ne.s32.totalorder %s39, %s42
    %p51 = scmp.eq.s32.totalorder %s20, 3
    %p52 = por %p50, %p51
    %p53 = scmp.ne.s32.totalorder %s42, %s43
    %p54 = scmp.eq.s32.totalorder %s20, 0
    %p55 = por %p53, %p54
    %p56 = scmp.ne.s32.totalorder %s42, %s43
    %p57 = scmp.eq.s32.totalorder %s21, 3
    %p58 = por %p56, %p57
    %p60 = scmp.ne.s32.totalorder %s43, %s59
    %p61 = scmp.eq.s32.totalorder %s21, 0
    %p62 = por %p60, %p61
    %s64 = sadd.s32 %s63, 1
    %p67 = scmp.eq.s32.totalorder %s15, 3
    %p68 = scmp.ne.s32.totalorder %s63, %s65
    %p69 = scmp.eq.s32.totalorder %s15, 0
    %p70 = por %p68, %p69
    %p71 = scmp.ne.s32.totalorder %s63, %s65
    %p72 = scmp.eq.s32.totalorder %s20, 3
    %p73 = por %p71, %p72
    %p74 = scmp.ne.s32.totalorder %s65, %s66
    %p75 = scmp.eq.s32.totalorder %s20, 0
    %p76 = por %p74, %p75
    %p77 = scmp.ne.s32.totalorder %s65, %s66
    %p78 = scmp.eq.s32.totalorder %s21, 3
    %p79 = por %p77, %p78
    %p81 = scmp.ne.s32.totalorder %s66, %s80
    %p82 = scmp.eq.s32.totalorder %s21, 0
    %p83 = por %p81, %p82
    %s85 = sadd.s32 %s84, 1
    %p88 = scmp.eq.s32.totalorder %s15, 3
    %p89 = scmp.ne.s32.totalorder %s84, %s86
    %p90 = scmp.eq.s32.totalorder %s15, 0
    %p91 = por %p89, %p90
    %p92 = scmp.ne.s32.totalorder %s84, %s86
    %p93 = scmp.eq.s32.totalorder %s20, 3
    %p94 = por %p92, %p93
    %p95 = scmp.ne.s32.totalorder %s86, %s87
    %p96 = scmp.eq.s32.totalorder %s20, 0
    %p97 = por %p95, %p96
    %p98 = scmp.ne.s32.totalorder %s86, %s87
    %p99 = scmp.eq.s32.totalorder %s21, 3
    %p100 = por %p98, %p99
    %p102 = scmp.ne.s32.totalorder %s87, %s101
    %p103 = scmp.eq.s32.totalorder %s21, 0
    %p104 = por %p102, %p103
    %s106 = sadd.s32 %s105, 1
    %p109 = scmp.eq.s32.totalorder %s15, 3
    %p110 = scmp.ne.s32.totalorder %s105, %s107
    %p111 = scmp.eq.s32.totalorder %s15, 0
    %p112 = por %p110, %p111
    %p113 = scmp.ne.s32.totalorder %s105, %s107
    %p114 = scmp.eq.s32.totalorder %s20, 3
    %p115 = por %p113, %p114
    %p116 = scmp.ne.s32.totalorder %s107, %s108
    %p117 = scmp.eq.s32.totalorder %s20, 0
    %p118 = por %p116, %p117
    %p119 = scmp.ne.s32.totalorder %s107, %s108
    %p120 = scmp.eq.s32.totalorder %s21, 3
    %p121 = por %p119, %p120
    %p123 = scmp.ne.s32.totalorder %s108, %s122
    %p124 = scmp.eq.s32.totalorder %s21, 0
    %p125 = por %p123, %p124
    %s127 = sadd.s32 %s126, 1
    %p130 = scmp.eq.s32.totalorder %s15, 3
    %p131 = scmp.ne.s32.totalorder %s126, %s128
    %p132 = scmp.eq.s32.totalorder %s15, 0
    %p133 = por %p131, %p132
    %p134 = scmp.ne.s32.totalorder %s126, %s128
    %p135 = scmp.eq.s32.totalorder %s20, 3
    %p136 = por %p134, %p135
    %p137 = scmp.ne.s32.totalorder %s128, %s129
    %p138 = scmp.eq.s32.totalorder %s20, 0
    %p139 = por %p137, %p138
    %p140 = scmp.ne.s32.totalorder %s128, %s129
    %p141 = scmp.eq.s32.totalorder %s21, 3
    %p142 = por %p140, %p141
    %p144 = scmp.ne.s32.totalorder %s129, %s143
    %p145 = scmp.eq.s32.totalorder %s21, 0
    %p146 = por %p144, %p145
    %s148 = sadd.s32 %s147, 1
    %p151 = scmp.eq.s32.totalorder %s15, 3
    %p152 = scmp.ne.s32.totalorder %s147, %s149
    %p153 = scmp.eq.s32.totalorder %s15, 0
    %p154 = por %p152, %p153
    %p155 = scmp.ne.s32.totalorder %s147, %s149
    %p156 = scmp.eq.s32.totalorder %s20, 3
    %p157 = por %p155, %p156
    %p158 = scmp.ne.s32.totalorder %s149, %s150
    %p159 = scmp.eq.s32.totalorder %s20, 0
    %p160 = por %p158, %p159
    %p161 = scmp.ne.s32.totalorder %s149, %s150
    %p162 = scmp.eq.s32.totalorder %s21, 3
    %p163 = por %p161, %p162
    %p165 = scmp.ne.s32.totalorder %s150, %s164
    %p166 = scmp.eq.s32.totalorder %s21, 0
    %p167 = por %p165, %p166
    %s169 = sadd.s32 %s168, 1
    %p172 = scmp.eq.s32.totalorder %s15, 3
    %p173 = scmp.ne.s32.totalorder %s168, %s170
    %p174 = scmp.eq.s32.totalorder %s15, 0
    %p175 = por %p173, %p174
    %p176 = scmp.ne.s32.totalorder %s168, %s170
    %p177 = scmp.eq.s32.totalorder %s20, 3
    %p178 = por %p176, %p177
    %p179 = scmp.ne.s32.totalorder %s170, %s171
    %p180 = scmp.eq.s32.totalorder %s20, 0
    %p181 = por %p179, %p180
    %p182 = scmp.ne.s32.totalorder %s170, %s171
    %p183 = scmp.eq.s32.totalorder %s21, 3
    %p184 = por %p182, %p183
    %p186 = scmp.ne.s32.totalorder %s171, %s185
    %p187 = scmp.eq.s32.totalorder %s21, 0
    %p188 = por %p186, %p187
    %s189 = ssub.s32 %s22, %s34
    %s190 = ssub.s32 %s23, %s30
    %s191 = sor.u32 %s189, %s190
    %p192 = scmp.eq.s32.totalorder %s191, 0
    %s194 = sadd.s32 %s193, 1
    %s195 = scalar_select %p192, %s193, %s194
    %p198 = pneg %p192
    %p199 = scmp.eq.s32.totalorder %s15, 3
    %p200 = por %p198, %p199
    %p201 = scmp.ne.s32.totalorder %s193, %s196
    %p202 = scmp.eq.s32.totalorder %s15, 0
    %p203 = por %p201, %p202
    %p204 = scmp.ne.s32.totalorder %s193, %s196
    %p205 = scmp.eq.s32.totalorder %s20, 3
    %p206 = por %p204, %p205
    %p207 = scmp.ne.s32.totalorder %s196, %s197
    %p208 = scmp.eq.s32.totalorder %s20, 0
    %p209 = por %p207, %p208
    %p210 = scmp.ne.s32.totalorder %s196, %s197
    %p211 = scmp.eq.s32.totalorder %s21, 3
    %p212 = por %p210, %p211
    %p214 = scmp.ne.s32.totalorder %s197, %s213
    %p215 = scmp.eq.s32.totalorder %s21, 0
    %p216 = por %p214, %p215
    %s217 = ssub.s32 %s22, %s34
    %p218 = scmp.eq.s32.totalorder %s217, 0
    %s220 = sadd.s32 %s219, 1
    %s221 = scalar_select %p218, %s219, %s220
    %p224 = pneg %p218
    %p225 = scmp.eq.s32.totalorder %s15, 3
    %p226 = por %p224, %p225
    %p227 = scmp.ne.s32.totalorder %s219, %s222
    %p228 = scmp.eq.s32.totalorder %s15, 0
    %p229 = por %p227, %p228
    %p230 = scmp.ne.s32.totalorder %s219, %s222
    %p231 = scmp.eq.s32.totalorder %s20, 3
    %p232 = por %p230, %p231
    %p233 = scmp.ne.s32.totalorder %s222, %s223
    %p234 = scmp.eq.s32.totalorder %s20, 0
    %p235 = por %p233, %p234
    %p236 = scmp.ne.s32.totalorder %s222, %s223
    %p237 = scmp.eq.s32.totalorder %s21, 3
    %p238 = por %p236, %p237
    %p240 = scmp.ne.s32.totalorder %s223, %s239
    %p241 = scmp.eq.s32.totalorder %s21, 0
    %p242 = por %p240, %p241
    %p243 = scmp.le.s32.totalorder 1, %s15
    %p244 = scmp.lt.s32.totalorder %s15, 5
    %p245 = pnand %p243, %p244
    %p246 = pneg %p245
    // Predicated region
    $region9: #{fem_forward.4} parent=5 // pred_check
      _
    $region10: #{fem_forward.4} parent=5 // pred_check_branch
      %248 = sbr.rel (%p245) target = $region12
    $region11: #{fem_forward.4} parent=5 // pred_region
      %s249 = ssub.s32 %s15, 1
      // Predicated region
      $region13: #{fem_forward.4} parent=11 // pred_check
        %p250 = pneg %p76
      $region14: #{fem_forward.4} parent=11 // pred_check_branch
        %252 = sbr.rel (%p250) target = $region16
      $region15: #{fem_forward.4} parent=11 // pred_region
        _
      $region16: #{fem_forward.4} parent=11 // pred_fallthru
        _
      // Predicated region
      $region17: #{fem_forward.4} parent=11 // pred_check
        %p253 = pneg %p97
      $region18: #{fem_forward.4} parent=11 // pred_check_branch
        %255 = sbr.rel (%p253) target = $region20
      $region19: #{fem_forward.4} parent=11 // pred_region
        _
      $region20: #{fem_forward.4} parent=11 // pred_fallthru
        _
      // Predicated region
      $region21: #{fem_forward.4} parent=11 // pred_check
        %p256 = pneg %p118
      $region22: #{fem_forward.4} parent=11 // pred_check_branch
        %258 = sbr.rel (%p256) target = $region24
      $region23: #{fem_forward.4} parent=11 // pred_region
        _
      $region24: #{fem_forward.4} parent=11 // pred_fallthru
        _
      // Predicated region
      $region25: #{fem_forward.4} parent=11 // pred_check
        %p259 = pneg %p139
      $region26: #{fem_forward.4} parent=11 // pred_check_branch
        %261 = sbr.rel (%p259) target = $region28
      $region27: #{fem_forward.4} parent=11 // pred_region
        _
      $region28: #{fem_forward.4} parent=11 // pred_fallthru
        _
      // Predicated region
      $region29: #{fem_forward.4} parent=11 // pred_check
        %p262 = pneg %p160
      $region30: #{fem_forward.4} parent=11 // pred_check_branch
        %264 = sbr.rel (%p262) target = $region32
      $region31: #{fem_forward.4} parent=11 // pred_region
        _
      $region32: #{fem_forward.4} parent=11 // pred_fallthru
        _
      // Predicated region
      $region33: #{fem_forward.4} parent=11 // pred_check
        %p265 = pneg %p181
      $region34: #{fem_forward.4} parent=11 // pred_check_branch
        %267 = sbr.rel (%p265) target = $region36
      $region35: #{fem_forward.4} parent=11 // pred_region
        _
      $region36: #{fem_forward.4} parent=11 // pred_fallthru
        _
    $region12: #{fem_forward.4} parent=5 // pred_fallthru
      _
    %p268 = scmp.lt.s32.totalorder %s15, 4
    // Predicated region
    $region37: #{fem_forward.4} parent=5 // pred_check
      %p269 = pneg %p268
    $region38: #{fem_forward.4} parent=5 // pred_check_branch
      %271 = sbr.rel (%p269) target = $region40
    $region39: #{fem_forward.4} parent=5 // pred_region
      // Predicated region
      $region41: #{fem_forward.4} parent=39 // pred_check
        %p272 = pneg %p49
      $region42: #{fem_forward.4} parent=39 // pred_check_branch
        %274 = sbr.rel (%p272) target = $region44
      $region43: #{fem_forward.4} parent=39 // pred_region
        %s275 = smul.u32 8, %s23
        %p276 = scmp.lt.s32.totalorder %s22, 3
        %s277 = scalar_select %p276, %s22, 3
        %p278 = scmp.lt.s32.totalorder %s275, 7
        %s279 = scalar_select %p278, %s275, 7
        %s280 = smul.addr %s277, 8
        %s281 = sadd.s32 %s279, %s280
        %s282 = smul.addr %s281, 8
        %s283 = scalar_lea.vmem %s0, %s282
        %s284 = smul.u32 8, %s23
      $region44: #{fem_forward.4} parent=39 // pred_fallthru
        _
    $region40: #{fem_forward.4} parent=5 // pred_fallthru
      _
    %p285 = scmp.le.s32.totalorder 1, %s15
    %p286 = scmp.lt.s32.totalorder %s15, 5
    %p287 = pnand %p285, %p286
    %p288 = pneg %p287
    // Predicated region
    $region45: #{fem_forward.4} parent=5 // pred_check
      _
    $region46: #{fem_forward.4} parent=5 // pred_check_branch
      %290 = sbr.rel (%p287) target = $region48
    $region47: #{fem_forward.4} parent=5 // pred_region
      %s291 = ssub.s32 %s15, 1
      %s292 = smul.u32 8, %s25
      %p293 = scmp.lt.s32.totalorder %s24, 3
      %s294 = scalar_select %p293, %s24, 3
      %p295 = scmp.lt.s32.totalorder %s292, 7
      %s296 = scalar_select %p295, %s292, 7
      %s297 = smul.addr %s294, 8
      %s298 = sadd.s32 %s296, %s297
      %s299 = smul.addr %s298, 8
      %s300 = scalar_lea.vmem %s0, %s299
      %p301 = pneg %p55
      %p302 = pneg %p52
      %p303 = pneg %p76
      %p304 = pneg %p73
      %p305 = pneg %p97
      %p306 = pneg %p94
      %p307 = pneg %p118
      %p308 = pneg %p115
      %p309 = pneg %p139
      %p310 = pneg %p136
      %p311 = pneg %p160
      %p312 = pneg %p157
      %p313 = pneg %p181
      %p314 = pneg %p178
      %p315 = pneg %p209
      %p316 = pneg %p206
      %s317 = smul.u32 8, %s25
      %p318 = scmp.lt.s32.totalorder %s24, 3
      %s319 = scalar_select %p318, %s24, 3
      %p320 = scmp.lt.s32.totalorder %s317, 7
      %s321 = scalar_select %p320, %s317, 7
      %s322 = smul.addr %s319, 8
      %s323 = sadd.s32 %s321, %s322
      %s324 = smul.addr %s323, 8
      %s325 = scalar_lea.vmem %s7, %s324
      %p326 = pneg %p235
      %p327 = pneg %p232
      %p328 = scmp.lt.s32.totalorder %s24, 3
      %s329 = scalar_select %p328, %s24, 3
      %s330 = scalar_lea.vmem %s8, %s329
      %s331 = smul.u32 8, %s25
      %p332 = scmp.lt.s32.totalorder %s24, 3
      %s333 = scalar_select %p332, %s24, 3
      %p334 = scmp.lt.s32.totalorder %s331, 7
      %s335 = scalar_select %p334, %s331, 7
      %s336 = smul.addr %s333, 8
      %s337 = sadd.s32 %s335, %s336
      %s338 = smul.addr %s337, 8
      %s339 = scalar_lea.vmem %s0, %s338
      %s340 = smul.u32 8, %s25
      %s341 = smul.u32 8, %s25
      %p342 = scmp.lt.s32.totalorder %s24, 3
      %s343 = scalar_select %p342, %s24, 3
      %p344 = scmp.lt.s32.totalorder %s341, 7
      %s345 = scalar_select %p344, %s341, 7
      %s346 = smul.addr %s343, 8
      %s347 = sadd.s32 %s345, %s346
      %s348 = smul.addr %s347, 8
      %s349 = scalar_lea.vmem %s7, %s348
      %s350 = smul.u32 8, %s25
      %p351 = scmp.lt.s32.totalorder %s24, 3
      %s352 = scalar_select %p351, %s24, 3
      %s353 = scalar_lea.vmem %s8, %s352
      %v354 = vld [vmem:[%s339] sm:$0xff]
      %v355 = vld [vmem:[%s339 + $0x8] sm:$0xff]
      %v356 = vld [vmem:[%s339 + $0x10] sm:$0xff]
      %v357 = vld [vmem:[%s339 + $0x18] sm:$0xff]
      %v358 = vld [vmem:[%s339 + $0x20] sm:$0xff]
      %v359 = vld [vmem:[%s339 + $0x28] sm:$0xff]
      %v360 = vld [vmem:[%s339 + $0x30] sm:$0xff]
      %v361 = vld [vmem:[%s339 + $0x38] sm:$0xff]
      %v362 = vld [vmem:[%s1] sm:$0xff]
      %v363 = vld [vmem:[%s1 + $0x8] sm:$0xff]
      %v364 = vld [vmem:[%s1 + $0x10] sm:$0xff]
      %v365 = vld [vmem:[%s1 + $0x18] sm:$0xff]
      %v366 = vld [vmem:[%s2] sm:$0x1]
      %v368 = vlaneseq
      %v369 = vshrl.u32 %v368, 7
      %v370 = vsub.s32 0, %v369
      %v371 = vrot.slane %v366, %v370
      %vm373 = vcmask 261120
      %v375 = vsel %vm373, %v354, 0
      %v378 = vsel %vm373, %v355, 0
      %v381 = vsel %vm373, %v356, 0
      %v384 = vsel %vm373, %v357, 0
      %v387 = vsel %vm373, %v358, 0
      %v390 = vsel %vm373, %v359, 0
      %v393 = vsel %vm373, %v360, 0
      %v396 = vsel %vm373, %v361, 0
      %398 = vmatprep.subr.mxu0 0.0
      %399 = vmatpush1.msra.mxu0 0.0
      %400 = vmatprep.subr.mxu0 0.0
      %401 = vmatpush1.msra.mxu0 0.0
      %402 = vmatprep.subr.mxu0 0.0
      %403 = vmatpush1.msra.mxu0 0.0
      %404 = vmatprep.subr.mxu0 0.0
      %405 = vmatpush1.msra.mxu0 0.0
      %406 = vmatprep.subr.mxu0 0.0
      %407 = vmatpush1.msra.mxu0 0.0
      %408 = vmatprep.subr.mxu0 0.0
      %409 = vmatpush1.msra.mxu0 0.0
      %410 = vmatprep.subr.mxu0 0.0
      %411 = vmatpush1.msra.mxu0 0.0
      %412 = vmatprep.subr.mxu0 0.0
      %413 = vmatpush1.msra.mxu0 0.0
      %414 = vmatprep.subr.mxu0 0.0
      %415 = vmatpush1.msra.mxu0 0.0
      %416 = vmatprep.subr.mxu0 0.0
      %417 = vmatpush1.msra.mxu0 0.0
      %418 = vmatprep.subr.mxu0 0.0
      %419 = vmatpush1.msra.mxu0 0.0
      %420 = vmatprep.subr.mxu0 0.0
      %421 = vmatpush1.msra.mxu0 0.0
      %422 = vmatprep.subr.mxu0 0.0
      %423 = vmatpush1.msra.mxu0 %v365
      %424 = vmatprep.subr.mxu0 0.0
      %425 = vmatpush1.msra.mxu0 %v364
      %426 = vmatprep.subr.mxu0 0.0
      %427 = vmatpush1.msra.mxu0 %v363
      %428 = vmatprep.subr.mxu0 0.0
      %429 = vmatpush1.msra.mxu0 %v362
      %430 = vmatprep.subr.mxu0 0.0
      %431 = vmatpush2.msra.mxu0 0.0
      %432 = vmatprep.subr.mxu0 0.0
      %433 = vmatpush2.msra.mxu0 0.0
      %434 = vmatprep.subr.mxu0 0.0
      %435 = vmatpush2.msra.mxu0 0.0
      %436 = vmatprep.subr.mxu0 0.0
      %437 = vmatpush2.msra.mxu0 0.0
      %438 = vmatprep.subr.mxu0 0.0
      %439 = vmatpush2.msra.mxu0 0.0
      %440 = vmatprep.subr.mxu0 0.0
      %441 = vmatpush2.msra.mxu0 0.0
      %442 = vmatprep.subr.mxu0 0.0
      %443 = vmatpush2.msra.mxu0 0.0
      %444 = vmatprep.subr.mxu0 0.0
      %445 = vmatpush2.msra.mxu0 0.0
      %446 = vmatprep.subr.mxu0 0.0
      %447 = vmatpush2.msra.mxu0 0.0
      %448 = vmatprep.subr.mxu0 0.0
      %449 = vmatpush2.msra.mxu0 0.0
      %450 = vmatprep.subr.mxu0 0.0
      %451 = vmatpush2.msra.mxu0 0.0
      %452 = vmatprep.subr.mxu0 0.0
      %453 = vmatpush2.msra.mxu0 0.0
      %454 = vmatprep.subr.mxu0 0.0
      %455 = vmatpush2.msra.mxu0 0.0
      %456 = vmatprep.subr.mxu0 0.0
      %457 = vmatpush2.msra.mxu0 0.0
      %458 = vmatprep.subr.mxu0 0.0
      %459 = vmatpush2.msra.mxu0 0.0
      %460 = vmatprep.subr.mxu0 0.0
      %461 = vmatpush2.msra.mxu0 0.0
      %462 = vmatprep.mubr.f32.mxu0 0.0
      %463 = vmatmul.mubr.f32.gmra.mxu0 %v375
      %v464 = vpop.f32.mrf.mxu0
      %v465 = vadd.f32 %v371, %v464
      %v466 = vpop.f32.mrf.mxu0
      %467 = vmatprep.mubr.f32.mxu0 0.0
      %468 = vmatmul.mubr.f32.gmra.mxu0 %v378
      %v469 = vpop.f32.mrf.mxu0
      %v470 = vadd.f32 %v371, %v469
      %v471 = vpop.f32.mrf.mxu0
      %472 = vmatprep.mubr.f32.mxu0 0.0
      %473 = vmatmul.mubr.f32.gmra.mxu0 %v381
      %v474 = vpop.f32.mrf.mxu0
      %v475 = vadd.f32 %v371, %v474
      %v476 = vpop.f32.mrf.mxu0
      %477 = vmatprep.mubr.f32.mxu0 0.0
      %478 = vmatmul.mubr.f32.gmra.mxu0 %v384
      %v479 = vpop.f32.mrf.mxu0
      %v480 = vadd.f32 %v371, %v479
      %v481 = vpop.f32.mrf.mxu0
      %482 = vmatprep.mubr.f32.mxu0 0.0
      %483 = vmatmul.mubr.f32.gmra.mxu0 %v387
      %v484 = vpop.f32.mrf.mxu0
      %v485 = vadd.f32 %v371, %v484
      %v486 = vpop.f32.mrf.mxu0
      %487 = vmatprep.mubr.f32.mxu0 0.0
      %488 = vmatmul.mubr.f32.gmra.mxu0 %v390
      %v489 = vpop.f32.mrf.mxu0
      %v490 = vadd.f32 %v371, %v489
      %v491 = vpop.f32.mrf.mxu0
      %492 = vmatprep.mubr.f32.mxu0 0.0
      %493 = vmatmul.mubr.f32.gmra.mxu0 %v393
      %v494 = vpop.f32.mrf.mxu0
      %v495 = vadd.f32 %v371, %v494
      %v496 = vpop.f32.mrf.mxu0
      %497 = vmatprep.mubr.f32.mxu0 0.0
      %498 = vmatmul.mubr.f32.gmra.mxu0 %v396
      %v499 = vpop.f32.mrf.mxu0
      %v500 = vadd.f32 %v371, %v499
      %v501 = vpop.f32.mrf.mxu0
      %502 = vdwg.mxu0
      %503 = vst.msk [vmem:[%s349] sm:$0xff] %vm373, %v465
      %504 = vst.msk [vmem:[%s349 + $0x8] sm:$0xff] %vm373, %v470
      %505 = vst.msk [vmem:[%s349 + $0x10] sm:$0xff] %vm373, %v475
      %506 = vst.msk [vmem:[%s349 + $0x18] sm:$0xff] %vm373, %v480
      %507 = vst.msk [vmem:[%s349 + $0x20] sm:$0xff] %vm373, %v485
      %508 = vst.msk [vmem:[%s349 + $0x28] sm:$0xff] %vm373, %v490
      %509 = vst.msk [vmem:[%s349 + $0x30] sm:$0xff] %vm373, %v495
      %510 = vst.msk [vmem:[%s349 + $0x38] sm:$0xff] %vm373, %v500
      %p511 = scmp.eq.s32.totalorder %s25, 0
      // Predicated region
      $region49: #{fem_forward.4} parent=47 // pred_check
        %p512 = pneg %p511
      $region50: #{fem_forward.4} parent=47 // pred_check_branch
        %514 = sbr.rel (%p512) target = $region52
      $region51: #{fem_forward.4} parent=47 // pred_region
        %vm515 = vcmask 253952
        %516 = vst.msk [vmem:[#allocation2] sm:$0x1] %vm515, 0.0
      $region52: #{fem_forward.4} parent=47 // pred_fallthru
        _
      %v517 = vld [vmem:[#allocation2] sm:$0x1]
      %v518 = vsel %vm373, %v354, 0.0
      %v519 = vsel %vm373, %v355, 0.0
      %v520 = vadd.f32 %v518, %v519
      %v521 = vsel %vm373, %v356, 0.0
      %v522 = vadd.f32 %v520, %v521
      %v523 = vsel %vm373, %v357, 0.0
      %v524 = vadd.f32 %v522, %v523
      %v525 = vsel %vm373, %v358, 0.0
      %v526 = vadd.f32 %v524, %v525
      %v527 = vsel %vm373, %v359, 0.0
      %v528 = vadd.f32 %v526, %v527
      %v529 = vsel %vm373, %v360, 0.0
      %v530 = vadd.f32 %v528, %v529
      %v531 = vsel %vm373, %v361, 0.0
      %v532 = vadd.f32 %v530, %v531
      %v533 = vrot.slane %v532, 4
      %v534 = vadd.f32 %v532, %v533
      %v535 = vrot.slane %v534, 2
      %v536 = vadd.f32 %v534, %v535
      %v537 = vrot.slane %v536, 1
      %v538 = vadd.f32 %v536, %v537
      %v539 = vadd.f32 %v517, %v538
      %vm540 = vcmask 253952
      %541 = vst.msk [vmem:[#allocation2] sm:$0x1] %vm540, %v539
      // Predicated region
      $region53: #{fem_forward.4} parent=47 // pred_check
        %p542 = pneg %p511
      $region54: #{fem_forward.4} parent=47 // pred_check_branch
        %544 = sbr.rel (%p542) target = $region56
      $region55: #{fem_forward.4} parent=47 // pred_region
        %v545 = vld [vmem:[#allocation2] sm:$0x1]
        %v546 = vmul.f32 %v545, 0.015625
        %v547 = vld [vmem:[%s3] sm:$0xff]
        %v548 = vld [vmem:[%s3 + $0x8] sm:$0xff]
        %v549 = vld [vmem:[%s3 + $0x10] sm:$0xff]
        %v550 = vld [vmem:[%s3 + $0x18] sm:$0xff]
        %v551 = vld [vmem:[%s4] sm:$0x1]
        %v553 = vsel %vm373, %v546, 0
        %555 = vmatprep.subr.mxu0 0.0
        %556 = vmatpush1.msra.mxu0 0.0
        %557 = vmatprep.subr.mxu0 0.0
        %558 = vmatpush1.msra.mxu0 0.0
        %559 = vmatprep.subr.mxu0 0.0
        %560 = vmatpush1.msra.mxu0 0.0
        %561 = vmatprep.subr.mxu0 0.0
        %562 = vmatpush1.msra.mxu0 0.0
        %563 = vmatprep.subr.mxu0 0.0
        %564 = vmatpush1.msra.mxu0 0.0
        %565 = vmatprep.subr.mxu0 0.0
        %566 = vmatpush1.msra.mxu0 0.0
        %567 = vmatprep.subr.mxu0 0.0
        %568 = vmatpush1.msra.mxu0 0.0
        %569 = vmatprep.subr.mxu0 0.0
        %570 = vmatpush1.msra.mxu0 0.0
        %571 = vmatprep.subr.mxu0 0.0
        %572 = vmatpush1.msra.mxu0 0.0
        %573 = vmatprep.subr.mxu0 0.0
        %574 = vmatpush1.msra.mxu0 0.0
        %575 = vmatprep.subr.mxu0 0.0
        %576 = vmatpush1.msra.mxu0 0.0
        %577 = vmatprep.subr.mxu0 0.0
        %578 = vmatpush1.msra.mxu0 0.0
        %579 = vmatprep.subr.mxu0 0.0
        %580 = vmatpush1.msra.mxu0 %v550
        %581 = vmatprep.subr.mxu0 0.0
        %582 = vmatpush1.msra.mxu0 %v549
        %583 = vmatprep.subr.mxu0 0.0
        %584 = vmatpush1.msra.mxu0 %v548
        %585 = vmatprep.subr.mxu0 0.0
        %586 = vmatpush1.msra.mxu0 %v547
        %587 = vmatprep.subr.mxu0 0.0
        %588 = vmatpush2.msra.mxu0 0.0
        %589 = vmatprep.subr.mxu0 0.0
        %590 = vmatpush2.msra.mxu0 0.0
        %591 = vmatprep.subr.mxu0 0.0
        %592 = vmatpush2.msra.mxu0 0.0
        %593 = vmatprep.subr.mxu0 0.0
        %594 = vmatpush2.msra.mxu0 0.0
        %595 = vmatprep.subr.mxu0 0.0
        %596 = vmatpush2.msra.mxu0 0.0
        %597 = vmatprep.subr.mxu0 0.0
        %598 = vmatpush2.msra.mxu0 0.0
        %599 = vmatprep.subr.mxu0 0.0
        %600 = vmatpush2.msra.mxu0 0.0
        %601 = vmatprep.subr.mxu0 0.0
        %602 = vmatpush2.msra.mxu0 0.0
        %603 = vmatprep.subr.mxu0 0.0
        %604 = vmatpush2.msra.mxu0 0.0
        %605 = vmatprep.subr.mxu0 0.0
        %606 = vmatpush2.msra.mxu0 0.0
        %607 = vmatprep.subr.mxu0 0.0
        %608 = vmatpush2.msra.mxu0 0.0
        %609 = vmatprep.subr.mxu0 0.0
        %610 = vmatpush2.msra.mxu0 0.0
        %611 = vmatprep.subr.mxu0 0.0
        %612 = vmatpush2.msra.mxu0 0.0
        %613 = vmatprep.subr.mxu0 0.0
        %614 = vmatpush2.msra.mxu0 0.0
        %615 = vmatprep.subr.mxu0 0.0
        %616 = vmatpush2.msra.mxu0 0.0
        %617 = vmatprep.subr.mxu0 0.0
        %618 = vmatpush2.msra.mxu0 0.0
        %619 = vmatprep.mubr.f32.mxu0 0.0
        %620 = vmatmul.mubr.f32.gmra.mxu0 %v553
        %v621 = vpop.f32.mrf.mxu0
        %v622 = vadd.f32 %v551, %v621
        %v623 = vpop.f32.mrf.mxu0
        %624 = vdwg.mxu0
        %v625 = vmax.f32 %v622, 0.0
        %v626 = vld [vmem:[%s5] sm:$0x3]
        %v627 = vld [vmem:[%s6] sm:$0x1]
        %vm628 = vcmask 15360
        %v630 = vsel %vm628, %v625, 0
        %vm632 = vcmask 1041408
        %v634 = vsel %vm632, %v626, 0
        %636 = vmatprep.subr.mxu0 0.0
        %637 = vmatpush1.msra.mxu0 0.0
        %638 = vmatprep.subr.mxu0 0.0
        %639 = vmatpush1.msra.mxu0 0.0
        %640 = vmatprep.subr.mxu0 0.0
        %641 = vmatpush1.msra.mxu0 0.0
        %642 = vmatprep.subr.mxu0 0.0
        %643 = vmatpush1.msra.mxu0 0.0
        %644 = vmatprep.subr.mxu0 0.0
        %645 = vmatpush1.msra.mxu0 0.0
        %646 = vmatprep.subr.mxu0 0.0
        %647 = vmatpush1.msra.mxu0 0.0
        %648 = vmatprep.subr.mxu0 0.0
        %649 = vmatpush1.msra.mxu0 0.0
        %650 = vmatprep.subr.mxu0 0.0
        %651 = vmatpush1.msra.mxu0 0.0
        %652 = vmatprep.subr.mxu0 0.0
        %653 = vmatpush1.msra.mxu0 0.0
        %654 = vmatprep.subr.mxu0 0.0
        %655 = vmatpush1.msra.mxu0 0.0
        %656 = vmatprep.subr.mxu0 0.0
        %657 = vmatpush1.msra.mxu0 0.0
        %658 = vmatprep.subr.mxu0 0.0
        %659 = vmatpush1.msra.mxu0 0.0
        %660 = vmatprep.subr.mxu0 0.0
        %661 = vmatpush1.msra.mxu0 0.0
        %662 = vmatprep.subr.mxu0 0.0
        %663 = vmatpush1.msra.mxu0 0.0
        %664 = vmatprep.subr.mxu0 0.0
        %665 = vmatpush1.msra.mxu0 0.0
        %666 = vmatprep.subr.mxu0 0.0
        %667 = vmatpush1.msra.mxu0 %v634
        %668 = vmatprep.subr.mxu0 0.0
        %669 = vmatpush2.msra.mxu0 0.0
        %670 = vmatprep.subr.mxu0 0.0
        %671 = vmatpush2.msra.mxu0 0.0
        %672 = vmatprep.subr.mxu0 0.0
        %673 = vmatpush2.msra.mxu0 0.0
        %674 = vmatprep.subr.mxu0 0.0
        %675 = vmatpush2.msra.mxu0 0.0
        %676 = vmatprep.subr.mxu0 0.0
        %677 = vmatpush2.msra.mxu0 0.0
        %678 = vmatprep.subr.mxu0 0.0
        %679 = vmatpush2.msra.mxu0 0.0
        %680 = vmatprep.subr.mxu0 0.0
        %681 = vmatpush2.msra.mxu0 0.0
        %682 = vmatprep.subr.mxu0 0.0
        %683 = vmatpush2.msra.mxu0 0.0
        %684 = vmatprep.subr.mxu0 0.0
        %685 = vmatpush2.msra.mxu0 0.0
        %686 = vmatprep.subr.mxu0 0.0
        %687 = vmatpush2.msra.mxu0 0.0
        %688 = vmatprep.subr.mxu0 0.0
        %689 = vmatpush2.msra.mxu0 0.0
        %690 = vmatprep.subr.mxu0 0.0
        %691 = vmatpush2.msra.mxu0 0.0
        %692 = vmatprep.subr.mxu0 0.0
        %693 = vmatpush2.msra.mxu0 0.0
        %694 = vmatprep.subr.mxu0 0.0
        %695 = vmatpush2.msra.mxu0 0.0
        %696 = vmatprep.subr.mxu0 0.0
        %697 = vmatpush2.msra.mxu0 0.0
        %698 = vmatprep.subr.mxu0 0.0
        %699 = vmatpush2.msra.mxu0 0.0
        %700 = vmatprep.mubr.f32.mxu0 0.0
        %701 = vmatmul.mubr.f32.gmra.mxu0 %v630
        %v702 = vpop.f32.mrf.mxu0
        %v703 = vadd.f32 %v627, %v702
        %v704 = vpop.f32.mrf.mxu0
        %705 = vdwg.mxu0
        %v706 = vxor.u32 %v703, 2147483648
        %v707 = vmul.f32 %v706, 1.442695
        %v708 = vpow.pop %v707
        %v709 = vadd.f32 %v708, 1.0
        %v710 = vrcp.pop %v709
        %v711 = vmul.f32 1.0, %v710
        %712 = vst.msk [vmem:[%s353] sm:$0x1] %vm540, %v711
      $region56: #{fem_forward.4} parent=47 // pred_fallthru
        _
      %s713 = smul.u32 8, %s25
      %p714 = scmp.lt.s32.totalorder %s24, 3
      %s715 = scalar_select %p714, %s24, 3
      %p716 = scmp.lt.s32.totalorder %s713, 7
      %s717 = scalar_select %p716, %s713, 7
      %s718 = smul.addr %s715, 8
      %s719 = sadd.s32 %s717, %s718
      %s720 = smul.addr %s719, 8
      %s721 = scalar_lea.vmem %s7, %s720
      %p722 = scmp.lt.s32.totalorder %s24, 3
      %s723 = scalar_select %p722, %s24, 3
      %s724 = scalar_lea.vmem %s8, %s723
      // Predicated region
      $region57: #{fem_forward.4} parent=47 // pred_check
        %p725 = pneg %p206
      $region58: #{fem_forward.4} parent=47 // pred_check_branch
        %727 = sbr.rel (%p725) target = $region60
      $region59: #{fem_forward.4} parent=47 // pred_region
        %s728 = smul.u32 8, %s25
      $region60: #{fem_forward.4} parent=47 // pred_fallthru
        _
      // Predicated region
      $region61: #{fem_forward.4} parent=47 // pred_check
        %p729 = pneg %p232
      $region62: #{fem_forward.4} parent=47 // pred_check_branch
        %731 = sbr.rel (%p729) target = $region64
      $region63: #{fem_forward.4} parent=47 // pred_region
        _
      $region64: #{fem_forward.4} parent=47 // pred_fallthru
        _
    $region48: #{fem_forward.4} parent=5 // pred_fallthru
      _
    %p732 = scmp.le.s32.totalorder 2, %s15
    // Predicated region
    $region65: #{fem_forward.4} parent=5 // pred_check
      %p733 = pneg %p732
    $region66: #{fem_forward.4} parent=5 // pred_check_branch
      %735 = sbr.rel (%p733) target = $region68
    $region67: #{fem_forward.4} parent=5 // pred_region
      %s736 = ssub.s32 %s15, 2
      // Predicated region
      $region69: #{fem_forward.4} parent=67 // pred_check
        %p737 = pneg %p212
      $region70: #{fem_forward.4} parent=67 // pred_check_branch
        %739 = sbr.rel (%p737) target = $region72
      $region71: #{fem_forward.4} parent=67 // pred_region
        %s740 = smul.u32 8, %s27
        %p741 = scmp.lt.s32.totalorder %s26, 3
        %s742 = scalar_select %p741, %s26, 3
        %p743 = scmp.lt.s32.totalorder %s740, 7
        %s744 = scalar_select %p743, %s740, 7
        %s745 = smul.addr %s742, 8
        %s746 = sadd.s32 %s744, %s745
        %s747 = smul.addr %s746, 8
        %s748 = scalar_lea.vmem %s7, %s747
      $region72: #{fem_forward.4} parent=67 // pred_fallthru
        _
      // Predicated region
      $region73: #{fem_forward.4} parent=67 // pred_check
        %p749 = pneg %p238
      $region74: #{fem_forward.4} parent=67 // pred_check_branch
        %751 = sbr.rel (%p749) target = $region76
      $region75: #{fem_forward.4} parent=67 // pred_region
        %p752 = scmp.lt.s32.totalorder %s26, 3
        %s753 = scalar_select %p752, %s26, 3
        %s754 = scalar_lea.vmem %s8, %s753
      $region76: #{fem_forward.4} parent=67 // pred_fallthru
        _
    $region68: #{fem_forward.4} parent=5 // pred_fallthru
      _
  $region6: #{fem_forward.4} parent=0 // loop_footer
    %s19 = sadd.s32 1, %s15
  $region7: #{fem_forward.4} parent=0 // loop_footer_branch
    %14 = sbr.rel target = $region3
  $region8: #{fem_forward.4} parent=0 // loop_exit
    _

// kernel: fem_forward.3
$region0: #{fem_forward.3}
  #allocation0 [shape = 'u32[]', space=smem, size = 0x4, offset = 0x4, fixed_abs, tag = 'smem constant byte address 0x4 - core index']
  #allocation1 [shape = 'u32[144,128]{1,0:T(1,128)}', space=vmem, size = 0x12000, scoped, tag = 'internal scratch']
  #allocation2 [shape = 'f32[1,32]{1,0:T(1,128)}', space=vmem, size = 0x200, scoped, tag = 'scratch operand']
  %s0 = inlined_call_operand.vmem [shape: f32[2,64,32], index: 0, kind: input, shape index: {}]
  %s1 = inlined_call_operand.vmem [shape: f32[32,32], index: 1, kind: input, shape index: {}]
  %s2 = inlined_call_operand.vmem [shape: f32[1,32], index: 2, kind: input, shape index: {}]
  %s3 = inlined_call_operand.vmem [shape: f32[32,2], index: 3, kind: input, shape index: {}]
  %s4 = inlined_call_operand.vmem [shape: f32[1,2], index: 4, kind: input, shape index: {}]
  %s5 = inlined_call_operand.vmem [shape: f32[2,32], index: 5, kind: input, shape index: {}]
  %s6 = inlined_call_operand.vmem [shape: f32[1,32], index: 6, kind: input, shape index: {}]
  %s7 = inlined_call_operand.vmem [shape: f32[2,64,32], index: 7, kind: output, shape index: {0}]
  %s8 = inlined_call_operand.vmem [shape: f32[2,1,32], index: 8, kind: output, shape index: {1}]
  %9 = xla_tuple %s7, %s8
  %s10 = sld [smem:[#allocation0]]
  $region77: #{fem_forward.3} parent=0
    _
  %s12 = ssub.s32 1, %s10
  %s13 = scalar_select 0, %s12, %s10
  loop: start=0, step=1, limit=4
  $region2: #{fem_forward.3} parent=0 // loop_pre_header
    _
  $region3: #{fem_forward.3} parent=0 // loop_header
    %s15 = sphi 0, %s19
    %p16 = scmp.ge.s32.totalorder %s15, 4
    %s22 = sphi 0, %s34
    %s23 = sphi 0, %s30
    %s24 = sphi 0, %s22
    %s25 = sphi 0, %s23
    %s26 = sphi 0, %s24
    %s27 = sphi 0, %s25
    %s39 = sphi 0, %s41
    %s42 = sphi 0, %s39
    %s43 = sphi 0, %s42
    %s59 = sphi 0, %s43
    %s63 = sphi 0, %s63
    %s65 = sphi 0, %s63
    %s66 = sphi 0, %s65
    %s80 = sphi 0, %s66
    %s84 = sphi 0, %s84
    %s86 = sphi 0, %s84
    %s87 = sphi 0, %s86
    %s101 = sphi 0, %s87
    %s105 = sphi 0, %s105
    %s107 = sphi 0, %s105
    %s108 = sphi 0, %s107
    %s122 = sphi 0, %s108
    %s126 = sphi 0, %s126
    %s128 = sphi 0, %s126
    %s129 = sphi 0, %s128
    %s143 = sphi 0, %s129
    %s147 = sphi 0, %s147
    %s149 = sphi 0, %s147
    %s150 = sphi 0, %s149
    %s164 = sphi 0, %s150
    %s168 = sphi 0, %s168
    %s170 = sphi 0, %s168
    %s171 = sphi 0, %s170
    %s185 = sphi 0, %s171
    %s193 = sphi 0, %s195
    %s196 = sphi 0, %s193
    %s197 = sphi 0, %s196
    %s213 = sphi 0, %s197
    %s219 = sphi 0, %s221
    %s222 = sphi 0, %s219
    %s223 = sphi 0, %s222
    %s239 = sphi 0, %s223
  $region4: #{fem_forward.3} parent=0 // loop_header_branch
    %18 = sbr.rel (%p16) target = $region8
  $region5: #{fem_forward.3} parent=0 // loop_body
    %s20 = ssub.s32 %s15, 1
    %s21 = ssub.s32 %s15, 2
    %s28 = sadd.s32 1, %s23
    %p29 = scmp.ge.s32.totalorder %s28, 1
    %s30 = scalar_select %p29, 0, %s28
    %s31 = sadd.s32 1, %s22
    %s32 = scalar_select %p29, %s31, %s22
    %p33 = scmp.ge.s32.totalorder %s32, 2
    %s34 = scalar_select %p33, 0, %s32
    %s35 = ssub.s32 %s22, %s34
    %s36 = ssub.s32 %s23, %s30
    %s37 = sor.u32 %s35, %s36
    %p38 = scmp.eq.s32.totalorder %s37, 0
    %s40 = sadd.s32 %s39, 1
    %s41 = scalar_select %p38, %s39, %s40
    %p44 = pneg %p38
    %p45 = scmp.eq.s32.totalorder %s15, 1
    %p46 = por %p44, %p45
    %p47 = scmp.ne.s32.totalorder %s39, %s42
    %p48 = scmp.eq.s32.totalorder %s15, 0
    %p49 = por %p47, %p48
    %p50 = scmp.ne.s32.totalorder %s39, %s42
    %p51 = scmp.eq.s32.totalorder %s20, 1
    %p52 = por %p50, %p51
    %p53 = scmp.ne.s32.totalorder %s42, %s43
    %p54 = scmp.eq.s32.totalorder %s20, 0
    %p55 = por %p53, %p54
    %p56 = scmp.ne.s32.totalorder %s42, %s43
    %p57 = scmp.eq.s32.totalorder %s21, 1
    %p58 = por %p56, %p57
    %p60 = scmp.ne.s32.totalorder %s43, %s59
    %p61 = scmp.eq.s32.totalorder %s21, 0
    %p62 = por %p60, %p61
    %s64 = sadd.s32 %s63, 1
    %p67 = scmp.eq.s32.totalorder %s15, 1
    %p68 = scmp.ne.s32.totalorder %s63, %s65
    %p69 = scmp.eq.s32.totalorder %s15, 0
    %p70 = por %p68, %p69
    %p71 = scmp.ne.s32.totalorder %s63, %s65
    %p72 = scmp.eq.s32.totalorder %s20, 1
    %p73 = por %p71, %p72
    %p74 = scmp.ne.s32.totalorder %s65, %s66
    %p75 = scmp.eq.s32.totalorder %s20, 0
    %p76 = por %p74, %p75
    %p77 = scmp.ne.s32.totalorder %s65, %s66
    %p78 = scmp.eq.s32.totalorder %s21, 1
    %p79 = por %p77, %p78
    %p81 = scmp.ne.s32.totalorder %s66, %s80
    %p82 = scmp.eq.s32.totalorder %s21, 0
    %p83 = por %p81, %p82
    %s85 = sadd.s32 %s84, 1
    %p88 = scmp.eq.s32.totalorder %s15, 1
    %p89 = scmp.ne.s32.totalorder %s84, %s86
    %p90 = scmp.eq.s32.totalorder %s15, 0
    %p91 = por %p89, %p90
    %p92 = scmp.ne.s32.totalorder %s84, %s86
    %p93 = scmp.eq.s32.totalorder %s20, 1
    %p94 = por %p92, %p93
    %p95 = scmp.ne.s32.totalorder %s86, %s87
    %p96 = scmp.eq.s32.totalorder %s20, 0
    %p97 = por %p95, %p96
    %p98 = scmp.ne.s32.totalorder %s86, %s87
    %p99 = scmp.eq.s32.totalorder %s21, 1
    %p100 = por %p98, %p99
    %p102 = scmp.ne.s32.totalorder %s87, %s101
    %p103 = scmp.eq.s32.totalorder %s21, 0
    %p104 = por %p102, %p103
    %s106 = sadd.s32 %s105, 1
    %p109 = scmp.eq.s32.totalorder %s15, 1
    %p110 = scmp.ne.s32.totalorder %s105, %s107
    %p111 = scmp.eq.s32.totalorder %s15, 0
    %p112 = por %p110, %p111
    %p113 = scmp.ne.s32.totalorder %s105, %s107
    %p114 = scmp.eq.s32.totalorder %s20, 1
    %p115 = por %p113, %p114
    %p116 = scmp.ne.s32.totalorder %s107, %s108
    %p117 = scmp.eq.s32.totalorder %s20, 0
    %p118 = por %p116, %p117
    %p119 = scmp.ne.s32.totalorder %s107, %s108
    %p120 = scmp.eq.s32.totalorder %s21, 1
    %p121 = por %p119, %p120
    %p123 = scmp.ne.s32.totalorder %s108, %s122
    %p124 = scmp.eq.s32.totalorder %s21, 0
    %p125 = por %p123, %p124
    %s127 = sadd.s32 %s126, 1
    %p130 = scmp.eq.s32.totalorder %s15, 1
    %p131 = scmp.ne.s32.totalorder %s126, %s128
    %p132 = scmp.eq.s32.totalorder %s15, 0
    %p133 = por %p131, %p132
    %p134 = scmp.ne.s32.totalorder %s126, %s128
    %p135 = scmp.eq.s32.totalorder %s20, 1
    %p136 = por %p134, %p135
    %p137 = scmp.ne.s32.totalorder %s128, %s129
    %p138 = scmp.eq.s32.totalorder %s20, 0
    %p139 = por %p137, %p138
    %p140 = scmp.ne.s32.totalorder %s128, %s129
    %p141 = scmp.eq.s32.totalorder %s21, 1
    %p142 = por %p140, %p141
    %p144 = scmp.ne.s32.totalorder %s129, %s143
    %p145 = scmp.eq.s32.totalorder %s21, 0
    %p146 = por %p144, %p145
    %s148 = sadd.s32 %s147, 1
    %p151 = scmp.eq.s32.totalorder %s15, 1
    %p152 = scmp.ne.s32.totalorder %s147, %s149
    %p153 = scmp.eq.s32.totalorder %s15, 0
    %p154 = por %p152, %p153
    %p155 = scmp.ne.s32.totalorder %s147, %s149
    %p156 = scmp.eq.s32.totalorder %s20, 1
    %p157 = por %p155, %p156
    %p158 = scmp.ne.s32.totalorder %s149, %s150
    %p159 = scmp.eq.s32.totalorder %s20, 0
    %p160 = por %p158, %p159
    %p161 = scmp.ne.s32.totalorder %s149, %s150
    %p162 = scmp.eq.s32.totalorder %s21, 1
    %p163 = por %p161, %p162
    %p165 = scmp.ne.s32.totalorder %s150, %s164
    %p166 = scmp.eq.s32.totalorder %s21, 0
    %p167 = por %p165, %p166
    %s169 = sadd.s32 %s168, 1
    %p172 = scmp.eq.s32.totalorder %s15, 1
    %p173 = scmp.ne.s32.totalorder %s168, %s170
    %p174 = scmp.eq.s32.totalorder %s15, 0
    %p175 = por %p173, %p174
    %p176 = scmp.ne.s32.totalorder %s168, %s170
    %p177 = scmp.eq.s32.totalorder %s20, 1
    %p178 = por %p176, %p177
    %p179 = scmp.ne.s32.totalorder %s170, %s171
    %p180 = scmp.eq.s32.totalorder %s20, 0
    %p181 = por %p179, %p180
    %p182 = scmp.ne.s32.totalorder %s170, %s171
    %p183 = scmp.eq.s32.totalorder %s21, 1
    %p184 = por %p182, %p183
    %p186 = scmp.ne.s32.totalorder %s171, %s185
    %p187 = scmp.eq.s32.totalorder %s21, 0
    %p188 = por %p186, %p187
    %s189 = ssub.s32 %s22, %s34
    %s190 = ssub.s32 %s23, %s30
    %s191 = sor.u32 %s189, %s190
    %p192 = scmp.eq.s32.totalorder %s191, 0
    %s194 = sadd.s32 %s193, 1
    %s195 = scalar_select %p192, %s193, %s194
    %p198 = pneg %p192
    %p199 = scmp.eq.s32.totalorder %s15, 1
    %p200 = por %p198, %p199
    %p201 = scmp.ne.s32.totalorder %s193, %s196
    %p202 = scmp.eq.s32.totalorder %s15, 0
    %p203 = por %p201, %p202
    %p204 = scmp.ne.s32.totalorder %s193, %s196
    %p205 = scmp.eq.s32.totalorder %s20, 1
    %p206 = por %p204, %p205
    %p207 = scmp.ne.s32.totalorder %s196, %s197
    %p208 = scmp.eq.s32.totalorder %s20, 0
    %p209 = por %p207, %p208
    %p210 = scmp.ne.s32.totalorder %s196, %s197
    %p211 = scmp.eq.s32.totalorder %s21, 1
    %p212 = por %p210, %p211
    %p214 = scmp.ne.s32.totalorder %s197, %s213
    %p215 = scmp.eq.s32.totalorder %s21, 0
    %p216 = por %p214, %p215
    %s217 = ssub.s32 %s22, %s34
    %p218 = scmp.eq.s32.totalorder %s217, 0
    %s220 = sadd.s32 %s219, 1
    %s221 = scalar_select %p218, %s219, %s220
    %p224 = pneg %p218
    %p225 = scmp.eq.s32.totalorder %s15, 1
    %p226 = por %p224, %p225
    %p227 = scmp.ne.s32.totalorder %s219, %s222
    %p228 = scmp.eq.s32.totalorder %s15, 0
    %p229 = por %p227, %p228
    %p230 = scmp.ne.s32.totalorder %s219, %s222
    %p231 = scmp.eq.s32.totalorder %s20, 1
    %p232 = por %p230, %p231
    %p233 = scmp.ne.s32.totalorder %s222, %s223
    %p234 = scmp.eq.s32.totalorder %s20, 0
    %p235 = por %p233, %p234
    %p236 = scmp.ne.s32.totalorder %s222, %s223
    %p237 = scmp.eq.s32.totalorder %s21, 1
    %p238 = por %p236, %p237
    %p240 = scmp.ne.s32.totalorder %s223, %s239
    %p241 = scmp.eq.s32.totalorder %s21, 0
    %p242 = por %p240, %p241
    %p243 = scmp.le.s32.totalorder 1, %s15
    %p244 = scmp.lt.s32.totalorder %s15, 3
    %p245 = pnand %p243, %p244
    %p246 = pneg %p245
    // Predicated region
    $region9: #{fem_forward.3} parent=5 // pred_check
      _
    $region10: #{fem_forward.3} parent=5 // pred_check_branch
      %248 = sbr.rel (%p245) target = $region12
    $region11: #{fem_forward.3} parent=5 // pred_region
      %s249 = ssub.s32 %s15, 1
      // Predicated region
      $region13: #{fem_forward.3} parent=11 // pred_check
        %p250 = pneg %p76
      $region14: #{fem_forward.3} parent=11 // pred_check_branch
        %252 = sbr.rel (%p250) target = $region16
      $region15: #{fem_forward.3} parent=11 // pred_region
        _
      $region16: #{fem_forward.3} parent=11 // pred_fallthru
        _
      // Predicated region
      $region17: #{fem_forward.3} parent=11 // pred_check
        %p253 = pneg %p97
      $region18: #{fem_forward.3} parent=11 // pred_check_branch
        %255 = sbr.rel (%p253) target = $region20
      $region19: #{fem_forward.3} parent=11 // pred_region
        _
      $region20: #{fem_forward.3} parent=11 // pred_fallthru
        _
      // Predicated region
      $region21: #{fem_forward.3} parent=11 // pred_check
        %p256 = pneg %p118
      $region22: #{fem_forward.3} parent=11 // pred_check_branch
        %258 = sbr.rel (%p256) target = $region24
      $region23: #{fem_forward.3} parent=11 // pred_region
        _
      $region24: #{fem_forward.3} parent=11 // pred_fallthru
        _
      // Predicated region
      $region25: #{fem_forward.3} parent=11 // pred_check
        %p259 = pneg %p139
      $region26: #{fem_forward.3} parent=11 // pred_check_branch
        %261 = sbr.rel (%p259) target = $region28
      $region27: #{fem_forward.3} parent=11 // pred_region
        _
      $region28: #{fem_forward.3} parent=11 // pred_fallthru
        _
      // Predicated region
      $region29: #{fem_forward.3} parent=11 // pred_check
        %p262 = pneg %p160
      $region30: #{fem_forward.3} parent=11 // pred_check_branch
        %264 = sbr.rel (%p262) target = $region32
      $region31: #{fem_forward.3} parent=11 // pred_region
        _
      $region32: #{fem_forward.3} parent=11 // pred_fallthru
        _
      // Predicated region
      $region33: #{fem_forward.3} parent=11 // pred_check
        %p265 = pneg %p181
      $region34: #{fem_forward.3} parent=11 // pred_check_branch
        %267 = sbr.rel (%p265) target = $region36
      $region35: #{fem_forward.3} parent=11 // pred_region
        _
      $region36: #{fem_forward.3} parent=11 // pred_fallthru
        _
    $region12: #{fem_forward.3} parent=5 // pred_fallthru
      _
    %p268 = scmp.lt.s32.totalorder %s15, 2
    // Predicated region
    $region37: #{fem_forward.3} parent=5 // pred_check
      %p269 = pneg %p268
    $region38: #{fem_forward.3} parent=5 // pred_check_branch
      %271 = sbr.rel (%p269) target = $region40
    $region39: #{fem_forward.3} parent=5 // pred_region
      // Predicated region
      $region41: #{fem_forward.3} parent=39 // pred_check
        %p272 = pneg %p49
      $region42: #{fem_forward.3} parent=39 // pred_check_branch
        %274 = sbr.rel (%p272) target = $region44
      $region43: #{fem_forward.3} parent=39 // pred_region
        %s275 = smul.u32 8, %s23
        %p276 = scmp.lt.s32.totalorder %s22, 1
        %s277 = scalar_select %p276, %s22, 1
        %p278 = scmp.lt.s32.totalorder %s275, 7
        %s279 = scalar_select %p278, %s275, 7
        %s280 = smul.addr %s277, 8
        %s281 = sadd.s32 %s279, %s280
        %s282 = smul.addr %s281, 8
        %s283 = scalar_lea.vmem %s0, %s282
        %s284 = smul.u32 8, %s23
      $region44: #{fem_forward.3} parent=39 // pred_fallthru
        _
    $region40: #{fem_forward.3} parent=5 // pred_fallthru
      _
    %p285 = scmp.le.s32.totalorder 1, %s15
    %p286 = scmp.lt.s32.totalorder %s15, 3
    %p287 = pnand %p285, %p286
    %p288 = pneg %p287
    // Predicated region
    $region45: #{fem_forward.3} parent=5 // pred_check
      _
    $region46: #{fem_forward.3} parent=5 // pred_check_branch
      %290 = sbr.rel (%p287) target = $region48
    $region47: #{fem_forward.3} parent=5 // pred_region
      %s291 = ssub.s32 %s15, 1
      %s292 = smul.u32 8, %s25
      %p293 = scmp.lt.s32.totalorder %s24, 1
      %s294 = scalar_select %p293, %s24, 1
      %p295 = scmp.lt.s32.totalorder %s292, 7
      %s296 = scalar_select %p295, %s292, 7
      %s297 = smul.addr %s294, 8
      %s298 = sadd.s32 %s296, %s297
      %s299 = smul.addr %s298, 8
      %s300 = scalar_lea.vmem %s0, %s299
      %p301 = pneg %p55
      %p302 = pneg %p52
      %p303 = pneg %p76
      %p304 = pneg %p73
      %p305 = pneg %p97
      %p306 = pneg %p94
      %p307 = pneg %p118
      %p308 = pneg %p115
      %p309 = pneg %p139
      %p310 = pneg %p136
      %p311 = pneg %p160
      %p312 = pneg %p157
      %p313 = pneg %p181
      %p314 = pneg %p178
      %p315 = pneg %p209
      %p316 = pneg %p206
      %s317 = smul.u32 8, %s25
      %p318 = scmp.lt.s32.totalorder %s24, 1
      %s319 = scalar_select %p318, %s24, 1
      %p320 = scmp.lt.s32.totalorder %s317, 7
      %s321 = scalar_select %p320, %s317, 7
      %s322 = smul.addr %s319, 8
      %s323 = sadd.s32 %s321, %s322
      %s324 = smul.addr %s323, 8
      %s325 = scalar_lea.vmem %s7, %s324
      %p326 = pneg %p235
      %p327 = pneg %p232
      %p328 = scmp.lt.s32.totalorder %s24, 1
      %s329 = scalar_select %p328, %s24, 1
      %s330 = scalar_lea.vmem %s8, %s329
      %s331 = smul.u32 8, %s25
      %p332 = scmp.lt.s32.totalorder %s24, 1
      %s333 = scalar_select %p332, %s24, 1
      %p334 = scmp.lt.s32.totalorder %s331, 7
      %s335 = scalar_select %p334, %s331, 7
      %s336 = smul.addr %s333, 8
      %s337 = sadd.s32 %s335, %s336
      %s338 = smul.addr %s337, 8
      %s339 = scalar_lea.vmem %s0, %s338
      %s340 = smul.u32 8, %s25
      %s341 = smul.u32 8, %s25
      %p342 = scmp.lt.s32.totalorder %s24, 1
      %s343 = scalar_select %p342, %s24, 1
      %p344 = scmp.lt.s32.totalorder %s341, 7
      %s345 = scalar_select %p344, %s341, 7
      %s346 = smul.addr %s343, 8
      %s347 = sadd.s32 %s345, %s346
      %s348 = smul.addr %s347, 8
      %s349 = scalar_lea.vmem %s7, %s348
      %s350 = smul.u32 8, %s25
      %p351 = scmp.lt.s32.totalorder %s24, 1
      %s352 = scalar_select %p351, %s24, 1
      %s353 = scalar_lea.vmem %s8, %s352
      %v354 = vld [vmem:[%s339] sm:$0xff]
      %v355 = vld [vmem:[%s339 + $0x8] sm:$0xff]
      %v356 = vld [vmem:[%s339 + $0x10] sm:$0xff]
      %v357 = vld [vmem:[%s339 + $0x18] sm:$0xff]
      %v358 = vld [vmem:[%s339 + $0x20] sm:$0xff]
      %v359 = vld [vmem:[%s339 + $0x28] sm:$0xff]
      %v360 = vld [vmem:[%s339 + $0x30] sm:$0xff]
      %v361 = vld [vmem:[%s339 + $0x38] sm:$0xff]
      %v362 = vld [vmem:[%s1] sm:$0xff]
      %v363 = vld [vmem:[%s1 + $0x8] sm:$0xff]
      %v364 = vld [vmem:[%s1 + $0x10] sm:$0xff]
      %v365 = vld [vmem:[%s1 + $0x18] sm:$0xff]
      %v366 = vld [vmem:[%s2] sm:$0x1]
      %v368 = vlaneseq
      %v369 = vshrl.u32 %v368, 7
      %v370 = vsub.s32 0, %v369
      %v371 = vrot.slane %v366, %v370
      %vm373 = vcmask 261120
      %v375 = vsel %vm373, %v354, 0
      %v378 = vsel %vm373, %v355, 0
      %v381 = vsel %vm373, %v356, 0
      %v384 = vsel %vm373, %v357, 0
      %v387 = vsel %vm373, %v358, 0
      %v390 = vsel %vm373, %v359, 0
      %v393 = vsel %vm373, %v360, 0
      %v396 = vsel %vm373, %v361, 0
      %398 = vmatprep.subr.mxu0 0.0
      %399 = vmatpush1.msra.mxu0 0.0
      %400 = vmatprep.subr.mxu0 0.0
      %401 = vmatpush1.msra.mxu0 0.0
      %402 = vmatprep.subr.mxu0 0.0
      %403 = vmatpush1.msra.mxu0 0.0
      %404 = vmatprep.subr.mxu0 0.0
      %405 = vmatpush1.msra.mxu0 0.0
      %406 = vmatprep.subr.mxu0 0.0
      %407 = vmatpush1.msra.mxu0 0.0
      %408 = vmatprep.subr.mxu0 0.0
      %409 = vmatpush1.msra.mxu0 0.0
      %410 = vmatprep.subr.mxu0 0.0
      %411 = vmatpush1.msra.mxu0 0.0
      %412 = vmatprep.subr.mxu0 0.0
      %413 = vmatpush1.msra.mxu0 0.0
      %414 = vmatprep.subr.mxu0 0.0
      %415 = vmatpush1.msra.mxu0 0.0
      %416 = vmatprep.subr.mxu0 0.0
      %417 = vmatpush1.msra.mxu0 0.0
      %418 = vmatprep.subr.mxu0 0.0
      %419 = vmatpush1.msra.mxu0 0.0
      %420 = vmatprep.subr.mxu0 0.0
      %421 = vmatpush1.msra.mxu0 0.0
      %422 = vmatprep.subr.mxu0 0.0
      %423 = vmatpush1.msra.mxu0 %v365
      %424 = vmatprep.subr.mxu0 0.0
      %425 = vmatpush1.msra.mxu0 %v364
      %426 = vmatprep.subr.mxu0 0.0
      %427 = vmatpush1.msra.mxu0 %v363
      %428 = vmatprep.subr.mxu0 0.0
      %429 = vmatpush1.msra.mxu0 %v362
      %430 = vmatprep.subr.mxu0 0.0
      %431 = vmatpush2.msra.mxu0 0.0
      %432 = vmatprep.subr.mxu0 0.0
      %433 = vmatpush2.msra.mxu0 0.0
      %434 = vmatprep.subr.mxu0 0.0
      %435 = vmatpush2.msra.mxu0 0.0
      %436 = vmatprep.subr.mxu0 0.0
      %437 = vmatpush2.msra.mxu0 0.0
      %438 = vmatprep.subr.mxu0 0.0
      %439 = vmatpush2.msra.mxu0 0.0
      %440 = vmatprep.subr.mxu0 0.0
      %441 = vmatpush2.msra.mxu0 0.0
      %442 = vmatprep.subr.mxu0 0.0
      %443 = vmatpush2.msra.mxu0 0.0
      %444 = vmatprep.subr.mxu0 0.0
      %445 = vmatpush2.msra.mxu0 0.0
      %446 = vmatprep.subr.mxu0 0.0
      %447 = vmatpush2.msra.mxu0 0.0
      %448 = vmatprep.subr.mxu0 0.0
      %449 = vmatpush2.msra.mxu0 0.0
      %450 = vmatprep.subr.mxu0 0.0
      %451 = vmatpush2.msra.mxu0 0.0
      %452 = vmatprep.subr.mxu0 0.0
      %453 = vmatpush2.msra.mxu0 0.0
      %454 = vmatprep.subr.mxu0 0.0
      %455 = vmatpush2.msra.mxu0 0.0
      %456 = vmatprep.subr.mxu0 0.0
      %457 = vmatpush2.msra.mxu0 0.0
      %458 = vmatprep.subr.mxu0 0.0
      %459 = vmatpush2.msra.mxu0 0.0
      %460 = vmatprep.subr.mxu0 0.0
      %461 = vmatpush2.msra.mxu0 0.0
      %462 = vmatprep.mubr.f32.mxu0 0.0
      %463 = vmatmul.mubr.f32.gmra.mxu0 %v375
      %v464 = vpop.f32.mrf.mxu0
      %v465 = vadd.f32 %v371, %v464
      %v466 = vpop.f32.mrf.mxu0
      %467 = vmatprep.mubr.f32.mxu0 0.0
      %468 = vmatmul.mubr.f32.gmra.mxu0 %v378
      %v469 = vpop.f32.mrf.mxu0
      %v470 = vadd.f32 %v371, %v469
      %v471 = vpop.f32.mrf.mxu0
      %472 = vmatprep.mubr.f32.mxu0 0.0
      %473 = vmatmul.mubr.f32.gmra.mxu0 %v381
      %v474 = vpop.f32.mrf.mxu0
      %v475 = vadd.f32 %v371, %v474
      %v476 = vpop.f32.mrf.mxu0
      %477 = vmatprep.mubr.f32.mxu0 0.0
      %478 = vmatmul.mubr.f32.gmra.mxu0 %v384
      %v479 = vpop.f32.mrf.mxu0
      %v480 = vadd.f32 %v371, %v479
      %v481 = vpop.f32.mrf.mxu0
      %482 = vmatprep.mubr.f32.mxu0 0.0
      %483 = vmatmul.mubr.f32.gmra.mxu0 %v387
      %v484 = vpop.f32.mrf.mxu0
      %v485 = vadd.f32 %v371, %v484
      %v486 = vpop.f32.mrf.mxu0
      %487 = vmatprep.mubr.f32.mxu0 0.0
      %488 = vmatmul.mubr.f32.gmra.mxu0 %v390
      %v489 = vpop.f32.mrf.mxu0
      %v490 = vadd.f32 %v371, %v489
      %v491 = vpop.f32.mrf.mxu0
      %492 = vmatprep.mubr.f32.mxu0 0.0
      %493 = vmatmul.mubr.f32.gmra.mxu0 %v393
      %v494 = vpop.f32.mrf.mxu0
      %v495 = vadd.f32 %v371, %v494
      %v496 = vpop.f32.mrf.mxu0
      %497 = vmatprep.mubr.f32.mxu0 0.0
      %498 = vmatmul.mubr.f32.gmra.mxu0 %v396
      %v499 = vpop.f32.mrf.mxu0
      %v500 = vadd.f32 %v371, %v499
      %v501 = vpop.f32.mrf.mxu0
      %502 = vdwg.mxu0
      %503 = vst.msk [vmem:[%s349] sm:$0xff] %vm373, %v465
      %504 = vst.msk [vmem:[%s349 + $0x8] sm:$0xff] %vm373, %v470
      %505 = vst.msk [vmem:[%s349 + $0x10] sm:$0xff] %vm373, %v475
      %506 = vst.msk [vmem:[%s349 + $0x18] sm:$0xff] %vm373, %v480
      %507 = vst.msk [vmem:[%s349 + $0x20] sm:$0xff] %vm373, %v485
      %508 = vst.msk [vmem:[%s349 + $0x28] sm:$0xff] %vm373, %v490
      %509 = vst.msk [vmem:[%s349 + $0x30] sm:$0xff] %vm373, %v495
      %510 = vst.msk [vmem:[%s349 + $0x38] sm:$0xff] %vm373, %v500
      %p511 = scmp.eq.s32.totalorder %s25, 0
      // Predicated region
      $region49: #{fem_forward.3} parent=47 // pred_check
        %p512 = pneg %p511
      $region50: #{fem_forward.3} parent=47 // pred_check_branch
        %514 = sbr.rel (%p512) target = $region52
      $region51: #{fem_forward.3} parent=47 // pred_region
        %vm515 = vcmask 253952
        %516 = vst.msk [vmem:[#allocation2] sm:$0x1] %vm515, 0.0
      $region52: #{fem_forward.3} parent=47 // pred_fallthru
        _
      %v517 = vld [vmem:[#allocation2] sm:$0x1]
      %v518 = vsel %vm373, %v354, 0.0
      %v519 = vsel %vm373, %v355, 0.0
      %v520 = vadd.f32 %v518, %v519
      %v521 = vsel %vm373, %v356, 0.0
      %v522 = vadd.f32 %v520, %v521
      %v523 = vsel %vm373, %v357, 0.0
      %v524 = vadd.f32 %v522, %v523
      %v525 = vsel %vm373, %v358, 0.0
      %v526 = vadd.f32 %v524, %v525
      %v527 = vsel %vm373, %v359, 0.0
      %v528 = vadd.f32 %v526, %v527
      %v529 = vsel %vm373, %v360, 0.0
      %v530 = vadd.f32 %v528, %v529
      %v531 = vsel %vm373, %v361, 0.0
      %v532 = vadd.f32 %v530, %v531
      %v533 = vrot.slane %v532, 4
      %v534 = vadd.f32 %v532, %v533
      %v535 = vrot.slane %v534, 2
      %v536 = vadd.f32 %v534, %v535
      %v537 = vrot.slane %v536, 1
      %v538 = vadd.f32 %v536, %v537
      %v539 = vadd.f32 %v517, %v538
      %vm540 = vcmask 253952
      %541 = vst.msk [vmem:[#allocation2] sm:$0x1] %vm540, %v539
      // Predicated region
      $region53: #{fem_forward.3} parent=47 // pred_check
        %p542 = pneg %p511
      $region54: #{fem_forward.3} parent=47 // pred_check_branch
        %544 = sbr.rel (%p542) target = $region56
      $region55: #{fem_forward.3} parent=47 // pred_region
        %v545 = vld [vmem:[#allocation2] sm:$0x1]
        %v546 = vmul.f32 %v545, 0.015625
        %v547 = vld [vmem:[%s3] sm:$0xff]
        %v548 = vld [vmem:[%s3 + $0x8] sm:$0xff]
        %v549 = vld [vmem:[%s3 + $0x10] sm:$0xff]
        %v550 = vld [vmem:[%s3 + $0x18] sm:$0xff]
        %v551 = vld [vmem:[%s4] sm:$0x1]
        %v553 = vsel %vm373, %v546, 0
        %555 = vmatprep.subr.mxu0 0.0
        %556 = vmatpush1.msra.mxu0 0.0
        %557 = vmatprep.subr.mxu0 0.0
        %558 = vmatpush1.msra.mxu0 0.0
        %559 = vmatprep.subr.mxu0 0.0
        %560 = vmatpush1.msra.mxu0 0.0
        %561 = vmatprep.subr.mxu0 0.0
        %562 = vmatpush1.msra.mxu0 0.0
        %563 = vmatprep.subr.mxu0 0.0
        %564 = vmatpush1.msra.mxu0 0.0
        %565 = vmatprep.subr.mxu0 0.0
        %566 = vmatpush1.msra.mxu0 0.0
        %567 = vmatprep.subr.mxu0 0.0
        %568 = vmatpush1.msra.mxu0 0.0
        %569 = vmatprep.subr.mxu0 0.0
        %570 = vmatpush1.msra.mxu0 0.0
        %571 = vmatprep.subr.mxu0 0.0
        %572 = vmatpush1.msra.mxu0 0.0
        %573 = vmatprep.subr.mxu0 0.0
        %574 = vmatpush1.msra.mxu0 0.0
        %575 = vmatprep.subr.mxu0 0.0
        %576 = vmatpush1.msra.mxu0 0.0
        %577 = vmatprep.subr.mxu0 0.0
        %578 = vmatpush1.msra.mxu0 0.0
        %579 = vmatprep.subr.mxu0 0.0
        %580 = vmatpush1.msra.mxu0 %v550
        %581 = vmatprep.subr.mxu0 0.0
        %582 = vmatpush1.msra.mxu0 %v549
        %583 = vmatprep.subr.mxu0 0.0
        %584 = vmatpush1.msra.mxu0 %v548
        %585 = vmatprep.subr.mxu0 0.0
        %586 = vmatpush1.msra.mxu0 %v547
        %587 = vmatprep.subr.mxu0 0.0
        %588 = vmatpush2.msra.mxu0 0.0
        %589 = vmatprep.subr.mxu0 0.0
        %590 = vmatpush2.msra.mxu0 0.0
        %591 = vmatprep.subr.mxu0 0.0
        %592 = vmatpush2.msra.mxu0 0.0
        %593 = vmatprep.subr.mxu0 0.0
        %594 = vmatpush2.msra.mxu0 0.0
        %595 = vmatprep.subr.mxu0 0.0
        %596 = vmatpush2.msra.mxu0 0.0
        %597 = vmatprep.subr.mxu0 0.0
        %598 = vmatpush2.msra.mxu0 0.0
        %599 = vmatprep.subr.mxu0 0.0
        %600 = vmatpush2.msra.mxu0 0.0
        %601 = vmatprep.subr.mxu0 0.0
        %602 = vmatpush2.msra.mxu0 0.0
        %603 = vmatprep.subr.mxu0 0.0
        %604 = vmatpush2.msra.mxu0 0.0
        %605 = vmatprep.subr.mxu0 0.0
        %606 = vmatpush2.msra.mxu0 0.0
        %607 = vmatprep.subr.mxu0 0.0
        %608 = vmatpush2.msra.mxu0 0.0
        %609 = vmatprep.subr.mxu0 0.0
        %610 = vmatpush2.msra.mxu0 0.0
        %611 = vmatprep.subr.mxu0 0.0
        %612 = vmatpush2.msra.mxu0 0.0
        %613 = vmatprep.subr.mxu0 0.0
        %614 = vmatpush2.msra.mxu0 0.0
        %615 = vmatprep.subr.mxu0 0.0
        %616 = vmatpush2.msra.mxu0 0.0
        %617 = vmatprep.subr.mxu0 0.0
        %618 = vmatpush2.msra.mxu0 0.0
        %619 = vmatprep.mubr.f32.mxu0 0.0
        %620 = vmatmul.mubr.f32.gmra.mxu0 %v553
        %v621 = vpop.f32.mrf.mxu0
        %v622 = vadd.f32 %v551, %v621
        %v623 = vpop.f32.mrf.mxu0
        %624 = vdwg.mxu0
        %v625 = vmax.f32 %v622, 0.0
        %v626 = vld [vmem:[%s5] sm:$0x3]
        %v627 = vld [vmem:[%s6] sm:$0x1]
        %vm628 = vcmask 15360
        %v630 = vsel %vm628, %v625, 0
        %vm632 = vcmask 1041408
        %v634 = vsel %vm632, %v626, 0
        %636 = vmatprep.subr.mxu0 0.0
        %637 = vmatpush1.msra.mxu0 0.0
        %638 = vmatprep.subr.mxu0 0.0
        %639 = vmatpush1.msra.mxu0 0.0
        %640 = vmatprep.subr.mxu0 0.0
        %641 = vmatpush1.msra.mxu0 0.0
        %642 = vmatprep.subr.mxu0 0.0
        %643 = vmatpush1.msra.mxu0 0.0
        %644 = vmatprep.subr.mxu0 0.0
        %645 = vmatpush1.msra.mxu0 0.0
        %646 = vmatprep.subr.mxu0 0.0
        %647 = vmatpush1.msra.mxu0 0.0
        %648 = vmatprep.subr.mxu0 0.0
        %649 = vmatpush1.msra.mxu0 0.0
        %650 = vmatprep.subr.mxu0 0.0
        %651 = vmatpush1.msra.mxu0 0.0
        %652 = vmatprep.subr.mxu0 0.0
        %653 = vmatpush1.msra.mxu0 0.0
        %654 = vmatprep.subr.mxu0 0.0
        %655 = vmatpush1.msra.mxu0 0.0
        %656 = vmatprep.subr.mxu0 0.0
        %657 = vmatpush1.msra.mxu0 0.0
        %658 = vmatprep.subr.mxu0 0.0
        %659 = vmatpush1.msra.mxu0 0.0
        %660 = vmatprep.subr.mxu0 0.0
        %661 = vmatpush1.msra.mxu0 0.0
        %662 = vmatprep.subr.mxu0 0.0
        %663 = vmatpush1.msra.mxu0 0.0
        %664 = vmatprep.subr.mxu0 0.0
        %665 = vmatpush1.msra.mxu0 0.0
        %666 = vmatprep.subr.mxu0 0.0
        %667 = vmatpush1.msra.mxu0 %v634
        %668 = vmatprep.subr.mxu0 0.0
        %669 = vmatpush2.msra.mxu0 0.0
        %670 = vmatprep.subr.mxu0 0.0
        %671 = vmatpush2.msra.mxu0 0.0
        %672 = vmatprep.subr.mxu0 0.0
        %673 = vmatpush2.msra.mxu0 0.0
        %674 = vmatprep.subr.mxu0 0.0
        %675 = vmatpush2.msra.mxu0 0.0
        %676 = vmatprep.subr.mxu0 0.0
        %677 = vmatpush2.msra.mxu0 0.0
        %678 = vmatprep.subr.mxu0 0.0
        %679 = vmatpush2.msra.mxu0 0.0
        %680 = vmatprep.subr.mxu0 0.0
        %681 = vmatpush2.msra.mxu0 0.0
        %682 = vmatprep.subr.mxu0 0.0
        %683 = vmatpush2.msra.mxu0 0.0
        %684 = vmatprep.subr.mxu0 0.0
        %685 = vmatpush2.msra.mxu0 0.0
        %686 = vmatprep.subr.mxu0 0.0
        %687 = vmatpush2.msra.mxu0 0.0
        %688 = vmatprep.subr.mxu0 0.0
        %689 = vmatpush2.msra.mxu0 0.0
        %690 = vmatprep.subr.mxu0 0.0
        %691 = vmatpush2.msra.mxu0 0.0
        %692 = vmatprep.subr.mxu0 0.0
        %693 = vmatpush2.msra.mxu0 0.0
        %694 = vmatprep.subr.mxu0 0.0
        %695 = vmatpush2.msra.mxu0 0.0
        %696 = vmatprep.subr.mxu0 0.0
        %697 = vmatpush2.msra.mxu0 0.0
        %698 = vmatprep.subr.mxu0 0.0
        %699 = vmatpush2.msra.mxu0 0.0
        %700 = vmatprep.mubr.f32.mxu0 0.0
        %701 = vmatmul.mubr.f32.gmra.mxu0 %v630
        %v702 = vpop.f32.mrf.mxu0
        %v703 = vadd.f32 %v627, %v702
        %v704 = vpop.f32.mrf.mxu0
        %705 = vdwg.mxu0
        %v706 = vxor.u32 %v703, 2147483648
        %v707 = vmul.f32 %v706, 1.442695
        %v708 = vpow.pop %v707
        %v709 = vadd.f32 %v708, 1.0
        %v710 = vrcp.pop %v709
        %v711 = vmul.f32 1.0, %v710
        %712 = vst.msk [vmem:[%s353] sm:$0x1] %vm540, %v711
      $region56: #{fem_forward.3} parent=47 // pred_fallthru
        _
      %s713 = smul.u32 8, %s25
      %p714 = scmp.lt.s32.totalorder %s24, 1
      %s715 = scalar_select %p714, %s24, 1
      %p716 = scmp.lt.s32.totalorder %s713, 7
      %s717 = scalar_select %p716, %s713, 7
      %s718 = smul.addr %s715, 8
      %s719 = sadd.s32 %s717, %s718
      %s720 = smul.addr %s719, 8
      %s721 = scalar_lea.vmem %s7, %s720
      %p722 = scmp.lt.s32.totalorder %s24, 1
      %s723 = scalar_select %p722, %s24, 1
      %s724 = scalar_lea.vmem %s8, %s723
      // Predicated region
      $region57: #{fem_forward.3} parent=47 // pred_check
        %p725 = pneg %p206
      $region58: #{fem_forward.3} parent=47 // pred_check_branch
        %727 = sbr.rel (%p725) target = $region60
      $region59: #{fem_forward.3} parent=47 // pred_region
        %s728 = smul.u32 8, %s25
      $region60: #{fem_forward.3} parent=47 // pred_fallthru
        _
      // Predicated region
      $region61: #{fem_forward.3} parent=47 // pred_check
        %p729 = pneg %p232
      $region62: #{fem_forward.3} parent=47 // pred_check_branch
        %731 = sbr.rel (%p729) target = $region64
      $region63: #{fem_forward.3} parent=47 // pred_region
        _
      $region64: #{fem_forward.3} parent=47 // pred_fallthru
        _
    $region48: #{fem_forward.3} parent=5 // pred_fallthru
      _
    %p732 = scmp.le.s32.totalorder 2, %s15
    // Predicated region
    $region65: #{fem_forward.3} parent=5 // pred_check
      %p733 = pneg %p732
    $region66: #{fem_forward.3} parent=5 // pred_check_branch
      %735 = sbr.rel (%p733) target = $region68
    $region67: #{fem_forward.3} parent=5 // pred_region
      %s736 = ssub.s32 %s15, 2
      // Predicated region
      $region69: #{fem_forward.3} parent=67 // pred_check
        %p737 = pneg %p212
      $region70: #{fem_forward.3} parent=67 // pred_check_branch
        %739 = sbr.rel (%p737) target = $region72
      $region71: #{fem_forward.3} parent=67 // pred_region
        %s740 = smul.u32 8, %s27
        %p741 = scmp.lt.s32.totalorder %s26, 1
        %s742 = scalar_select %p741, %s26, 1
        %p743 = scmp.lt.s32.totalorder %s740, 7
        %s744 = scalar_select %p743, %s740, 7
        %s745 = smul.addr %s742, 8
        %s746 = sadd.s32 %s744, %s745
        %s747 = smul.addr %s746, 8
        %s748 = scalar_lea.vmem %s7, %s747
      $region72: #{fem_forward.3} parent=67 // pred_fallthru
        _
      // Predicated region
      $region73: #{fem_forward.3} parent=67 // pred_check
        %p749 = pneg %p238
      $region74: #{fem_forward.3} parent=67 // pred_check_branch
        %751 = sbr.rel (%p749) target = $region76
      $region75: #{fem_forward.3} parent=67 // pred_region
        %p752 = scmp.lt.s32.totalorder %s26, 1
        %s753 = scalar_select %p752, %s26, 1
        %s754 = scalar_lea.vmem %s8, %s753
      $region76: #{fem_forward.3} parent=67 // pred_fallthru
        _
    $region68: #{fem_forward.3} parent=5 // pred_fallthru
      _
  $region6: #{fem_forward.3} parent=0 // loop_footer
    %s19 = sadd.s32 1, %s15
  $region7: #{fem_forward.3} parent=0 // loop_footer_branch
    %14 = sbr.rel target = $region3
  $region8: #{fem_forward.3} parent=0 // loop_exit
    _

// kernel: fem_forward.5
$region0: #{fem_forward.5}
  #allocation0 [shape = 'u32[]', space=smem, size = 0x4, offset = 0x4, fixed_abs, tag = 'smem constant byte address 0x4 - core index']
  #allocation1 [shape = 'u32[144,128]{1,0:T(1,128)}', space=vmem, size = 0x12000, scoped, tag = 'internal scratch']
  %s0 = inlined_call_operand.vmem [shape: f32[2,64,32], index: 0, kind: input, shape index: {}]
  %s1 = inlined_call_operand.vmem [shape: f32[2,128,32], index: 1, kind: input, shape index: {}]
  %s2 = inlined_call_operand.vmem [shape: f32[2,1,32], index: 2, kind: input, shape index: {}]
  %s3 = inlined_call_operand.vmem [shape: f32[2,2,32], index: 3, kind: input, shape index: {}]
  %s4 = inlined_call_operand.vmem [shape: f32[2,64,32], index: 4, kind: input, shape index: {}]
  %s5 = inlined_call_operand.vmem [shape: f32[2,128,32], index: 5, kind: input, shape index: {}]
  %s6 = inlined_call_operand.vmem [shape: f32[16,32], index: 6, kind: input, shape index: {}]
  %s7 = inlined_call_operand.vmem [shape: f32[1,32], index: 7, kind: input, shape index: {}]
  %s8 = inlined_call_operand.vmem [shape: f32[16,32], index: 8, kind: input, shape index: {}]
  %s9 = inlined_call_operand.vmem [shape: f32[1,32], index: 9, kind: input, shape index: {}]
  %s10 = inlined_call_operand.hbm [shape: f32[2,64,32], index: 10, kind: output, shape index: {0}]
  %s11 = inlined_call_operand.hbm [shape: f32[2,128,32], index: 11, kind: output, shape index: {1}]
  %12 = xla_tuple %s10, %s11
  %s13 = sld [smem:[#allocation0]]
  $region81: #{fem_forward.5} parent=0
    _
  %s15 = ssub.s32 1, %s13
  %s16 = scalar_select 0, %s15, %s13
  $region1: #{fem_forward.5} parent=0
    #allocation2 [shape = 'u8[65536]{0}', space=vmem, size = 0x10000, scoped, tag = 'output window, operand 0']
    #allocation3 [shape = 's32[2]{0}', space=sflag, size = 0x8, scoped, tag = 'scoped memory for fem_forward.5']
    #allocation4 [shape = 'u8[131072]{0}', space=vmem, size = 0x20000, scoped, tag = 'output window, operand 1']
    #allocation5 [shape = 's32[2]{0}', space=sflag, size = 0x8, scoped, tag = 'scoped memory for fem_forward.5']
    %17 = vsyncpa [#allocation3], 0
    %s18 = scalar_lea.sflag [#allocation3], 1
    %19 = vsyncpa %s18, 0
    %20 = vsyncpa [#allocation5], 0
    %s21 = scalar_lea.sflag [#allocation5], 1
    %22 = vsyncpa %s21, 0
    loop: start=0, step=1, limit=4
    $region2: #{fem_forward.5} parent=1 // loop_pre_header
      _
    $region3: #{fem_forward.5} parent=1 // loop_header
      %s24 = sphi 0, %s28
      %p25 = scmp.ge.s32.totalorder %s24, 4
      %s34 = sphi 0, %s36
      %s37 = sphi 0, %s34
      %s38 = sphi 0, %s37
      %s54 = sphi 0, %s38
      %s60 = sphi 0, %s62
      %s63 = sphi 0, %s60
      %s64 = sphi 0, %s63
      %s80 = sphi 0, %s64
      %s86 = sphi 0, %s88
      %s89 = sphi 0, %s86
      %s90 = sphi 0, %s89
      %s106 = sphi 0, %s90
      %s112 = sphi 0, %s114
      %s115 = sphi 0, %s112
      %s116 = sphi 0, %s115
      %s132 = sphi 0, %s116
      %s138 = sphi 0, %s140
      %s141 = sphi 0, %s138
      %s142 = sphi 0, %s141
      %s158 = sphi 0, %s142
      %s164 = sphi 0, %s166
      %s167 = sphi 0, %s164
      %s168 = sphi 0, %s167
      %s184 = sphi 0, %s168
      %s188 = sphi 0, %s188
      %s190 = sphi 0, %s188
      %s191 = sphi 0, %s190
      %s205 = sphi 0, %s191
      %s209 = sphi 0, %s209
      %s211 = sphi 0, %s209
      %s212 = sphi 0, %s211
      %s226 = sphi 0, %s212
      %s230 = sphi 0, %s230
      %s232 = sphi 0, %s230
      %s233 = sphi 0, %s232
      %s247 = sphi 0, %s233
      %s251 = sphi 0, %s251
      %s253 = sphi 0, %s251
      %s254 = sphi 0, %s253
      %s268 = sphi 0, %s254
      %s274 = sphi 0, %s276
      %s277 = sphi 0, %s274
      %s278 = sphi 0, %s277
      %s294 = sphi 0, %s278
      %s300 = sphi 0, %s302
      %s303 = sphi 0, %s300
      %s304 = sphi 0, %s303
      %s320 = sphi 0, %s304
    $region4: #{fem_forward.5} parent=1 // loop_header_branch
      %27 = sbr.rel (%p25) target = $region8
    $region5: #{fem_forward.5} parent=1 // loop_body
      %s29 = ssub.s32 %s24, 1
      %s30 = ssub.s32 %s24, 2
      %s31 = sadd.s32 %s24, 1
      %s32 = ssub.s32 %s24, %s31
      %p33 = scmp.eq.s32.totalorder %s32, 0
      %s35 = sadd.s32 %s34, 1
      %s36 = scalar_select %p33, %s34, %s35
      %p39 = pneg %p33
      %p40 = scmp.eq.s32.totalorder %s24, 1
      %p41 = por %p39, %p40
      %p42 = scmp.ne.s32.totalorder %s34, %s37
      %p43 = scmp.eq.s32.totalorder %s24, 0
      %p44 = por %p42, %p43
      %p45 = scmp.ne.s32.totalorder %s34, %s37
      %p46 = scmp.eq.s32.totalorder %s29, 1
      %p47 = por %p45, %p46
      %p48 = scmp.ne.s32.totalorder %s37, %s38
      %p49 = scmp.eq.s32.totalorder %s29, 0
      %p50 = por %p48, %p49
      %p51 = scmp.ne.s32.totalorder %s37, %s38
      %p52 = scmp.eq.s32.totalorder %s30, 1
      %p53 = por %p51, %p52
      %p55 = scmp.ne.s32.totalorder %s38, %s54
      %p56 = scmp.eq.s32.totalorder %s30, 0
      %p57 = por %p55, %p56
      %s58 = ssub.s32 %s24, %s31
      %p59 = scmp.eq.s32.totalorder %s58, 0
      %s61 = sadd.s32 %s60, 1
      %s62 = scalar_select %p59, %s60, %s61
      %p65 = pneg %p59
      %p66 = scmp.eq.s32.totalorder %s24, 1
      %p67 = por %p65, %p66
      %p68 = scmp.ne.s32.totalorder %s60, %s63
      %p69 = scmp.eq.s32.totalorder %s24, 0
      %p70 = por %p68, %p69
      %p71 = scmp.ne.s32.totalorder %s60, %s63
      %p72 = scmp.eq.s32.totalorder %s29, 1
      %p73 = por %p71, %p72
      %p74 = scmp.ne.s32.totalorder %s63, %s64
      %p75 = scmp.eq.s32.totalorder %s29, 0
      %p76 = por %p74, %p75
      %p77 = scmp.ne.s32.totalorder %s63, %s64
      %p78 = scmp.eq.s32.totalorder %s30, 1
      %p79 = por %p77, %p78
      %p81 = scmp.ne.s32.totalorder %s64, %s80
      %p82 = scmp.eq.s32.totalorder %s30, 0
      %p83 = por %p81, %p82
      %s84 = ssub.s32 %s24, %s31
      %p85 = scmp.eq.s32.totalorder %s84, 0
      %s87 = sadd.s32 %s86, 1
      %s88 = scalar_select %p85, %s86, %s87
      %p91 = pneg %p85
      %p92 = scmp.eq.s32.totalorder %s24, 1
      %p93 = por %p91, %p92
      %p94 = scmp.ne.s32.totalorder %s86, %s89
      %p95 = scmp.eq.s32.totalorder %s24, 0
      %p96 = por %p94, %p95
      %p97 = scmp.ne.s32.totalorder %s86, %s89
      %p98 = scmp.eq.s32.totalorder %s29, 1
      %p99 = por %p97, %p98
      %p100 = scmp.ne.s32.totalorder %s89, %s90
      %p101 = scmp.eq.s32.totalorder %s29, 0
      %p102 = por %p100, %p101
      %p103 = scmp.ne.s32.totalorder %s89, %s90
      %p104 = scmp.eq.s32.totalorder %s30, 1
      %p105 = por %p103, %p104
      %p107 = scmp.ne.s32.totalorder %s90, %s106
      %p108 = scmp.eq.s32.totalorder %s30, 0
      %p109 = por %p107, %p108
      %s110 = ssub.s32 %s24, %s31
      %p111 = scmp.eq.s32.totalorder %s110, 0
      %s113 = sadd.s32 %s112, 1
      %s114 = scalar_select %p111, %s112, %s113
      %p117 = pneg %p111
      %p118 = scmp.eq.s32.totalorder %s24, 1
      %p119 = por %p117, %p118
      %p120 = scmp.ne.s32.totalorder %s112, %s115
      %p121 = scmp.eq.s32.totalorder %s24, 0
      %p122 = por %p120, %p121
      %p123 = scmp.ne.s32.totalorder %s112, %s115
      %p124 = scmp.eq.s32.totalorder %s29, 1
      %p125 = por %p123, %p124
      %p126 = scmp.ne.s32.totalorder %s115, %s116
      %p127 = scmp.eq.s32.totalorder %s29, 0
      %p128 = por %p126, %p127
      %p129 = scmp.ne.s32.totalorder %s115, %s116
      %p130 = scmp.eq.s32.totalorder %s30, 1
      %p131 = por %p129, %p130
      %p133 = scmp.ne.s32.totalorder %s116, %s132
      %p134 = scmp.eq.s32.totalorder %s30, 0
      %p135 = por %p133, %p134
      %s136 = ssub.s32 %s24, %s31
      %p137 = scmp.eq.s32.totalorder %s136, 0
      %s139 = sadd.s32 %s138, 1
      %s140 = scalar_select %p137, %s138, %s139
      %p143 = pneg %p137
      %p144 = scmp.eq.s32.totalorder %s24, 1
      %p145 = por %p143, %p144
      %p146 = scmp.ne.s32.totalorder %s138, %s141
      %p147 = scmp.eq.s32.totalorder %s24, 0
      %p148 = por %p146, %p147
      %p149 = scmp.ne.s32.totalorder %s138, %s141
      %p150 = scmp.eq.s32.totalorder %s29, 1
      %p151 = por %p149, %p150
      %p152 = scmp.ne.s32.totalorder %s141, %s142
      %p153 = scmp.eq.s32.totalorder %s29, 0
      %p154 = por %p152, %p153
      %p155 = scmp.ne.s32.totalorder %s141, %s142
      %p156 = scmp.eq.s32.totalorder %s30, 1
      %p157 = por %p155, %p156
      %p159 = scmp.ne.s32.totalorder %s142, %s158
      %p160 = scmp.eq.s32.totalorder %s30, 0
      %p161 = por %p159, %p160
      %s162 = ssub.s32 %s24, %s31
      %p163 = scmp.eq.s32.totalorder %s162, 0
      %s165 = sadd.s32 %s164, 1
      %s166 = scalar_select %p163, %s164, %s165
      %p169 = pneg %p163
      %p170 = scmp.eq.s32.totalorder %s24, 1
      %p171 = por %p169, %p170
      %p172 = scmp.ne.s32.totalorder %s164, %s167
      %p173 = scmp.eq.s32.totalorder %s24, 0
      %p174 = por %p172, %p173
      %p175 = scmp.ne.s32.totalorder %s164, %s167
      %p176 = scmp.eq.s32.totalorder %s29, 1
      %p177 = por %p175, %p176
      %p178 = scmp.ne.s32.totalorder %s167, %s168
      %p179 = scmp.eq.s32.totalorder %s29, 0
      %p180 = por %p178, %p179
      %p181 = scmp.ne.s32.totalorder %s167, %s168
      %p182 = scmp.eq.s32.totalorder %s30, 1
      %p183 = por %p181, %p182
      %p185 = scmp.ne.s32.totalorder %s168, %s184
      %p186 = scmp.eq.s32.totalorder %s30, 0
      %p187 = por %p185, %p186
      %s189 = sadd.s32 %s188, 1
      %p192 = scmp.eq.s32.totalorder %s24, 1
      %p193 = scmp.ne.s32.totalorder %s188, %s190
      %p194 = scmp.eq.s32.totalorder %s24, 0
      %p195 = por %p193, %p194
      %p196 = scmp.ne.s32.totalorder %s188, %s190
      %p197 = scmp.eq.s32.totalorder %s29, 1
      %p198 = por %p196, %p197
      %p199 = scmp.ne.s32.totalorder %s190, %s191
      %p200 = scmp.eq.s32.totalorder %s29, 0
      %p201 = por %p199, %p200
      %p202 = scmp.ne.s32.totalorder %s190, %s191
      %p203 = scmp.eq.s32.totalorder %s30, 1
      %p204 = por %p202, %p203
      %p206 = scmp.ne.s32.totalorder %s191, %s205
      %p207 = scmp.eq.s32.totalorder %s30, 0
      %p208 = por %p206, %p207
      %s210 = sadd.s32 %s209, 1
      %p213 = scmp.eq.s32.totalorder %s24, 1
      %p214 = scmp.ne.s32.totalorder %s209, %s211
      %p215 = scmp.eq.s32.totalorder %s24, 0
      %p216 = por %p214, %p215
      %p217 = scmp.ne.s32.totalorder %s209, %s211
      %p218 = scmp.eq.s32.totalorder %s29, 1
      %p219 = por %p217, %p218
      %p220 = scmp.ne.s32.totalorder %s211, %s212
      %p221 = scmp.eq.s32.totalorder %s29, 0
      %p222 = por %p220, %p221
      %p223 = scmp.ne.s32.totalorder %s211, %s212
      %p224 = scmp.eq.s32.totalorder %s30, 1
      %p225 = por %p223, %p224
      %p227 = scmp.ne.s32.totalorder %s212, %s226
      %p228 = scmp.eq.s32.totalorder %s30, 0
      %p229 = por %p227, %p228
      %s231 = sadd.s32 %s230, 1
      %p234 = scmp.eq.s32.totalorder %s24, 1
      %p235 = scmp.ne.s32.totalorder %s230, %s232
      %p236 = scmp.eq.s32.totalorder %s24, 0
      %p237 = por %p235, %p236
      %p238 = scmp.ne.s32.totalorder %s230, %s232
      %p239 = scmp.eq.s32.totalorder %s29, 1
      %p240 = por %p238, %p239
      %p241 = scmp.ne.s32.totalorder %s232, %s233
      %p242 = scmp.eq.s32.totalorder %s29, 0
      %p243 = por %p241, %p242
      %p244 = scmp.ne.s32.totalorder %s232, %s233
      %p245 = scmp.eq.s32.totalorder %s30, 1
      %p246 = por %p244, %p245
      %p248 = scmp.ne.s32.totalorder %s233, %s247
      %p249 = scmp.eq.s32.totalorder %s30, 0
      %p250 = por %p248, %p249
      %s252 = sadd.s32 %s251, 1
      %p255 = scmp.eq.s32.totalorder %s24, 1
      %p256 = scmp.ne.s32.totalorder %s251, %s253
      %p257 = scmp.eq.s32.totalorder %s24, 0
      %p258 = por %p256, %p257
      %p259 = scmp.ne.s32.totalorder %s251, %s253
      %p260 = scmp.eq.s32.totalorder %s29, 1
      %p261 = por %p259, %p260
      %p262 = scmp.ne.s32.totalorder %s253, %s254
      %p263 = scmp.eq.s32.totalorder %s29, 0
      %p264 = por %p262, %p263
      %p265 = scmp.ne.s32.totalorder %s253, %s254
      %p266 = scmp.eq.s32.totalorder %s30, 1
      %p267 = por %p265, %p266
      %p269 = scmp.ne.s32.totalorder %s254, %s268
      %p270 = scmp.eq.s32.totalorder %s30, 0
      %p271 = por %p269, %p270
      %s272 = ssub.s32 %s24, %s31
      %p273 = scmp.eq.s32.totalorder %s272, 0
      %s275 = sadd.s32 %s274, 1
      %s276 = scalar_select %p273, %s274, %s275
      %p279 = pneg %p273
      %p280 = scmp.eq.s32.totalorder %s24, 1
      %p281 = por %p279, %p280
      %p282 = scmp.ne.s32.totalorder %s274, %s277
      %p283 = scmp.eq.s32.totalorder %s24, 0
      %p284 = por %p282, %p283
      %p285 = scmp.ne.s32.totalorder %s274, %s277
      %p286 = scmp.eq.s32.totalorder %s29, 1
      %p287 = por %p285, %p286
      %p288 = scmp.ne.s32.totalorder %s277, %s278
      %p289 = scmp.eq.s32.totalorder %s29, 0
      %p290 = por %p288, %p289
      %p291 = scmp.ne.s32.totalorder %s277, %s278
      %p292 = scmp.eq.s32.totalorder %s30, 1
      %p293 = por %p291, %p292
      %p295 = scmp.ne.s32.totalorder %s278, %s294
      %p296 = scmp.eq.s32.totalorder %s30, 0
      %p297 = por %p295, %p296
      %s298 = ssub.s32 %s24, %s31
      %p299 = scmp.eq.s32.totalorder %s298, 0
      %s301 = sadd.s32 %s300, 1
      %s302 = scalar_select %p299, %s300, %s301
      %p305 = pneg %p299
      %p306 = scmp.eq.s32.totalorder %s24, 1
      %p307 = por %p305, %p306
      %p308 = scmp.ne.s32.totalorder %s300, %s303
      %p309 = scmp.eq.s32.totalorder %s24, 0
      %p310 = por %p308, %p309
      %p311 = scmp.ne.s32.totalorder %s300, %s303
      %p312 = scmp.eq.s32.totalorder %s29, 1
      %p313 = por %p311, %p312
      %p314 = scmp.ne.s32.totalorder %s303, %s304
      %p315 = scmp.eq.s32.totalorder %s29, 0
      %p316 = por %p314, %p315
      %p317 = scmp.ne.s32.totalorder %s303, %s304
      %p318 = scmp.eq.s32.totalorder %s30, 1
      %p319 = por %p317, %p318
      %p321 = scmp.ne.s32.totalorder %s304, %s320
      %p322 = scmp.eq.s32.totalorder %s30, 0
      %p323 = por %p321, %p322
      %p324 = scmp.le.s32.totalorder 1, %s24
      %p325 = scmp.lt.s32.totalorder %s24, 3
      %p326 = pnand %p324, %p325
      %p327 = pneg %p326
      // Predicated region
      $region9: #{fem_forward.5} parent=5 // pred_check
        _
      $region10: #{fem_forward.5} parent=5 // pred_check_branch
        %329 = sbr.rel (%p326) target = $region12
      $region11: #{fem_forward.5} parent=5 // pred_region
        %s330 = ssub.s32 %s24, 1
        // Predicated region
        $region13: #{fem_forward.5} parent=11 // pred_check
          %p331 = pneg %p201
        $region14: #{fem_forward.5} parent=11 // pred_check_branch
          %333 = sbr.rel (%p331) target = $region16
        $region15: #{fem_forward.5} parent=11 // pred_region
          _
        $region16: #{fem_forward.5} parent=11 // pred_fallthru
          _
        // Predicated region
        $region17: #{fem_forward.5} parent=11 // pred_check
          %p334 = pneg %p222
        $region18: #{fem_forward.5} parent=11 // pred_check_branch
          %336 = sbr.rel (%p334) target = $region20
        $region19: #{fem_forward.5} parent=11 // pred_region
          _
        $region20: #{fem_forward.5} parent=11 // pred_fallthru
          _
        // Predicated region
        $region21: #{fem_forward.5} parent=11 // pred_check
          %p337 = pneg %p243
        $region22: #{fem_forward.5} parent=11 // pred_check_branch
          %339 = sbr.rel (%p337) target = $region24
        $region23: #{fem_forward.5} parent=11 // pred_region
          _
        $region24: #{fem_forward.5} parent=11 // pred_fallthru
          _
        // Predicated region
        $region25: #{fem_forward.5} parent=11 // pred_check
          %p340 = pneg %p264
        $region26: #{fem_forward.5} parent=11 // pred_check_branch
          %342 = sbr.rel (%p340) target = $region28
        $region27: #{fem_forward.5} parent=11 // pred_region
          _
        $region28: #{fem_forward.5} parent=11 // pred_fallthru
          _
      $region12: #{fem_forward.5} parent=5 // pred_fallthru
        _
      %p343 = scmp.lt.s32.totalorder %s24, 2
      // Predicated region
      $region29: #{fem_forward.5} parent=5 // pred_check
        %p344 = pneg %p343
      $region30: #{fem_forward.5} parent=5 // pred_check_branch
        %346 = sbr.rel (%p344) target = $region32
      $region31: #{fem_forward.5} parent=5 // pred_region
        // Predicated region
        $region33: #{fem_forward.5} parent=31 // pred_check
          %p347 = pneg %p44
        $region34: #{fem_forward.5} parent=31 // pred_check_branch
          %349 = sbr.rel (%p347) target = $region36
        $region35: #{fem_forward.5} parent=31 // pred_region
          %p350 = scmp.lt.s32.totalorder %s24, 1
          %s351 = scalar_select %p350, %s24, 1
          %s352 = smul.addr %s351, 8
          %s353 = smul.addr %s352, 8
          %s354 = scalar_lea.vmem %s0, %s353
        $region36: #{fem_forward.5} parent=31 // pred_fallthru
          _
        // Predicated region
        $region37: #{fem_forward.5} parent=31 // pred_check
          %p355 = pneg %p70
        $region38: #{fem_forward.5} parent=31 // pred_check_branch
          %357 = sbr.rel (%p355) target = $region40
        $region39: #{fem_forward.5} parent=31 // pred_region
          %p358 = scmp.lt.s32.totalorder %s24, 1
          %s359 = scalar_select %p358, %s24, 1
          %s360 = smul.addr %s359, 16
          %s361 = smul.addr %s360, 8
          %s362 = scalar_lea.vmem %s1, %s361
        $region40: #{fem_forward.5} parent=31 // pred_fallthru
          _
        // Predicated region
        $region41: #{fem_forward.5} parent=31 // pred_check
          %p363 = pneg %p96
        $region42: #{fem_forward.5} parent=31 // pred_check_branch
          %365 = sbr.rel (%p363) target = $region44
        $region43: #{fem_forward.5} parent=31 // pred_region
          %p366 = scmp.lt.s32.totalorder %s24, 1
          %s367 = scalar_select %p366, %s24, 1
          %s368 = scalar_lea.vmem %s2, %s367
        $region44: #{fem_forward.5} parent=31 // pred_fallthru
          _
        // Predicated region
        $region45: #{fem_forward.5} parent=31 // pred_check
          %p369 = pneg %p122
        $region46: #{fem_forward.5} parent=31 // pred_check_branch
          %371 = sbr.rel (%p369) target = $region48
        $region47: #{fem_forward.5} parent=31 // pred_region
          %p372 = scmp.lt.s32.totalorder %s24, 1
          %s373 = scalar_select %p372, %s24, 1
          %s374 = smul.addr %s373, 2
          %s375 = scalar_lea.vmem %s3, %s374
        $region48: #{fem_forward.5} parent=31 // pred_fallthru
          _
        // Predicated region
        $region49: #{fem_forward.5} parent=31 // pred_check
          %p376 = pneg %p148
        $region50: #{fem_forward.5} parent=31 // pred_check_branch
          %378 = sbr.rel (%p376) target = $region52
        $region51: #{fem_forward.5} parent=31 // pred_region
          %p379 = scmp.lt.s32.totalorder %s24, 1
          %s380 = scalar_select %p379, %s24, 1
          %s381 = smul.addr %s380, 8
          %s382 = smul.addr %s381, 8
          %s383 = scalar_lea.vmem %s4, %s382
        $region52: #{fem_forward.5} parent=31 // pred_fallthru
          _
        // Predicated region
        $region53: #{fem_forward.5} parent=31 // pred_check
          %p384 = pneg %p174
        $region54: #{fem_forward.5} parent=31 // pred_check_branch
          %386 = sbr.rel (%p384) target = $region56
        $region55: #{fem_forward.5} parent=31 // pred_region
          %p387 = scmp.lt.s32.totalorder %s24, 1
          %s388 = scalar_select %p387, %s24, 1
          %s389 = smul.addr %s388, 16
          %s390 = smul.addr %s389, 8
          %s391 = scalar_lea.vmem %s5, %s390
        $region56: #{fem_forward.5} parent=31 // pred_fallthru
          _
      $region32: #{fem_forward.5} parent=5 // pred_fallthru
        _
      %p392 = scmp.le.s32.totalorder 1, %s24
      %p393 = scmp.lt.s32.totalorder %s24, 3
      %p394 = pnand %p392, %p393
      %p395 = pneg %p394
      // Predicated region
      $region57: #{fem_forward.5} parent=5 // pred_check
        _
      $region58: #{fem_forward.5} parent=5 // pred_check_branch
        %397 = sbr.rel (%p394) target = $region60
      $region59: #{fem_forward.5} parent=5 // pred_region
        %s398 = ssub.s32 %s24, 1
        %p399 = scmp.lt.s32.totalorder %s29, 1
        %s400 = scalar_select %p399, %s29, 1
        %s401 = smul.addr %s400, 8
        %s402 = smul.addr %s401, 8
        %s403 = scalar_lea.vmem %s0, %s402
        %p404 = pneg %p50
        %p405 = pneg %p47
        %p406 = scmp.lt.s32.totalorder %s29, 1
        %s407 = scalar_select %p406, %s29, 1
        %s408 = smul.addr %s407, 16
        %s409 = smul.addr %s408, 8
        %s410 = scalar_lea.vmem %s1, %s409
        %p411 = pneg %p76
        %p412 = pneg %p73
        %p413 = scmp.lt.s32.totalorder %s29, 1
        %s414 = scalar_select %p413, %s29, 1
        %s415 = scalar_lea.vmem %s2, %s414
        %p416 = pneg %p102
        %p417 = pneg %p99
        %p418 = scmp.lt.s32.totalorder %s29, 1
        %s419 = scalar_select %p418, %s29, 1
        %s420 = smul.addr %s419, 2
        %s421 = scalar_lea.vmem %s3, %s420
        %p422 = pneg %p128
        %p423 = pneg %p125
        %p424 = scmp.lt.s32.totalorder %s29, 1
        %s425 = scalar_select %p424, %s29, 1
        %s426 = smul.addr %s425, 8
        %s427 = smul.addr %s426, 8
        %s428 = scalar_lea.vmem %s4, %s427
        %p429 = pneg %p154
        %p430 = pneg %p151
        %p431 = scmp.lt.s32.totalorder %s29, 1
        %s432 = scalar_select %p431, %s29, 1
        %s433 = smul.addr %s432, 16
        %s434 = smul.addr %s433, 8
        %s435 = scalar_lea.vmem %s5, %s434
        %p436 = pneg %p180
        %p437 = pneg %p177
        %p438 = pneg %p201
        %p439 = pneg %p198
        %p440 = pneg %p222
        %p441 = pneg %p219
        %p442 = pneg %p243
        %p443 = pneg %p240
        %p444 = pneg %p264
        %p445 = pneg %p261
        %p446 = pneg %p290
        %p447 = pneg %p287
        %s448 = sand.u32 %s277, 1
        %s449 = scalar_lea.sflag [#allocation3], %s448
        %s450 = sand.u32 %s277, 1
        %s451 = smul.addr %s450, 64
        %s452 = scalar_lea.vmem [#allocation2], %s451
        %p453 = pneg %p316
        %p454 = pneg %p313
        %s455 = sand.u32 %s303, 1
        %s456 = scalar_lea.sflag [#allocation5], %s455
        %s457 = sand.u32 %s303, 1
        %s458 = smul.addr %s457, 128
        %s459 = scalar_lea.vmem [#allocation4], %s458
        %p460 = scmp.lt.s32.totalorder %s29, 1
        %s461 = scalar_select %p460, %s29, 1
        %s462 = smul.addr %s461, 8
        %s463 = smul.addr %s462, 8
        %s464 = scalar_lea.vmem %s0, %s463
        %p465 = scmp.lt.s32.totalorder %s29, 1
        %s466 = scalar_select %p465, %s29, 1
        %s467 = smul.addr %s466, 16
        %s468 = smul.addr %s467, 8
        %s469 = scalar_lea.vmem %s1, %s468
        %p470 = scmp.lt.s32.totalorder %s29, 1
        %s471 = scalar_select %p470, %s29, 1
        %s472 = scalar_lea.vmem %s2, %s471
        %p473 = scmp.lt.s32.totalorder %s29, 1
        %s474 = scalar_select %p473, %s29, 1
        %s475 = smul.addr %s474, 2
        %s476 = scalar_lea.vmem %s3, %s475
        %p477 = scmp.lt.s32.totalorder %s29, 1
        %s478 = scalar_select %p477, %s29, 1
        %s479 = smul.addr %s478, 8
        %s480 = smul.addr %s479, 8
        %s481 = scalar_lea.vmem %s4, %s480
        %p482 = scmp.lt.s32.totalorder %s29, 1
        %s483 = scalar_select %p482, %s29, 1
        %s484 = smul.addr %s483, 16
        %s485 = smul.addr %s484, 8
        %s486 = scalar_lea.vmem %s5, %s485
        %v487 = vld [vmem:[%s464] sm:$0xff]
        %v488 = vld [vmem:[%s464 + $0x8] sm:$0xff]
        %v489 = vld [vmem:[%s464 + $0x10] sm:$0xff]
        %v490 = vld [vmem:[%s464 + $0x18] sm:$0xff]
        %v491 = vld [vmem:[%s464 + $0x20] sm:$0xff]
        %v492 = vld [vmem:[%s464 + $0x28] sm:$0xff]
        %v493 = vld [vmem:[%s464 + $0x30] sm:$0xff]
        %v494 = vld [vmem:[%s464 + $0x38] sm:$0xff]
        %v495 = vld [vmem:[%s469] sm:$0xff]
        %v496 = vld [vmem:[%s469 + $0x8] sm:$0xff]
        %v497 = vld [vmem:[%s469 + $0x10] sm:$0xff]
        %v498 = vld [vmem:[%s469 + $0x18] sm:$0xff]
        %v499 = vld [vmem:[%s469 + $0x20] sm:$0xff]
        %v500 = vld [vmem:[%s469 + $0x28] sm:$0xff]
        %v501 = vld [vmem:[%s469 + $0x30] sm:$0xff]
        %v502 = vld [vmem:[%s469 + $0x38] sm:$0xff]
        %v503 = vld [vmem:[%s469 + $0x40] sm:$0xff]
        %v504 = vld [vmem:[%s469 + $0x48] sm:$0xff]
        %v505 = vld [vmem:[%s469 + $0x50] sm:$0xff]
        %v506 = vld [vmem:[%s469 + $0x58] sm:$0xff]
        %v507 = vld [vmem:[%s469 + $0x60] sm:$0xff]
        %v508 = vld [vmem:[%s469 + $0x68] sm:$0xff]
        %v509 = vld [vmem:[%s469 + $0x70] sm:$0xff]
        %v510 = vld [vmem:[%s469 + $0x78] sm:$0xff]
        %527 = vrot.lane.b32.xlu0 %v495, 112
        %v528 = vpop.permute.xlu0 %527
        %529 = vrot.lane.b32.xlu0 %v496, 112
        %v530 = vpop.permute.xlu0 %529
        %531 = vrot.lane.b32.xlu0 %v497, 112
        %v532 = vpop.permute.xlu0 %531
        %533 = vrot.lane.b32.xlu0 %v498, 112
        %v534 = vpop.permute.xlu0 %533
        %535 = vrot.lane.b32.xlu0 %v499, 112
        %v536 = vpop.permute.xlu0 %535
        %537 = vrot.lane.b32.xlu0 %v500, 112
        %v538 = vpop.permute.xlu0 %537
        %539 = vrot.lane.b32.xlu0 %v501, 112
        %v540 = vpop.permute.xlu0 %539
        %541 = vrot.lane.b32.xlu0 %v502, 112
        %v542 = vpop.permute.xlu0 %541
        %543 = vrot.lane.b32.xlu0 %v503, 112
        %v544 = vpop.permute.xlu0 %543
        %545 = vrot.lane.b32.xlu0 %v504, 112
        %v546 = vpop.permute.xlu0 %545
        %547 = vrot.lane.b32.xlu0 %v505, 112
        %v548 = vpop.permute.xlu0 %547
        %549 = vrot.lane.b32.xlu0 %v506, 112
        %v550 = vpop.permute.xlu0 %549
        %551 = vrot.lane.b32.xlu0 %v507, 112
        %v552 = vpop.permute.xlu0 %551
        %553 = vrot.lane.b32.xlu0 %v508, 112
        %v554 = vpop.permute.xlu0 %553
        %555 = vrot.lane.b32.xlu0 %v509, 112
        %v556 = vpop.permute.xlu0 %555
        %557 = vrot.lane.b32.xlu0 %v510, 112
        %v558 = vpop.permute.xlu0 %557
        %567 = vrot.lane.b32.xlu0 %v487, 112
        %v568 = vpop.permute.xlu0 %567
        %569 = vrot.lane.b32.xlu0 %v488, 112
        %v570 = vpop.permute.xlu0 %569
        %571 = vrot.lane.b32.xlu0 %v489, 112
        %v572 = vpop.permute.xlu0 %571
        %573 = vrot.lane.b32.xlu0 %v490, 112
        %v574 = vpop.permute.xlu0 %573
        %575 = vrot.lane.b32.xlu0 %v491, 112
        %v576 = vpop.permute.xlu0 %575
        %577 = vrot.lane.b32.xlu0 %v492, 112
        %v578 = vpop.permute.xlu0 %577
        %579 = vrot.lane.b32.xlu0 %v493, 112
        %v580 = vpop.permute.xlu0 %579
        %581 = vrot.lane.b32.xlu0 %v494, 112
        %v582 = vpop.permute.xlu0 %581
        %vm583 = vcmask 130048
        %v584 = vsel %vm583, %v528, 0
        %v586 = vsel %vm583, %v530, 0
        %v588 = vsel %vm583, %v532, 0
        %v590 = vsel %vm583, %v534, 0
        %v592 = vsel %vm583, %v536, 0
        %v594 = vsel %vm583, %v538, 0
        %v596 = vsel %vm583, %v540, 0
        %v598 = vsel %vm583, %v542, 0
        %v600 = vsel %vm583, %v544, 0
        %v602 = vsel %vm583, %v546, 0
        %v604 = vsel %vm583, %v548, 0
        %v606 = vsel %vm583, %v550, 0
        %v608 = vsel %vm583, %v552, 0
        %v610 = vsel %vm583, %v554, 0
        %v612 = vsel %vm583, %v556, 0
        %v614 = vsel %vm583, %v558, 0
        %v616 = vsel %vm583, %v568, 0
        %v618 = vsel %vm583, %v570, 0
        %v620 = vsel %vm583, %v572, 0
        %v622 = vsel %vm583, %v574, 0
        %v624 = vsel %vm583, %v576, 0
        %v626 = vsel %vm583, %v578, 0
        %v628 = vsel %vm583, %v580, 0
        %v630 = vsel %vm583, %v582, 0
        %632 = vmatprep.subr.mxu0 0.0
        %633 = vmatpush1.xpose.msra.mxu0 0.0
        %634 = vmatprep.subr.mxu0 0.0
        %635 = vmatpush1.xpose.msra.mxu0 0.0
        %636 = vmatprep.subr.mxu0 0.0
        %637 = vmatpush1.xpose.msra.mxu0 0.0
        %638 = vmatprep.subr.mxu0 0.0
        %639 = vmatpush1.xpose.msra.mxu0 0.0
        %640 = vmatprep.subr.mxu0 0.0
        %641 = vmatpush1.xpose.msra.mxu0 0.0
        %642 = vmatprep.subr.mxu0 0.0
        %643 = vmatpush1.xpose.msra.mxu0 0.0
        %644 = vmatprep.subr.mxu0 0.0
        %645 = vmatpush1.xpose.msra.mxu0 0.0
        %646 = vmatprep.subr.mxu0 0.0
        %647 = vmatpush1.xpose.msra.mxu0 0.0
        %648 = vmatprep.subr.mxu0 0.0
        %649 = vmatpush1.xpose.msra.mxu0 %v630
        %650 = vmatprep.subr.mxu0 0.0
        %651 = vmatpush1.xpose.msra.mxu0 %v628
        %652 = vmatprep.subr.mxu0 0.0
        %653 = vmatpush1.xpose.msra.mxu0 %v626
        %654 = vmatprep.subr.mxu0 0.0
        %655 = vmatpush1.xpose.msra.mxu0 %v624
        %656 = vmatprep.subr.mxu0 0.0
        %657 = vmatpush1.xpose.msra.mxu0 %v622
        %658 = vmatprep.subr.mxu0 0.0
        %659 = vmatpush1.xpose.msra.mxu0 %v620
        %660 = vmatprep.subr.mxu0 0.0
        %661 = vmatpush1.xpose.msra.mxu0 %v618
        %662 = vmatprep.subr.mxu0 0.0
        %663 = vmatpush1.xpose.msra.mxu0 %v616
        %664 = vmatprep.subr.mxu0 0.0
        %665 = vmatpush2.xpose.msra.mxu0 0.0
        %666 = vmatprep.subr.mxu0 0.0
        %667 = vmatpush2.xpose.msra.mxu0 0.0
        %668 = vmatprep.subr.mxu0 0.0
        %669 = vmatpush2.xpose.msra.mxu0 0.0
        %670 = vmatprep.subr.mxu0 0.0
        %671 = vmatpush2.xpose.msra.mxu0 0.0
        %672 = vmatprep.subr.mxu0 0.0
        %673 = vmatpush2.xpose.msra.mxu0 0.0
        %674 = vmatprep.subr.mxu0 0.0
        %675 = vmatpush2.xpose.msra.mxu0 0.0
        %676 = vmatprep.subr.mxu0 0.0
        %677 = vmatpush2.xpose.msra.mxu0 0.0
        %678 = vmatprep.subr.mxu0 0.0
        %679 = vmatpush2.xpose.msra.mxu0 0.0
        %680 = vmatprep.subr.mxu0 0.0
        %681 = vmatpush2.xpose.msra.mxu0 0.0
        %682 = vmatprep.subr.mxu0 0.0
        %683 = vmatpush2.xpose.msra.mxu0 0.0
        %684 = vmatprep.subr.mxu0 0.0
        %685 = vmatpush2.xpose.msra.mxu0 0.0
        %686 = vmatprep.subr.mxu0 0.0
        %687 = vmatpush2.xpose.msra.mxu0 0.0
        %688 = vmatprep.subr.mxu0 0.0
        %689 = vmatpush2.xpose.msra.mxu0 0.0
        %690 = vmatprep.subr.mxu0 0.0
        %691 = vmatpush2.xpose.msra.mxu0 0.0
        %692 = vmatprep.subr.mxu0 0.0
        %693 = vmatpush2.xpose.msra.mxu0 0.0
        %694 = vmatprep.subr.mxu0 0.0
        %695 = vmatpush2.xpose.msra.mxu0 0.0
        %696 = vmatprep.mubr.f32.mxu0 0.0
        %697 = vmatmul.mubr.f32.gmra.mxu0 %v584
        %v698 = vpop.f32.mrf.mxu0
        %v699 = vadd.f32 0.0, %v698
        %v700 = vpop.f32.mrf.mxu0
        %701 = vmatprep.mubr.f32.mxu0 0.0
        %702 = vmatmul.mubr.f32.gmra.mxu0 %v586
        %v703 = vpop.f32.mrf.mxu0
        %v704 = vadd.f32 0.0, %v703
        %v705 = vpop.f32.mrf.mxu0
        %706 = vmatprep.mubr.f32.mxu0 0.0
        %707 = vmatmul.mubr.f32.gmra.mxu0 %v588
        %v708 = vpop.f32.mrf.mxu0
        %v709 = vadd.f32 0.0, %v708
        %v710 = vpop.f32.mrf.mxu0
        %711 = vmatprep.mubr.f32.mxu0 0.0
        %712 = vmatmul.mubr.f32.gmra.mxu0 %v590
        %v713 = vpop.f32.mrf.mxu0
        %v714 = vadd.f32 0.0, %v713
        %v715 = vpop.f32.mrf.mxu0
        %716 = vmatprep.mubr.f32.mxu0 0.0
        %717 = vmatmul.mubr.f32.gmra.mxu0 %v592
        %v718 = vpop.f32.mrf.mxu0
        %v719 = vadd.f32 0.0, %v718
        %v720 = vpop.f32.mrf.mxu0
        %721 = vmatprep.mubr.f32.mxu0 0.0
        %722 = vmatmul.mubr.f32.gmra.mxu0 %v594
        %v723 = vpop.f32.mrf.mxu0
        %v724 = vadd.f32 0.0, %v723
        %v725 = vpop.f32.mrf.mxu0
        %726 = vmatprep.mubr.f32.mxu0 0.0
        %727 = vmatmul.mubr.f32.gmra.mxu0 %v596
        %v728 = vpop.f32.mrf.mxu0
        %v729 = vadd.f32 0.0, %v728
        %v730 = vpop.f32.mrf.mxu0
        %731 = vmatprep.mubr.f32.mxu0 0.0
        %732 = vmatmul.mubr.f32.gmra.mxu0 %v598
        %v733 = vpop.f32.mrf.mxu0
        %v734 = vadd.f32 0.0, %v733
        %v735 = vpop.f32.mrf.mxu0
        %736 = vmatprep.mubr.f32.mxu0 0.0
        %737 = vmatmul.mubr.f32.gmra.mxu0 %v600
        %v738 = vpop.f32.mrf.mxu0
        %v739 = vadd.f32 0.0, %v738
        %v740 = vpop.f32.mrf.mxu0
        %741 = vmatprep.mubr.f32.mxu0 0.0
        %742 = vmatmul.mubr.f32.gmra.mxu0 %v602
        %v743 = vpop.f32.mrf.mxu0
        %v744 = vadd.f32 0.0, %v743
        %v745 = vpop.f32.mrf.mxu0
        %746 = vmatprep.mubr.f32.mxu0 0.0
        %747 = vmatmul.mubr.f32.gmra.mxu0 %v604
        %v748 = vpop.f32.mrf.mxu0
        %v749 = vadd.f32 0.0, %v748
        %v750 = vpop.f32.mrf.mxu0
        %751 = vmatprep.mubr.f32.mxu0 0.0
        %752 = vmatmul.mubr.f32.gmra.mxu0 %v606
        %v753 = vpop.f32.mrf.mxu0
        %v754 = vadd.f32 0.0, %v753
        %v755 = vpop.f32.mrf.mxu0
        %756 = vmatprep.mubr.f32.mxu0 0.0
        %757 = vmatmul.mubr.f32.gmra.mxu0 %v608
        %v758 = vpop.f32.mrf.mxu0
        %v759 = vadd.f32 0.0, %v758
        %v760 = vpop.f32.mrf.mxu0
        %761 = vmatprep.mubr.f32.mxu0 0.0
        %762 = vmatmul.mubr.f32.gmra.mxu0 %v610
        %v763 = vpop.f32.mrf.mxu0
        %v764 = vadd.f32 0.0, %v763
        %v765 = vpop.f32.mrf.mxu0
        %766 = vmatprep.mubr.f32.mxu0 0.0
        %767 = vmatmul.mubr.f32.gmra.mxu0 %v612
        %v768 = vpop.f32.mrf.mxu0
        %v769 = vadd.f32 0.0, %v768
        %v770 = vpop.f32.mrf.mxu0
        %771 = vmatprep.mubr.f32.mxu0 0.0
        %772 = vmatmul.mubr.f32.gmra.mxu0 %v614
        %v773 = vpop.f32.mrf.mxu0
        %v774 = vadd.f32 0.0, %v773
        %v775 = vpop.f32.mrf.mxu0
        %776 = vdwg.mxu0
        %vm777 = vcmask 523264
        %v778 = vsel %vm777, %v699, -inf
        %779 = vmax.xlane.f32.xlu0 %v778
        %v780 = vpop.xlane.xlu0 %779
        %v781 = vsel %vm777, %v704, -inf
        %782 = vmax.xlane.f32.xlu0 %v781
        %v783 = vpop.xlane.xlu0 %782
        %v784 = vsel %vm777, %v709, -inf
        %785 = vmax.xlane.f32.xlu0 %v784
        %v786 = vpop.xlane.xlu0 %785
        %v787 = vsel %vm777, %v714, -inf
        %788 = vmax.xlane.f32.xlu0 %v787
        %v789 = vpop.xlane.xlu0 %788
        %v790 = vsel %vm777, %v719, -inf
        %791 = vmax.xlane.f32.xlu0 %v790
        %v792 = vpop.xlane.xlu0 %791
        %v793 = vsel %vm777, %v724, -inf
        %794 = vmax.xlane.f32.xlu0 %v793
        %v795 = vpop.xlane.xlu0 %794
        %v796 = vsel %vm777, %v729, -inf
        %797 = vmax.xlane.f32.xlu0 %v796
        %v798 = vpop.xlane.xlu0 %797
        %v799 = vsel %vm777, %v734, -inf
        %800 = vmax.xlane.f32.xlu0 %v799
        %v801 = vpop.xlane.xlu0 %800
        %v802 = vsel %vm777, %v739, -inf
        %803 = vmax.xlane.f32.xlu0 %v802
        %v804 = vpop.xlane.xlu0 %803
        %v805 = vsel %vm777, %v744, -inf
        %806 = vmax.xlane.f32.xlu0 %v805
        %v807 = vpop.xlane.xlu0 %806
        %v808 = vsel %vm777, %v749, -inf
        %809 = vmax.xlane.f32.xlu0 %v808
        %v810 = vpop.xlane.xlu0 %809
        %v811 = vsel %vm777, %v754, -inf
        %812 = vmax.xlane.f32.xlu0 %v811
        %v813 = vpop.xlane.xlu0 %812
        %v814 = vsel %vm777, %v759, -inf
        %815 = vmax.xlane.f32.xlu0 %v814
        %v816 = vpop.xlane.xlu0 %815
        %v817 = vsel %vm777, %v764, -inf
        %818 = vmax.xlane.f32.xlu0 %v817
        %v819 = vpop.xlane.xlu0 %818
        %v820 = vsel %vm777, %v769, -inf
        %821 = vmax.xlane.f32.xlu0 %v820
        %v822 = vpop.xlane.xlu0 %821
        %v823 = vsel %vm777, %v774, -inf
        %824 = vmax.xlane.f32.xlu0 %v823
        %v825 = vpop.xlane.xlu0 %824
        %v826 = vsub.f32 %v699, %v780
        %v827 = vsub.f32 %v704, %v783
        %v828 = vsub.f32 %v709, %v786
        %v829 = vsub.f32 %v714, %v789
        %v830 = vsub.f32 %v719, %v792
        %v831 = vsub.f32 %v724, %v795
        %v832 = vsub.f32 %v729, %v798
        %v833 = vsub.f32 %v734, %v801
        %v834 = vsub.f32 %v739, %v804
        %v835 = vsub.f32 %v744, %v807
        %v836 = vsub.f32 %v749, %v810
        %v837 = vsub.f32 %v754, %v813
        %v838 = vsub.f32 %v759, %v816
        %v839 = vsub.f32 %v764, %v819
        %v840 = vsub.f32 %v769, %v822
        %v841 = vsub.f32 %v774, %v825
        %v842 = vmul.f32 %v826, 1.442695
        %v843 = vpow.pop %v842
        %v844 = vmul.f32 %v827, 1.442695
        %v845 = vpow.pop %v844
        %v846 = vmul.f32 %v828, 1.442695
        %v847 = vpow.pop %v846
        %v848 = vmul.f32 %v829, 1.442695
        %v849 = vpow.pop %v848
        %v850 = vmul.f32 %v830, 1.442695
        %v851 = vpow.pop %v850
        %v852 = vmul.f32 %v831, 1.442695
        %v853 = vpow.pop %v852
        %v854 = vmul.f32 %v832, 1.442695
        %v855 = vpow.pop %v854
        %v856 = vmul.f32 %v833, 1.442695
        %v857 = vpow.pop %v856
        %v858 = vmul.f32 %v834, 1.442695
        %v859 = vpow.pop %v858
        %v860 = vmul.f32 %v835, 1.442695
        %v861 = vpow.pop %v860
        %v862 = vmul.f32 %v836, 1.442695
        %v863 = vpow.pop %v862
        %v864 = vmul.f32 %v837, 1.442695
        %v865 = vpow.pop %v864
        %v866 = vmul.f32 %v838, 1.442695
        %v867 = vpow.pop %v866
        %v868 = vmul.f32 %v839, 1.442695
        %v869 = vpow.pop %v868
        %v870 = vmul.f32 %v840, 1.442695
        %v871 = vpow.pop %v870
        %v872 = vmul.f32 %v841, 1.442695
        %v873 = vpow.pop %v872
        %v874 = vsel %vm777, %v843, 0.0
        %875 = vadd.xlane.f32.xlu0 %v874
        %v876 = vpop.xlane.xlu0 %875
        %v877 = vsel %vm777, %v845, 0.0
        %878 = vadd.xlane.f32.xlu0 %v877
        %v879 = vpop.xlane.xlu0 %878
        %v880 = vsel %vm777, %v847, 0.0
        %881 = vadd.xlane.f32.xlu0 %v880
        %v882 = vpop.xlane.xlu0 %881
        %v883 = vsel %vm777, %v849, 0.0
        %884 = vadd.xlane.f32.xlu0 %v883
        %v885 = vpop.xlane.xlu0 %884
        %v886 = vsel %vm777, %v851, 0.0
        %887 = vadd.xlane.f32.xlu0 %v886
        %v888 = vpop.xlane.xlu0 %887
        %v889 = vsel %vm777, %v853, 0.0
        %890 = vadd.xlane.f32.xlu0 %v889
        %v891 = vpop.xlane.xlu0 %890
        %v892 = vsel %vm777, %v855, 0.0
        %893 = vadd.xlane.f32.xlu0 %v892
        %v894 = vpop.xlane.xlu0 %893
        %v895 = vsel %vm777, %v857, 0.0
        %896 = vadd.xlane.f32.xlu0 %v895
        %v897 = vpop.xlane.xlu0 %896
        %v898 = vsel %vm777, %v859, 0.0
        %899 = vadd.xlane.f32.xlu0 %v898
        %v900 = vpop.xlane.xlu0 %899
        %v901 = vsel %vm777, %v861, 0.0
        %902 = vadd.xlane.f32.xlu0 %v901
        %v903 = vpop.xlane.xlu0 %902
        %v904 = vsel %vm777, %v863, 0.0
        %905 = vadd.xlane.f32.xlu0 %v904
        %v906 = vpop.xlane.xlu0 %905
        %v907 = vsel %vm777, %v865, 0.0
        %908 = vadd.xlane.f32.xlu0 %v907
        %v909 = vpop.xlane.xlu0 %908
        %v910 = vsel %vm777, %v867, 0.0
        %911 = vadd.xlane.f32.xlu0 %v910
        %v912 = vpop.xlane.xlu0 %911
        %v913 = vsel %vm777, %v869, 0.0
        %914 = vadd.xlane.f32.xlu0 %v913
        %v915 = vpop.xlane.xlu0 %914
        %v916 = vsel %vm777, %v871, 0.0
        %917 = vadd.xlane.f32.xlu0 %v916
        %v918 = vpop.xlane.xlu0 %917
        %v919 = vsel %vm777, %v873, 0.0
        %920 = vadd.xlane.f32.xlu0 %v919
        %v921 = vpop.xlane.xlu0 %920
        %v922 = vrcp.pop %v876
        %v923 = vrcp.pop %v879
        %v924 = vrcp.pop %v882
        %v925 = vrcp.pop %v885
        %v926 = vrcp.pop %v888
        %v927 = vrcp.pop %v891
        %v928 = vrcp.pop %v894
        %v929 = vrcp.pop %v897
        %v930 = vrcp.pop %v900
        %v931 = vrcp.pop %v903
        %v932 = vrcp.pop %v906
        %v933 = vrcp.pop %v909
        %v934 = vrcp.pop %v912
        %v935 = vrcp.pop %v915
        %v936 = vrcp.pop %v918
        %v937 = vrcp.pop %v921
        %v939 = vsel %vm777, %v843, 0
        %v942 = vsel %vm777, %v845, 0
        %v945 = vsel %vm777, %v847, 0
        %v948 = vsel %vm777, %v849, 0
        %v951 = vsel %vm777, %v851, 0
        %v954 = vsel %vm777, %v853, 0
        %v957 = vsel %vm777, %v855, 0
        %v960 = vsel %vm777, %v857, 0
        %v963 = vsel %vm777, %v859, 0
        %v966 = vsel %vm777, %v861, 0
        %v969 = vsel %vm777, %v863, 0
        %v972 = vsel %vm777, %v865, 0
        %v975 = vsel %vm777, %v867, 0
        %v978 = vsel %vm777, %v869, 0
        %v981 = vsel %vm777, %v871, 0
        %v984 = vsel %vm777, %v873, 0
        %986 = vmatprep.subr.mxu0 0.0
        %987 = vmatpush1.msra.mxu0 0.0
        %988 = vmatprep.subr.mxu0 0.0
        %989 = vmatpush1.msra.mxu0 0.0
        %990 = vmatprep.subr.mxu0 0.0
        %991 = vmatpush1.msra.mxu0 0.0
        %992 = vmatprep.subr.mxu0 0.0
        %993 = vmatpush1.msra.mxu0 0.0
        %994 = vmatprep.subr.mxu0 0.0
        %995 = vmatpush1.msra.mxu0 0.0
        %996 = vmatprep.subr.mxu0 0.0
        %997 = vmatpush1.msra.mxu0 0.0
        %998 = vmatprep.subr.mxu0 0.0
        %999 = vmatpush1.msra.mxu0 0.0
        %1000 = vmatprep.subr.mxu0 0.0
        %1001 = vmatpush1.msra.mxu0 0.0
        %1002 = vmatprep.subr.mxu0 0.0
        %1003 = vmatpush1.msra.mxu0 %v494
        %1004 = vmatprep.subr.mxu0 0.0
        %1005 = vmatpush1.msra.mxu0 %v493
        %1006 = vmatprep.subr.mxu0 0.0
        %1007 = vmatpush1.msra.mxu0 %v492
        %1008 = vmatprep.subr.mxu0 0.0
        %1009 = vmatpush1.msra.mxu0 %v491
        %1010 = vmatprep.subr.mxu0 0.0
        %1011 = vmatpush1.msra.mxu0 %v490
        %1012 = vmatprep.subr.mxu0 0.0
        %1013 = vmatpush1.msra.mxu0 %v489
        %1014 = vmatprep.subr.mxu0 0.0
        %1015 = vmatpush1.msra.mxu0 %v488
        %1016 = vmatprep.subr.mxu0 0.0
        %1017 = vmatpush1.msra.mxu0 %v487
        %1018 = vmatprep.subr.mxu0 0.0
        %1019 = vmatpush2.msra.mxu0 0.0
        %1020 = vmatprep.subr.mxu0 0.0
        %1021 = vmatpush2.msra.mxu0 0.0
        %1022 = vmatprep.subr.mxu0 0.0
        %1023 = vmatpush2.msra.mxu0 0.0
        %1024 = vmatprep.subr.mxu0 0.0
        %1025 = vmatpush2.msra.mxu0 0.0
        %1026 = vmatprep.subr.mxu0 0.0
        %1027 = vmatpush2.msra.mxu0 0.0
        %1028 = vmatprep.subr.mxu0 0.0
        %1029 = vmatpush2.msra.mxu0 0.0
        %1030 = vmatprep.subr.mxu0 0.0
        %1031 = vmatpush2.msra.mxu0 0.0
        %1032 = vmatprep.subr.mxu0 0.0
        %1033 = vmatpush2.msra.mxu0 0.0
        %1034 = vmatprep.subr.mxu0 0.0
        %1035 = vmatpush2.msra.mxu0 0.0
        %1036 = vmatprep.subr.mxu0 0.0
        %1037 = vmatpush2.msra.mxu0 0.0
        %1038 = vmatprep.subr.mxu0 0.0
        %1039 = vmatpush2.msra.mxu0 0.0
        %1040 = vmatprep.subr.mxu0 0.0
        %1041 = vmatpush2.msra.mxu0 0.0
        %1042 = vmatprep.subr.mxu0 0.0
        %1043 = vmatpush2.msra.mxu0 0.0
        %1044 = vmatprep.subr.mxu0 0.0
        %1045 = vmatpush2.msra.mxu0 0.0
        %1046 = vmatprep.subr.mxu0 0.0
        %1047 = vmatpush2.msra.mxu0 0.0
        %1048 = vmatprep.subr.mxu0 0.0
        %1049 = vmatpush2.msra.mxu0 0.0
        %1050 = vmatprep.mubr.f32.mxu0 0.0
        %1051 = vmatmul.mubr.f32.gmra.mxu0 %v939
        %v1052 = vpop.f32.mrf.mxu0
        %v1053 = vadd.f32 0.0, %v1052
        %v1054 = vpop.f32.mrf.mxu0
        %1055 = vmatprep.mubr.f32.mxu0 0.0
        %1056 = vmatmul.mubr.f32.gmra.mxu0 %v942
        %v1057 = vpop.f32.mrf.mxu0
        %v1058 = vadd.f32 0.0, %v1057
        %v1059 = vpop.f32.mrf.mxu0
        %1060 = vmatprep.mubr.f32.mxu0 0.0
        %1061 = vmatmul.mubr.f32.gmra.mxu0 %v945
        %v1062 = vpop.f32.mrf.mxu0
        %v1063 = vadd.f32 0.0, %v1062
        %v1064 = vpop.f32.mrf.mxu0
        %1065 = vmatprep.mubr.f32.mxu0 0.0
        %1066 = vmatmul.mubr.f32.gmra.mxu0 %v948
        %v1067 = vpop.f32.mrf.mxu0
        %v1068 = vadd.f32 0.0, %v1067
        %v1069 = vpop.f32.mrf.mxu0
        %1070 = vmatprep.mubr.f32.mxu0 0.0
        %1071 = vmatmul.mubr.f32.gmra.mxu0 %v951
        %v1072 = vpop.f32.mrf.mxu0
        %v1073 = vadd.f32 0.0, %v1072
        %v1074 = vpop.f32.mrf.mxu0
        %1075 = vmatprep.mubr.f32.mxu0 0.0
        %1076 = vmatmul.mubr.f32.gmra.mxu0 %v954
        %v1077 = vpop.f32.mrf.mxu0
        %v1078 = vadd.f32 0.0, %v1077
        %v1079 = vpop.f32.mrf.mxu0
        %1080 = vmatprep.mubr.f32.mxu0 0.0
        %1081 = vmatmul.mubr.f32.gmra.mxu0 %v957
        %v1082 = vpop.f32.mrf.mxu0
        %v1083 = vadd.f32 0.0, %v1082
        %v1084 = vpop.f32.mrf.mxu0
        %1085 = vmatprep.mubr.f32.mxu0 0.0
        %1086 = vmatmul.mubr.f32.gmra.mxu0 %v960
        %v1087 = vpop.f32.mrf.mxu0
        %v1088 = vadd.f32 0.0, %v1087
        %v1089 = vpop.f32.mrf.mxu0
        %1090 = vmatprep.mubr.f32.mxu0 0.0
        %1091 = vmatmul.mubr.f32.gmra.mxu0 %v963
        %v1092 = vpop.f32.mrf.mxu0
        %v1093 = vadd.f32 0.0, %v1092
        %v1094 = vpop.f32.mrf.mxu0
        %1095 = vmatprep.mubr.f32.mxu0 0.0
        %1096 = vmatmul.mubr.f32.gmra.mxu0 %v966
        %v1097 = vpop.f32.mrf.mxu0
        %v1098 = vadd.f32 0.0, %v1097
        %v1099 = vpop.f32.mrf.mxu0
        %1100 = vmatprep.mubr.f32.mxu0 0.0
        %1101 = vmatmul.mubr.f32.gmra.mxu0 %v969
        %v1102 = vpop.f32.mrf.mxu0
        %v1103 = vadd.f32 0.0, %v1102
        %v1104 = vpop.f32.mrf.mxu0
        %1105 = vmatprep.mubr.f32.mxu0 0.0
        %1106 = vmatmul.mubr.f32.gmra.mxu0 %v972
        %v1107 = vpop.f32.mrf.mxu0
        %v1108 = vadd.f32 0.0, %v1107
        %v1109 = vpop.f32.mrf.mxu0
        %1110 = vmatprep.mubr.f32.mxu0 0.0
        %1111 = vmatmul.mubr.f32.gmra.mxu0 %v975
        %v1112 = vpop.f32.mrf.mxu0
        %v1113 = vadd.f32 0.0, %v1112
        %v1114 = vpop.f32.mrf.mxu0
        %1115 = vmatprep.mubr.f32.mxu0 0.0
        %1116 = vmatmul.mubr.f32.gmra.mxu0 %v978
        %v1117 = vpop.f32.mrf.mxu0
        %v1118 = vadd.f32 0.0, %v1117
        %v1119 = vpop.f32.mrf.mxu0
        %1120 = vmatprep.mubr.f32.mxu0 0.0
        %1121 = vmatmul.mubr.f32.gmra.mxu0 %v981
        %v1122 = vpop.f32.mrf.mxu0
        %v1123 = vadd.f32 0.0, %v1122
        %v1124 = vpop.f32.mrf.mxu0
        %1125 = vmatprep.mubr.f32.mxu0 0.0
        %1126 = vmatmul.mubr.f32.gmra.mxu0 %v984
        %v1127 = vpop.f32.mrf.mxu0
        %v1128 = vadd.f32 0.0, %v1127
        %v1129 = vpop.f32.mrf.mxu0
        %1130 = vdwg.mxu0
        %v1131 = vmul.f32 %v1053, %v922
        %v1132 = vmul.f32 %v1058, %v923
        %v1133 = vmul.f32 %v1063, %v924
        %v1134 = vmul.f32 %v1068, %v925
        %v1135 = vmul.f32 %v1073, %v926
        %v1136 = vmul.f32 %v1078, %v927
        %v1137 = vmul.f32 %v1083, %v928
        %v1138 = vmul.f32 %v1088, %v929
        %v1139 = vmul.f32 %v1093, %v930
        %v1140 = vmul.f32 %v1098, %v931
        %v1141 = vmul.f32 %v1103, %v932
        %v1142 = vmul.f32 %v1108, %v933
        %v1143 = vmul.f32 %v1113, %v934
        %v1144 = vmul.f32 %v1118, %v935
        %v1145 = vmul.f32 %v1123, %v936
        %v1146 = vmul.f32 %v1128, %v937
        %v1147 = vmax.f32 %v778, %v790
        %v1148 = vmax.f32 %v781, %v793
        %v1149 = vmax.f32 %v784, %v796
        %v1150 = vmax.f32 %v787, %v799
        %v1151 = vmax.f32 %v1147, %v802
        %v1152 = vmax.f32 %v1148, %v805
        %v1153 = vmax.f32 %v1149, %v808
        %v1154 = vmax.f32 %v1150, %v811
        %v1155 = vmax.f32 %v1151, %v814
        %v1156 = vmax.f32 %v1152, %v817
        %v1157 = vmax.f32 %v1153, %v820
        %v1158 = vmax.f32 %v1154, %v823
        %v1159 = vmax.f32 %v1155, %v1156
        %v1160 = vmax.f32 %v1157, %v1158
        %v1161 = vmax.f32 %v1159, %v1160
        %v1162 = vrot.slane %v1161, 4
        %v1163 = vmax.f32 %v1161, %v1162
        %v1164 = vrot.slane %v1163, 2
        %v1165 = vmax.f32 %v1163, %v1164
        %v1166 = vrot.slane %v1165, 1
        %v1167 = vmax.f32 %v1165, %v1166
        %v1168 = vsub.f32 %v699, %v1167
        %v1169 = vsub.f32 %v704, %v1167
        %v1170 = vsub.f32 %v709, %v1167
        %v1171 = vsub.f32 %v714, %v1167
        %v1172 = vsub.f32 %v719, %v1167
        %v1173 = vsub.f32 %v724, %v1167
        %v1174 = vsub.f32 %v729, %v1167
        %v1175 = vsub.f32 %v734, %v1167
        %v1176 = vsub.f32 %v739, %v1167
        %v1177 = vsub.f32 %v744, %v1167
        %v1178 = vsub.f32 %v749, %v1167
        %v1179 = vsub.f32 %v754, %v1167
        %v1180 = vsub.f32 %v759, %v1167
        %v1181 = vsub.f32 %v764, %v1167
        %v1182 = vsub.f32 %v769, %v1167
        %v1183 = vsub.f32 %v774, %v1167
        %v1184 = vmul.f32 %v1168, 1.442695
        %v1185 = vpow.pop %v1184
        %v1186 = vmul.f32 %v1169, 1.442695
        %v1187 = vpow.pop %v1186
        %v1188 = vmul.f32 %v1170, 1.442695
        %v1189 = vpow.pop %v1188
        %v1190 = vmul.f32 %v1171, 1.442695
        %v1191 = vpow.pop %v1190
        %v1192 = vmul.f32 %v1172, 1.442695
        %v1193 = vpow.pop %v1192
        %v1194 = vmul.f32 %v1173, 1.442695
        %v1195 = vpow.pop %v1194
        %v1196 = vmul.f32 %v1174, 1.442695
        %v1197 = vpow.pop %v1196
        %v1198 = vmul.f32 %v1175, 1.442695
        %v1199 = vpow.pop %v1198
        %v1200 = vmul.f32 %v1176, 1.442695
        %v1201 = vpow.pop %v1200
        %v1202 = vmul.f32 %v1177, 1.442695
        %v1203 = vpow.pop %v1202
        %v1204 = vmul.f32 %v1178, 1.442695
        %v1205 = vpow.pop %v1204
        %v1206 = vmul.f32 %v1179, 1.442695
        %v1207 = vpow.pop %v1206
        %v1208 = vmul.f32 %v1180, 1.442695
        %v1209 = vpow.pop %v1208
        %v1210 = vmul.f32 %v1181, 1.442695
        %v1211 = vpow.pop %v1210
        %v1212 = vmul.f32 %v1182, 1.442695
        %v1213 = vpow.pop %v1212
        %v1214 = vmul.f32 %v1183, 1.442695
        %v1215 = vpow.pop %v1214
        %1216 = vxpose.xlu0.b32.start [1/16] %v1185, 128
        %1217 = vxpose.xlu0.b32.cont [2/16] %v1187, 128
        %1218 = vxpose.xlu0.b32.cont [3/16] %v1189, 128
        %1219 = vxpose.xlu0.b32.cont [4/16] %v1191, 128
        %1220 = vxpose.xlu0.b32.cont [5/16] %v1193, 128
        %1221 = vxpose.xlu0.b32.cont [6/16] %v1195, 128
        %1222 = vxpose.xlu0.b32.cont [7/16] %v1197, 128
        %1223 = vxpose.xlu0.b32.cont [8/16] %v1199, 128
        %1224 = vxpose.xlu0.b32.cont [9/16] %v1201, 128
        %1225 = vxpose.xlu0.b32.cont [10/16] %v1203, 128
        %1226 = vxpose.xlu0.b32.cont [11/16] %v1205, 128
        %1227 = vxpose.xlu0.b32.cont [12/16] %v1207, 128
        %1228 = vxpose.xlu0.b32.cont [13/16] %v1209, 128
        %1229 = vxpose.xlu0.b32.cont [14/16] %v1211, 128
        %1230 = vxpose.xlu0.b32.cont [15/16] %v1213, 128
        %1231 = vxpose.xlu0.b32.end [16/16] %v1215, 128
        %v1232 = vpop.trf.xlu0
        %v1233 = vpop.trf.xlu0
        %v1234 = vpop.trf.xlu0
        %v1235 = vpop.trf.xlu0
        %v1236 = vpop.trf.xlu0
        %v1237 = vpop.trf.xlu0
        %v1238 = vpop.trf.xlu0
        %v1239 = vpop.trf.xlu0
        %v1240 = vpop.trf.xlu0
        %v1241 = vpop.trf.xlu0
        %v1242 = vpop.trf.xlu0
        %v1243 = vpop.trf.xlu0
        %v1244 = vpop.trf.xlu0
        %v1245 = vpop.trf.xlu0
        %v1246 = vpop.trf.xlu0
        %v1247 = vpop.trf.xlu0
        %1248 = vmatprep.subr.mxu0 0.0
        %1249 = vmatpush1.msra.mxu0 1.0
        %1250 = vmatprep.subr.mxu0 0.0
        %1251 = vmatpush1.msra.mxu0 1.0
        %1252 = vmatprep.subr.mxu0 0.0
        %1253 = vmatpush1.msra.mxu0 1.0
        %1254 = vmatprep.subr.mxu0 0.0
        %1255 = vmatpush1.msra.mxu0 1.0
        %1256 = vmatprep.subr.mxu0 0.0
        %1257 = vmatpush1.msra.mxu0 1.0
        %1258 = vmatprep.subr.mxu0 0.0
        %1259 = vmatpush1.msra.mxu0 1.0
        %1260 = vmatprep.subr.mxu0 0.0
        %1261 = vmatpush1.msra.mxu0 1.0
        %1262 = vmatprep.subr.mxu0 0.0
        %1263 = vmatpush1.msra.mxu0 1.0
        %1264 = vmatprep.subr.mxu0 0.0
        %1265 = vmatpush1.msra.mxu0 1.0
        %1266 = vmatprep.subr.mxu0 0.0
        %1267 = vmatpush1.msra.mxu0 1.0
        %1268 = vmatprep.subr.mxu0 0.0
        %1269 = vmatpush1.msra.mxu0 1.0
        %1270 = vmatprep.subr.mxu0 0.0
        %1271 = vmatpush1.msra.mxu0 1.0
        %1272 = vmatprep.subr.mxu0 0.0
        %1273 = vmatpush1.msra.mxu0 1.0
        %1274 = vmatprep.subr.mxu0 0.0
        %1275 = vmatpush1.msra.mxu0 1.0
        %1276 = vmatprep.subr.mxu0 0.0
        %1277 = vmatpush1.msra.mxu0 1.0
        %1278 = vmatprep.subr.mxu0 0.0
        %1279 = vmatpush1.msra.mxu0 1.0
        %1280 = vmatprep.subr.mxu0 0.0
        %1281 = vmatpush2.msra.mxu0 0.0
        %1282 = vmatprep.subr.mxu0 0.0
        %1283 = vmatpush2.msra.mxu0 0.0
        %1284 = vmatprep.subr.mxu0 0.0
        %1285 = vmatpush2.msra.mxu0 0.0
        %1286 = vmatprep.subr.mxu0 0.0
        %1287 = vmatpush2.msra.mxu0 0.0
        %1288 = vmatprep.subr.mxu0 0.0
        %1289 = vmatpush2.msra.mxu0 0.0
        %1290 = vmatprep.subr.mxu0 0.0
        %1291 = vmatpush2.msra.mxu0 0.0
        %1292 = vmatprep.subr.mxu0 0.0
        %1293 = vmatpush2.msra.mxu0 0.0
        %1294 = vmatprep.subr.mxu0 0.0
        %1295 = vmatpush2.msra.mxu0 0.0
        %1296 = vmatprep.subr.mxu0 0.0
        %1297 = vmatpush2.msra.mxu0 0.0
        %1298 = vmatprep.subr.mxu0 0.0
        %1299 = vmatpush2.msra.mxu0 0.0
        %1300 = vmatprep.subr.mxu0 0.0
        %1301 = vmatpush2.msra.mxu0 0.0
        %1302 = vmatprep.subr.mxu0 0.0
        %1303 = vmatpush2.msra.mxu0 0.0
        %1304 = vmatprep.subr.mxu0 0.0
        %1305 = vmatpush2.msra.mxu0 0.0
        %1306 = vmatprep.subr.mxu0 0.0
        %1307 = vmatpush2.msra.mxu0 0.0
        %1308 = vmatprep.subr.mxu0 0.0
        %1309 = vmatpush2.msra.mxu0 0.0
        %1310 = vmatprep.subr.mxu0 0.0
        %1311 = vmatpush2.msra.mxu0 0.0
        %1312 = vmatprep.mubr.f32.mxu0 0.0
        %1313 = vmatmul.mubr.f32.gmra.mxu0 %v1232
        %v1314 = vpop.f32.mrf.mxu0
        %v1315 = vadd.f32 0.0, %v1314
        %v1316 = vpop.f32.mrf.mxu0
        %1317 = vmatprep.mubr.f32.mxu0 0.0
        %1318 = vmatmul.mubr.f32.gmra.mxu0 %v1233
        %v1319 = vpop.f32.mrf.mxu0
        %v1320 = vadd.f32 0.0, %v1319
        %v1321 = vpop.f32.mrf.mxu0
        %1322 = vmatprep.mubr.f32.mxu0 0.0
        %1323 = vmatmul.mubr.f32.gmra.mxu0 %v1234
        %v1324 = vpop.f32.mrf.mxu0
        %v1325 = vadd.f32 0.0, %v1324
        %v1326 = vpop.f32.mrf.mxu0
        %1327 = vmatprep.mubr.f32.mxu0 0.0
        %1328 = vmatmul.mubr.f32.gmra.mxu0 %v1235
        %v1329 = vpop.f32.mrf.mxu0
        %v1330 = vadd.f32 0.0, %v1329
        %v1331 = vpop.f32.mrf.mxu0
        %1332 = vmatprep.mubr.f32.mxu0 0.0
        %1333 = vmatmul.mubr.f32.gmra.mxu0 %v1236
        %v1334 = vpop.f32.mrf.mxu0
        %v1335 = vadd.f32 0.0, %v1334
        %v1336 = vpop.f32.mrf.mxu0
        %1337 = vmatprep.mubr.f32.mxu0 0.0
        %1338 = vmatmul.mubr.f32.gmra.mxu0 %v1237
        %v1339 = vpop.f32.mrf.mxu0
        %v1340 = vadd.f32 0.0, %v1339
        %v1341 = vpop.f32.mrf.mxu0
        %1342 = vmatprep.mubr.f32.mxu0 0.0
        %1343 = vmatmul.mubr.f32.gmra.mxu0 %v1238
        %v1344 = vpop.f32.mrf.mxu0
        %v1345 = vadd.f32 0.0, %v1344
        %v1346 = vpop.f32.mrf.mxu0
        %1347 = vmatprep.mubr.f32.mxu0 0.0
        %1348 = vmatmul.mubr.f32.gmra.mxu0 %v1239
        %v1349 = vpop.f32.mrf.mxu0
        %v1350 = vadd.f32 0.0, %v1349
        %v1351 = vpop.f32.mrf.mxu0
        %1352 = vdwg.mxu0
        %1353 = vmatprep.subr.mxu0 0.0
        %1354 = vmatpush1.msra.mxu0 %v510
        %1355 = vmatprep.subr.mxu0 0.0
        %1356 = vmatpush1.msra.mxu0 %v509
        %1357 = vmatprep.subr.mxu0 0.0
        %1358 = vmatpush1.msra.mxu0 %v508
        %1359 = vmatprep.subr.mxu0 0.0
        %1360 = vmatpush1.msra.mxu0 %v507
        %1361 = vmatprep.subr.mxu0 0.0
        %1362 = vmatpush1.msra.mxu0 %v506
        %1363 = vmatprep.subr.mxu0 0.0
        %1364 = vmatpush1.msra.mxu0 %v505
        %1365 = vmatprep.subr.mxu0 0.0
        %1366 = vmatpush1.msra.mxu0 %v504
        %1367 = vmatprep.subr.mxu0 0.0
        %1368 = vmatpush1.msra.mxu0 %v503
        %1369 = vmatprep.subr.mxu0 0.0
        %1370 = vmatpush1.msra.mxu0 %v502
        %1371 = vmatprep.subr.mxu0 0.0
        %1372 = vmatpush1.msra.mxu0 %v501
        %1373 = vmatprep.subr.mxu0 0.0
        %1374 = vmatpush1.msra.mxu0 %v500
        %1375 = vmatprep.subr.mxu0 0.0
        %1376 = vmatpush1.msra.mxu0 %v499
        %1377 = vmatprep.subr.mxu0 0.0
        %1378 = vmatpush1.msra.mxu0 %v498
        %1379 = vmatprep.subr.mxu0 0.0
        %1380 = vmatpush1.msra.mxu0 %v497
        %1381 = vmatprep.subr.mxu0 0.0
        %1382 = vmatpush1.msra.mxu0 %v496
        %1383 = vmatprep.subr.mxu0 0.0
        %1384 = vmatpush1.msra.mxu0 %v495
        %1385 = vmatprep.subr.mxu0 0.0
        %1386 = vmatpush2.msra.mxu0 0.0
        %1387 = vmatprep.subr.mxu0 0.0
        %1388 = vmatpush2.msra.mxu0 0.0
        %1389 = vmatprep.subr.mxu0 0.0
        %1390 = vmatpush2.msra.mxu0 0.0
        %1391 = vmatprep.subr.mxu0 0.0
        %1392 = vmatpush2.msra.mxu0 0.0
        %1393 = vmatprep.subr.mxu0 0.0
        %1394 = vmatpush2.msra.mxu0 0.0
        %1395 = vmatprep.subr.mxu0 0.0
        %1396 = vmatpush2.msra.mxu0 0.0
        %1397 = vmatprep.subr.mxu0 0.0
        %1398 = vmatpush2.msra.mxu0 0.0
        %1399 = vmatprep.subr.mxu0 0.0
        %1400 = vmatpush2.msra.mxu0 0.0
        %1401 = vmatprep.subr.mxu0 0.0
        %1402 = vmatpush2.msra.mxu0 0.0
        %1403 = vmatprep.subr.mxu0 0.0
        %1404 = vmatpush2.msra.mxu0 0.0
        %1405 = vmatprep.subr.mxu0 0.0
        %1406 = vmatpush2.msra.mxu0 0.0
        %1407 = vmatprep.subr.mxu0 0.0
        %1408 = vmatpush2.msra.mxu0 0.0
        %1409 = vmatprep.subr.mxu0 0.0
        %1410 = vmatpush2.msra.mxu0 0.0
        %1411 = vmatprep.subr.mxu0 0.0
        %1412 = vmatpush2.msra.mxu0 0.0
        %1413 = vmatprep.subr.mxu0 0.0
        %1414 = vmatpush2.msra.mxu0 0.0
        %1415 = vmatprep.subr.mxu0 0.0
        %1416 = vmatpush2.msra.mxu0 0.0
        %1417 = vmatprep.mubr.f32.mxu0 0.0
        %1418 = vmatmul.mubr.f32.gmra.mxu0 %v1232
        %v1419 = vpop.f32.mrf.mxu0
        %v1420 = vadd.f32 0.0, %v1419
        %v1421 = vpop.f32.mrf.mxu0
        %1422 = vmatprep.mubr.f32.mxu0 0.0
        %1423 = vmatmul.mubr.f32.gmra.mxu0 %v1233
        %v1424 = vpop.f32.mrf.mxu0
        %v1425 = vadd.f32 0.0, %v1424
        %v1426 = vpop.f32.mrf.mxu0
        %1427 = vmatprep.mubr.f32.mxu0 0.0
        %1428 = vmatmul.mubr.f32.gmra.mxu0 %v1234
        %v1429 = vpop.f32.mrf.mxu0
        %v1430 = vadd.f32 0.0, %v1429
        %v1431 = vpop.f32.mrf.mxu0
        %1432 = vmatprep.mubr.f32.mxu0 0.0
        %1433 = vmatmul.mubr.f32.gmra.mxu0 %v1235
        %v1434 = vpop.f32.mrf.mxu0
        %v1435 = vadd.f32 0.0, %v1434
        %v1436 = vpop.f32.mrf.mxu0
        %1437 = vmatprep.mubr.f32.mxu0 0.0
        %1438 = vmatmul.mubr.f32.gmra.mxu0 %v1236
        %v1439 = vpop.f32.mrf.mxu0
        %v1440 = vadd.f32 0.0, %v1439
        %v1441 = vpop.f32.mrf.mxu0
        %1442 = vmatprep.mubr.f32.mxu0 0.0
        %1443 = vmatmul.mubr.f32.gmra.mxu0 %v1237
        %v1444 = vpop.f32.mrf.mxu0
        %v1445 = vadd.f32 0.0, %v1444
        %v1446 = vpop.f32.mrf.mxu0
        %1447 = vmatprep.mubr.f32.mxu0 0.0
        %1448 = vmatmul.mubr.f32.gmra.mxu0 %v1238
        %v1449 = vpop.f32.mrf.mxu0
        %v1450 = vadd.f32 0.0, %v1449
        %v1451 = vpop.f32.mrf.mxu0
        %1452 = vmatprep.mubr.f32.mxu0 0.0
        %1453 = vmatmul.mubr.f32.gmra.mxu0 %v1239
        %v1454 = vpop.f32.mrf.mxu0
        %v1455 = vadd.f32 0.0, %v1454
        %v1456 = vpop.f32.mrf.mxu0
        %1457 = vdwg.mxu0
        %v1458 = vrcp.pop %v1315
        %v1459 = vrcp.pop %v1320
        %v1460 = vrcp.pop %v1325
        %v1461 = vrcp.pop %v1330
        %v1462 = vrcp.pop %v1335
        %v1463 = vrcp.pop %v1340
        %v1464 = vrcp.pop %v1345
        %v1465 = vrcp.pop %v1350
        %1467 = vset.pattern.permute.xlu0 0
        %1468 = vperm.xlu0 %1467, %v1458
        %v1469 = vpop.permute.xlu0 %1468
        %1472 = vset.pattern.permute.xlu0 0
        %1473 = vperm.xlu0 %1472, %v1459
        %v1474 = vpop.permute.xlu0 %1473
        %1477 = vset.pattern.permute.xlu0 0
        %1478 = vperm.xlu0 %1477, %v1460
        %v1479 = vpop.permute.xlu0 %1478
        %1482 = vset.pattern.permute.xlu0 0
        %1483 = vperm.xlu0 %1482, %v1461
        %v1484 = vpop.permute.xlu0 %1483
        %1487 = vset.pattern.permute.xlu0 0
        %1488 = vperm.xlu0 %1487, %v1462
        %v1489 = vpop.permute.xlu0 %1488
        %1492 = vset.pattern.permute.xlu0 0
        %1493 = vperm.xlu0 %1492, %v1463
        %v1494 = vpop.permute.xlu0 %1493
        %1497 = vset.pattern.permute.xlu0 0
        %1498 = vperm.xlu0 %1497, %v1464
        %v1499 = vpop.permute.xlu0 %1498
        %1502 = vset.pattern.permute.xlu0 0
        %1503 = vperm.xlu0 %1502, %v1465
        %v1504 = vpop.permute.xlu0 %1503
        %v1506 = vmul.f32 %v1420, %v1469
        %v1507 = vmul.f32 %v1425, %v1474
        %v1508 = vmul.f32 %v1430, %v1479
        %v1509 = vmul.f32 %v1435, %v1484
        %v1510 = vmul.f32 %v1440, %v1489
        %v1511 = vmul.f32 %v1445, %v1494
        %v1512 = vmul.f32 %v1450, %v1499
        %v1513 = vmul.f32 %v1455, %v1504
        %v1514 = vld [vmem:[%s8] sm:$0xff]
        %v1515 = vld [vmem:[%s8 + $0x8] sm:$0xff]
        %v1516 = vld [vmem:[%s9] sm:$0x1]
        %v1518 = vlaneseq
        %v1519 = vshrl.u32 %v1518, 7
        %v1520 = vsub.s32 0, %v1519
        %v1521 = vrot.slane %v1516, %v1520
        %v1524 = vsel %vm583, %v1506, 0
        %v1527 = vsel %vm583, %v1507, 0
        %v1530 = vsel %vm583, %v1508, 0
        %v1533 = vsel %vm583, %v1509, 0
        %v1536 = vsel %vm583, %v1510, 0
        %v1539 = vsel %vm583, %v1511, 0
        %v1542 = vsel %vm583, %v1512, 0
        %v1545 = vsel %vm583, %v1513, 0
        %1547 = vmatprep.subr.mxu0 0.0
        %1548 = vmatpush1.msra.mxu0 0.0
        %1549 = vmatprep.subr.mxu0 0.0
        %1550 = vmatpush1.msra.mxu0 0.0
        %1551 = vmatprep.subr.mxu0 0.0
        %1552 = vmatpush1.msra.mxu0 0.0
        %1553 = vmatprep.subr.mxu0 0.0
        %1554 = vmatpush1.msra.mxu0 0.0
        %1555 = vmatprep.subr.mxu0 0.0
        %1556 = vmatpush1.msra.mxu0 0.0
        %1557 = vmatprep.subr.mxu0 0.0
        %1558 = vmatpush1.msra.mxu0 0.0
        %1559 = vmatprep.subr.mxu0 0.0
        %1560 = vmatpush1.msra.mxu0 0.0
        %1561 = vmatprep.subr.mxu0 0.0
        %1562 = vmatpush1.msra.mxu0 0.0
        %1563 = vmatprep.subr.mxu0 0.0
        %1564 = vmatpush1.msra.mxu0 0.0
        %1565 = vmatprep.subr.mxu0 0.0
        %1566 = vmatpush1.msra.mxu0 0.0
        %1567 = vmatprep.subr.mxu0 0.0
        %1568 = vmatpush1.msra.mxu0 0.0
        %1569 = vmatprep.subr.mxu0 0.0
        %1570 = vmatpush1.msra.mxu0 0.0
        %1571 = vmatprep.subr.mxu0 0.0
        %1572 = vmatpush1.msra.mxu0 0.0
        %1573 = vmatprep.subr.mxu0 0.0
        %1574 = vmatpush1.msra.mxu0 0.0
        %1575 = vmatprep.subr.mxu0 0.0
        %1576 = vmatpush1.msra.mxu0 %v1515
        %1577 = vmatprep.subr.mxu0 0.0
        %1578 = vmatpush1.msra.mxu0 %v1514
        %1579 = vmatprep.subr.mxu0 0.0
        %1580 = vmatpush2.msra.mxu0 0.0
        %1581 = vmatprep.subr.mxu0 0.0
        %1582 = vmatpush2.msra.mxu0 0.0
        %1583 = vmatprep.subr.mxu0 0.0
        %1584 = vmatpush2.msra.mxu0 0.0
        %1585 = vmatprep.subr.mxu0 0.0
        %1586 = vmatpush2.msra.mxu0 0.0
        %1587 = vmatprep.subr.mxu0 0.0
        %1588 = vmatpush2.msra.mxu0 0.0
        %1589 = vmatprep.subr.mxu0 0.0
        %1590 = vmatpush2.msra.mxu0 0.0
        %1591 = vmatprep.subr.mxu0 0.0
        %1592 = vmatpush2.msra.mxu0 0.0
        %1593 = vmatprep.subr.mxu0 0.0
        %1594 = vmatpush2.msra.mxu0 0.0
        %1595 = vmatprep.subr.mxu0 0.0
        %1596 = vmatpush2.msra.mxu0 0.0
        %1597 = vmatprep.subr.mxu0 0.0
        %1598 = vmatpush2.msra.mxu0 0.0
        %1599 = vmatprep.subr.mxu0 0.0
        %1600 = vmatpush2.msra.mxu0 0.0
        %1601 = vmatprep.subr.mxu0 0.0
        %1602 = vmatpush2.msra.mxu0 0.0
        %1603 = vmatprep.subr.mxu0 0.0
        %1604 = vmatpush2.msra.mxu0 0.0
        %1605 = vmatprep.subr.mxu0 0.0
        %1606 = vmatpush2.msra.mxu0 0.0
        %1607 = vmatprep.subr.mxu0 0.0
        %1608 = vmatpush2.msra.mxu0 0.0
        %1609 = vmatprep.subr.mxu0 0.0
        %1610 = vmatpush2.msra.mxu0 0.0
        %1611 = vmatprep.mubr.f32.mxu0 0.0
        %1612 = vmatmul.mubr.f32.gmra.mxu0 %v1524
        %v1613 = vpop.f32.mrf.mxu0
        %v1614 = vadd.f32 %v1521, %v1613
        %v1615 = vpop.f32.mrf.mxu0
        %1616 = vmatprep.mubr.f32.mxu0 0.0
        %1617 = vmatmul.mubr.f32.gmra.mxu0 %v1527
        %v1618 = vpop.f32.mrf.mxu0
        %v1619 = vadd.f32 %v1521, %v1618
        %v1620 = vpop.f32.mrf.mxu0
        %1621 = vmatprep.mubr.f32.mxu0 0.0
        %1622 = vmatmul.mubr.f32.gmra.mxu0 %v1530
        %v1623 = vpop.f32.mrf.mxu0
        %v1624 = vadd.f32 %v1521, %v1623
        %v1625 = vpop.f32.mrf.mxu0
        %1626 = vmatprep.mubr.f32.mxu0 0.0
        %1627 = vmatmul.mubr.f32.gmra.mxu0 %v1533
        %v1628 = vpop.f32.mrf.mxu0
        %v1629 = vadd.f32 %v1521, %v1628
        %v1630 = vpop.f32.mrf.mxu0
        %1631 = vmatprep.mubr.f32.mxu0 0.0
        %1632 = vmatmul.mubr.f32.gmra.mxu0 %v1536
        %v1633 = vpop.f32.mrf.mxu0
        %v1634 = vadd.f32 %v1521, %v1633
        %v1635 = vpop.f32.mrf.mxu0
        %1636 = vmatprep.mubr.f32.mxu0 0.0
        %1637 = vmatmul.mubr.f32.gmra.mxu0 %v1539
        %v1638 = vpop.f32.mrf.mxu0
        %v1639 = vadd.f32 %v1521, %v1638
        %v1640 = vpop.f32.mrf.mxu0
        %1641 = vmatprep.mubr.f32.mxu0 0.0
        %1642 = vmatmul.mubr.f32.gmra.mxu0 %v1542
        %v1643 = vpop.f32.mrf.mxu0
        %v1644 = vadd.f32 %v1521, %v1643
        %v1645 = vpop.f32.mrf.mxu0
        %1646 = vmatprep.mubr.f32.mxu0 0.0
        %1647 = vmatmul.mubr.f32.gmra.mxu0 %v1545
        %v1648 = vpop.f32.mrf.mxu0
        %v1649 = vadd.f32 %v1521, %v1648
        %v1650 = vpop.f32.mrf.mxu0
        %1651 = vdwg.mxu0
        %v1652 = vld [vmem:[%s472] sm:$0x1]
        %v1654 = vlaneseq
        %v1655 = vshrl.u32 %v1654, 7
        %v1656 = vsub.s32 0, %v1655
        %v1657 = vrot.slane %v1652, %v1656
        %v1659 = vmul.f32 %v1657, %v1614
        %v1660 = vmul.f32 %v1657, %v1619
        %v1661 = vmul.f32 %v1657, %v1624
        %v1662 = vmul.f32 %v1657, %v1629
        %v1663 = vmul.f32 %v1657, %v1634
        %v1664 = vmul.f32 %v1657, %v1639
        %v1665 = vmul.f32 %v1657, %v1644
        %v1666 = vmul.f32 %v1657, %v1649
        %v1667 = vld [vmem:[%s481] sm:$0xff]
        %v1668 = vld [vmem:[%s481 + $0x8] sm:$0xff]
        %v1669 = vld [vmem:[%s481 + $0x10] sm:$0xff]
        %v1670 = vld [vmem:[%s481 + $0x18] sm:$0xff]
        %v1671 = vld [vmem:[%s481 + $0x20] sm:$0xff]
        %v1672 = vld [vmem:[%s481 + $0x28] sm:$0xff]
        %v1673 = vld [vmem:[%s481 + $0x30] sm:$0xff]
        %v1674 = vld [vmem:[%s481 + $0x38] sm:$0xff]
        %v1675 = vadd.f32 %v1659, %v1667
        %v1676 = vadd.f32 %v1660, %v1668
        %v1677 = vadd.f32 %v1661, %v1669
        %v1678 = vadd.f32 %v1662, %v1670
        %v1679 = vadd.f32 %v1663, %v1671
        %v1680 = vadd.f32 %v1664, %v1672
        %v1681 = vadd.f32 %v1665, %v1673
        %v1682 = vadd.f32 %v1666, %v1674
        %vm1683 = vcmask 261120
        %1684 = vst.msk [vmem:[%s452] sm:$0xff] %vm1683, %v1675
        %1685 = vst.msk [vmem:[%s452 + $0x8] sm:$0xff] %vm1683, %v1676
        %1686 = vst.msk [vmem:[%s452 + $0x10] sm:$0xff] %vm1683, %v1677
        %1687 = vst.msk [vmem:[%s452 + $0x18] sm:$0xff] %vm1683, %v1678
        %1688 = vst.msk [vmem:[%s452 + $0x20] sm:$0xff] %vm1683, %v1679
        %1689 = vst.msk [vmem:[%s452 + $0x28] sm:$0xff] %vm1683, %v1680
        %1690 = vst.msk [vmem:[%s452 + $0x30] sm:$0xff] %vm1683, %v1681
        %1691 = vst.msk [vmem:[%s452 + $0x38] sm:$0xff] %vm1683, %v1682
        %v1692 = vld [vmem:[%s6] sm:$0xff]
        %v1693 = vld [vmem:[%s6 + $0x8] sm:$0xff]
        %v1694 = vld [vmem:[%s7] sm:$0x1]
        %v1696 = vlaneseq
        %v1697 = vshrl.u32 %v1696, 7
        %v1698 = vsub.s32 0, %v1697
        %v1699 = vrot.slane %v1694, %v1698
        %v1702 = vsel %vm583, %v1131, 0
        %v1705 = vsel %vm583, %v1132, 0
        %v1708 = vsel %vm583, %v1133, 0
        %v1711 = vsel %vm583, %v1134, 0
        %v1714 = vsel %vm583, %v1135, 0
        %v1717 = vsel %vm583, %v1136, 0
        %v1720 = vsel %vm583, %v1137, 0
        %v1723 = vsel %vm583, %v1138, 0
        %v1726 = vsel %vm583, %v1139, 0
        %v1729 = vsel %vm583, %v1140, 0
        %v1732 = vsel %vm583, %v1141, 0
        %v1735 = vsel %vm583, %v1142, 0
        %v1738 = vsel %vm583, %v1143, 0
        %v1741 = vsel %vm583, %v1144, 0
        %v1744 = vsel %vm583, %v1145, 0
        %v1747 = vsel %vm583, %v1146, 0
        %1749 = vmatprep.subr.mxu0 0.0
        %1750 = vmatpush1.msra.mxu0 0.0
        %1751 = vmatprep.subr.mxu0 0.0
        %1752 = vmatpush1.msra.mxu0 0.0
        %1753 = vmatprep.subr.mxu0 0.0
        %1754 = vmatpush1.msra.mxu0 0.0
        %1755 = vmatprep.subr.mxu0 0.0
        %1756 = vmatpush1.msra.mxu0 0.0
        %1757 = vmatprep.subr.mxu0 0.0
        %1758 = vmatpush1.msra.mxu0 0.0
        %1759 = vmatprep.subr.mxu0 0.0
        %1760 = vmatpush1.msra.mxu0 0.0
        %1761 = vmatprep.subr.mxu0 0.0
        %1762 = vmatpush1.msra.mxu0 0.0
        %1763 = vmatprep.subr.mxu0 0.0
        %1764 = vmatpush1.msra.mxu0 0.0
        %1765 = vmatprep.subr.mxu0 0.0
        %1766 = vmatpush1.msra.mxu0 0.0
        %1767 = vmatprep.subr.mxu0 0.0
        %1768 = vmatpush1.msra.mxu0 0.0
        %1769 = vmatprep.subr.mxu0 0.0
        %1770 = vmatpush1.msra.mxu0 0.0
        %1771 = vmatprep.subr.mxu0 0.0
        %1772 = vmatpush1.msra.mxu0 0.0
        %1773 = vmatprep.subr.mxu0 0.0
        %1774 = vmatpush1.msra.mxu0 0.0
        %1775 = vmatprep.subr.mxu0 0.0
        %1776 = vmatpush1.msra.mxu0 0.0
        %1777 = vmatprep.subr.mxu0 0.0
        %1778 = vmatpush1.msra.mxu0 %v1693
        %1779 = vmatprep.subr.mxu0 0.0
        %1780 = vmatpush1.msra.mxu0 %v1692
        %1781 = vmatprep.subr.mxu0 0.0
        %1782 = vmatpush2.msra.mxu0 0.0
        %1783 = vmatprep.subr.mxu0 0.0
        %1784 = vmatpush2.msra.mxu0 0.0
        %1785 = vmatprep.subr.mxu0 0.0
        %1786 = vmatpush2.msra.mxu0 0.0
        %1787 = vmatprep.subr.mxu0 0.0
        %1788 = vmatpush2.msra.mxu0 0.0
        %1789 = vmatprep.subr.mxu0 0.0
        %1790 = vmatpush2.msra.mxu0 0.0
        %1791 = vmatprep.subr.mxu0 0.0
        %1792 = vmatpush2.msra.mxu0 0.0
        %1793 = vmatprep.subr.mxu0 0.0
        %1794 = vmatpush2.msra.mxu0 0.0
        %1795 = vmatprep.subr.mxu0 0.0
        %1796 = vmatpush2.msra.mxu0 0.0
        %1797 = vmatprep.subr.mxu0 0.0
        %1798 = vmatpush2.msra.mxu0 0.0
        %1799 = vmatprep.subr.mxu0 0.0
        %1800 = vmatpush2.msra.mxu0 0.0
        %1801 = vmatprep.subr.mxu0 0.0
        %1802 = vmatpush2.msra.mxu0 0.0
        %1803 = vmatprep.subr.mxu0 0.0
        %1804 = vmatpush2.msra.mxu0 0.0
        %1805 = vmatprep.subr.mxu0 0.0
        %1806 = vmatpush2.msra.mxu0 0.0
        %1807 = vmatprep.subr.mxu0 0.0
        %1808 = vmatpush2.msra.mxu0 0.0
        %1809 = vmatprep.subr.mxu0 0.0
        %1810 = vmatpush2.msra.mxu0 0.0
        %1811 = vmatprep.subr.mxu0 0.0
        %1812 = vmatpush2.msra.mxu0 0.0
        %1813 = vmatprep.mubr.f32.mxu0 0.0
        %1814 = vmatmul.mubr.f32.gmra.mxu0 %v1702
        %v1815 = vpop.f32.mrf.mxu0
        %v1816 = vadd.f32 %v1699, %v1815
        %v1817 = vpop.f32.mrf.mxu0
        %1818 = vmatprep.mubr.f32.mxu0 0.0
        %1819 = vmatmul.mubr.f32.gmra.mxu0 %v1705
        %v1820 = vpop.f32.mrf.mxu0
        %v1821 = vadd.f32 %v1699, %v1820
        %v1822 = vpop.f32.mrf.mxu0
        %1823 = vmatprep.mubr.f32.mxu0 0.0
        %1824 = vmatmul.mubr.f32.gmra.mxu0 %v1708
        %v1825 = vpop.f32.mrf.mxu0
        %v1826 = vadd.f32 %v1699, %v1825
        %v1827 = vpop.f32.mrf.mxu0
        %1828 = vmatprep.mubr.f32.mxu0 0.0
        %1829 = vmatmul.mubr.f32.gmra.mxu0 %v1711
        %v1830 = vpop.f32.mrf.mxu0
        %v1831 = vadd.f32 %v1699, %v1830
        %v1832 = vpop.f32.mrf.mxu0
        %1833 = vmatprep.mubr.f32.mxu0 0.0
        %1834 = vmatmul.mubr.f32.gmra.mxu0 %v1714
        %v1835 = vpop.f32.mrf.mxu0
        %v1836 = vadd.f32 %v1699, %v1835
        %v1837 = vpop.f32.mrf.mxu0
        %1838 = vmatprep.mubr.f32.mxu0 0.0
        %1839 = vmatmul.mubr.f32.gmra.mxu0 %v1717
        %v1840 = vpop.f32.mrf.mxu0
        %v1841 = vadd.f32 %v1699, %v1840
        %v1842 = vpop.f32.mrf.mxu0
        %1843 = vmatprep.mubr.f32.mxu0 0.0
        %1844 = vmatmul.mubr.f32.gmra.mxu0 %v1720
        %v1845 = vpop.f32.mrf.mxu0
        %v1846 = vadd.f32 %v1699, %v1845
        %v1847 = vpop.f32.mrf.mxu0
        %1848 = vmatprep.mubr.f32.mxu0 0.0
        %1849 = vmatmul.mubr.f32.gmra.mxu0 %v1723
        %v1850 = vpop.f32.mrf.mxu0
        %v1851 = vadd.f32 %v1699, %v1850
        %v1852 = vpop.f32.mrf.mxu0
        %1853 = vmatprep.mubr.f32.mxu0 0.0
        %1854 = vmatmul.mubr.f32.gmra.mxu0 %v1726
        %v1855 = vpop.f32.mrf.mxu0
        %v1856 = vadd.f32 %v1699, %v1855
        %v1857 = vpop.f32.mrf.mxu0
        %1858 = vmatprep.mubr.f32.mxu0 0.0
        %1859 = vmatmul.mubr.f32.gmra.mxu0 %v1729
        %v1860 = vpop.f32.mrf.mxu0
        %v1861 = vadd.f32 %v1699, %v1860
        %v1862 = vpop.f32.mrf.mxu0
        %1863 = vmatprep.mubr.f32.mxu0 0.0
        %1864 = vmatmul.mubr.f32.gmra.mxu0 %v1732
        %v1865 = vpop.f32.mrf.mxu0
        %v1866 = vadd.f32 %v1699, %v1865
        %v1867 = vpop.f32.mrf.mxu0
        %1868 = vmatprep.mubr.f32.mxu0 0.0
        %1869 = vmatmul.mubr.f32.gmra.mxu0 %v1735
        %v1870 = vpop.f32.mrf.mxu0
        %v1871 = vadd.f32 %v1699, %v1870
        %v1872 = vpop.f32.mrf.mxu0
        %1873 = vmatprep.mubr.f32.mxu0 0.0
        %1874 = vmatmul.mubr.f32.gmra.mxu0 %v1738
        %v1875 = vpop.f32.mrf.mxu0
        %v1876 = vadd.f32 %v1699, %v1875
        %v1877 = vpop.f32.mrf.mxu0
        %1878 = vmatprep.mubr.f32.mxu0 0.0
        %1879 = vmatmul.mubr.f32.gmra.mxu0 %v1741
        %v1880 = vpop.f32.mrf.mxu0
        %v1881 = vadd.f32 %v1699, %v1880
        %v1882 = vpop.f32.mrf.mxu0
        %1883 = vmatprep.mubr.f32.mxu0 0.0
        %1884 = vmatmul.mubr.f32.gmra.mxu0 %v1744
        %v1885 = vpop.f32.mrf.mxu0
        %v1886 = vadd.f32 %v1699, %v1885
        %v1887 = vpop.f32.mrf.mxu0
        %1888 = vmatprep.mubr.f32.mxu0 0.0
        %1889 = vmatmul.mubr.f32.gmra.mxu0 %v1747
        %v1890 = vpop.f32.mrf.mxu0
        %v1891 = vadd.f32 %v1699, %v1890
        %v1892 = vpop.f32.mrf.mxu0
        %1893 = vdwg.mxu0
        %v1894 = vld [vmem:[%s476] sm:$0x3]
        %v1895 = vlaneseq
        %v1896 = vshrl.u32 %v1895, 7
        %v1897 = vsub.s32 0, %v1896
        %v1898 = vrot.slane %v1894, %v1897
        %v1899 = vlaneseq
        %v1900 = vshrl.u32 %v1899, 7
        %v1901 = vsub.s32 1, %v1900
        %v1902 = vrot.slane %v1894, %v1901
        %v1903 = vmul.f32 %v1898, %v1816
        %v1904 = vmul.f32 %v1898, %v1821
        %v1905 = vmul.f32 %v1898, %v1826
        %v1906 = vmul.f32 %v1898, %v1831
        %v1907 = vmul.f32 %v1898, %v1836
        %v1908 = vmul.f32 %v1898, %v1841
        %v1909 = vmul.f32 %v1898, %v1846
        %v1910 = vmul.f32 %v1898, %v1851
        %v1911 = vmul.f32 %v1902, %v1856
        %v1912 = vmul.f32 %v1902, %v1861
        %v1913 = vmul.f32 %v1902, %v1866
        %v1914 = vmul.f32 %v1902, %v1871
        %v1915 = vmul.f32 %v1902, %v1876
        %v1916 = vmul.f32 %v1902, %v1881
        %v1917 = vmul.f32 %v1902, %v1886
        %v1918 = vmul.f32 %v1902, %v1891
        %v1919 = vld [vmem:[%s486] sm:$0xff]
        %v1920 = vld [vmem:[%s486 + $0x8] sm:$0xff]
        %v1921 = vld [vmem:[%s486 + $0x10] sm:$0xff]
        %v1922 = vld [vmem:[%s486 + $0x18] sm:$0xff]
        %v1923 = vld [vmem:[%s486 + $0x20] sm:$0xff]
        %v1924 = vld [vmem:[%s486 + $0x28] sm:$0xff]
        %v1925 = vld [vmem:[%s486 + $0x30] sm:$0xff]
        %v1926 = vld [vmem:[%s486 + $0x38] sm:$0xff]
        %v1927 = vld [vmem:[%s486 + $0x40] sm:$0xff]
        %v1928 = vld [vmem:[%s486 + $0x48] sm:$0xff]
        %v1929 = vld [vmem:[%s486 + $0x50] sm:$0xff]
        %v1930 = vld [vmem:[%s486 + $0x58] sm:$0xff]
        %v1931 = vld [vmem:[%s486 + $0x60] sm:$0xff]
        %v1932 = vld [vmem:[%s486 + $0x68] sm:$0xff]
        %v1933 = vld [vmem:[%s486 + $0x70] sm:$0xff]
        %v1934 = vld [vmem:[%s486 + $0x78] sm:$0xff]
        %v1935 = vadd.f32 %v1903, %v1919
        %v1936 = vadd.f32 %v1904, %v1920
        %v1937 = vadd.f32 %v1905, %v1921
        %v1938 = vadd.f32 %v1906, %v1922
        %v1939 = vadd.f32 %v1907, %v1923
        %v1940 = vadd.f32 %v1908, %v1924
        %v1941 = vadd.f32 %v1909, %v1925
        %v1942 = vadd.f32 %v1910, %v1926
        %v1943 = vadd.f32 %v1911, %v1927
        %v1944 = vadd.f32 %v1912, %v1928
        %v1945 = vadd.f32 %v1913, %v1929
        %v1946 = vadd.f32 %v1914, %v1930
        %v1947 = vadd.f32 %v1915, %v1931
        %v1948 = vadd.f32 %v1916, %v1932
        %v1949 = vadd.f32 %v1917, %v1933
        %v1950 = vadd.f32 %v1918, %v1934
        %1951 = vst.msk [vmem:[%s459] sm:$0xff] %vm1683, %v1935
        %1952 = vst.msk [vmem:[%s459 + $0x8] sm:$0xff] %vm1683, %v1936
        %1953 = vst.msk [vmem:[%s459 + $0x10] sm:$0xff] %vm1683, %v1937
        %1954 = vst.msk [vmem:[%s459 + $0x18] sm:$0xff] %vm1683, %v1938
        %1955 = vst.msk [vmem:[%s459 + $0x20] sm:$0xff] %vm1683, %v1939
        %1956 = vst.msk [vmem:[%s459 + $0x28] sm:$0xff] %vm1683, %v1940
        %1957 = vst.msk [vmem:[%s459 + $0x30] sm:$0xff] %vm1683, %v1941
        %1958 = vst.msk [vmem:[%s459 + $0x38] sm:$0xff] %vm1683, %v1942
        %1959 = vst.msk [vmem:[%s459 + $0x40] sm:$0xff] %vm1683, %v1943
        %1960 = vst.msk [vmem:[%s459 + $0x48] sm:$0xff] %vm1683, %v1944
        %1961 = vst.msk [vmem:[%s459 + $0x50] sm:$0xff] %vm1683, %v1945
        %1962 = vst.msk [vmem:[%s459 + $0x58] sm:$0xff] %vm1683, %v1946
        %1963 = vst.msk [vmem:[%s459 + $0x60] sm:$0xff] %vm1683, %v1947
        %1964 = vst.msk [vmem:[%s459 + $0x68] sm:$0xff] %vm1683, %v1948
        %1965 = vst.msk [vmem:[%s459 + $0x70] sm:$0xff] %vm1683, %v1949
        %1966 = vst.msk [vmem:[%s459 + $0x78] sm:$0xff] %vm1683, %v1950
        %s1967 = sand.u32 %s277, 1
        %s1968 = scalar_lea.sflag [#allocation3], %s1967
        %s1969 = sand.u32 %s277, 1
        %s1970 = smul.addr %s1969, 64
        %s1971 = scalar_lea.vmem [#allocation2], %s1970
        %s1972 = sand.u32 %s303, 1
        %s1973 = scalar_lea.sflag [#allocation5], %s1972
        %s1974 = sand.u32 %s303, 1
        %s1975 = smul.addr %s1974, 128
        %s1976 = scalar_lea.vmem [#allocation4], %s1975
        // Predicated region
        $region61: #{fem_forward.5} parent=59 // pred_check
          %p1977 = pneg %p287
        $region62: #{fem_forward.5} parent=59 // pred_check_branch
          %1979 = sbr.rel (%p1977) target = $region64
        $region63: #{fem_forward.5} parent=59 // pred_region
          %s1981 = ssub.s32 1024, 1024
          %1982 = vsyncadd %s1968, %s1981
          %s1983 = smul.addr %s29, 8
          %s1984 = smul.addr %s1983, 128
          %s1985 = scalar_lea.hbm %s10, %s1984
          %s1986 = sshll.u32 %s1971, 4
          %s1987 = int_to_ptr.vmem [resolvable:$true] %s1986
          %1992 = dma.vmem_to_hbm [thread:$0]  %s1987, 1024, %s1985, %s1968, 128, 128, 8
        $region64: #{fem_forward.5} parent=59 // pred_fallthru
          _
        // Predicated region
        $region65: #{fem_forward.5} parent=59 // pred_check
          %p1993 = pneg %p313
        $region66: #{fem_forward.5} parent=59 // pred_check_branch
          %1995 = sbr.rel (%p1993) target = $region68
        $region67: #{fem_forward.5} parent=59 // pred_region
          %s1997 = ssub.s32 2048, 2048
          %1998 = vsyncadd %s1973, %s1997
          %s1999 = smul.addr %s29, 16
          %s2000 = smul.addr %s1999, 128
          %s2001 = scalar_lea.hbm %s11, %s2000
          %s2002 = sshll.u32 %s1976, 4
          %s2003 = int_to_ptr.vmem [resolvable:$true] %s2002
          %2008 = dma.vmem_to_hbm [thread:$0]  %s2003, 2048, %s2001, %s1973, 128, 128, 8
        $region68: #{fem_forward.5} parent=59 // pred_fallthru
          _
      $region60: #{fem_forward.5} parent=5 // pred_fallthru
        _
      %p2009 = scmp.le.s32.totalorder 2, %s24
      // Predicated region
      $region69: #{fem_forward.5} parent=5 // pred_check
        %p2010 = pneg %p2009
      $region70: #{fem_forward.5} parent=5 // pred_check_branch
        %2012 = sbr.rel (%p2010) target = $region72
      $region71: #{fem_forward.5} parent=5 // pred_region
        %s2013 = ssub.s32 %s24, 2
        // Predicated region
        $region73: #{fem_forward.5} parent=71 // pred_check
          %p2014 = pneg %p293
        $region74: #{fem_forward.5} parent=71 // pred_check_branch
          %2016 = sbr.rel (%p2014) target = $region76
        $region75: #{fem_forward.5} parent=71 // pred_region
          %s2017 = sand.u32 %s278, 1
          %s2018 = scalar_lea.sflag [#allocation3], %s2017
          %s2019 = sand.u32 %s278, 1
          %s2020 = smul.addr %s2019, 64
          %s2021 = scalar_lea.vmem [#allocation2], %s2020
          %2022 = dma.done %s2018, 1024
        $region76: #{fem_forward.5} parent=71 // pred_fallthru
          _
        // Predicated region
        $region77: #{fem_forward.5} parent=71 // pred_check
          %p2023 = pneg %p319
        $region78: #{fem_forward.5} parent=71 // pred_check_branch
          %2025 = sbr.rel (%p2023) target = $region80
        $region79: #{fem_forward.5} parent=71 // pred_region
          %s2026 = sand.u32 %s304, 1
          %s2027 = scalar_lea.sflag [#allocation5], %s2026
          %s2028 = sand.u32 %s304, 1
          %s2029 = smul.addr %s2028, 128
          %s2030 = scalar_lea.vmem [#allocation4], %s2029
          %2031 = dma.done %s2027, 2048
        $region80: #{fem_forward.5} parent=71 // pred_fallthru
          _
      $region72: #{fem_forward.5} parent=5 // pred_fallthru
        _
    $region6: #{fem_forward.5} parent=1 // loop_footer
      %s28 = sadd.s32 1, %s24
    $region7: #{fem_forward.5} parent=1 // loop_footer_branch
      %23 = sbr.rel target = $region3
    $region8: #{fem_forward.5} parent=1 // loop_exit
      _
    %2032 = vsyncpa [#allocation3], 1
    %s2033 = scalar_lea.sflag [#allocation3], 1
    %2034 = vsyncpa %s2033, 1
    %2035 = vsyncpa [#allocation5], 1
    %s2036 = scalar_lea.sflag [#allocation5], 1
    %2037 = vsyncpa %s2036, 1

</llo_original>
